<compile_context>
chip_gen: v7x
topology: tpu7x:2x2x1
jax: 0.10.0
libtpu: 0.0.40
codegen_flags: <defaults>
</compile_context>

<pallas_src>
import jax
import jax.numpy as jnp
from jax.experimental import pallas as pl
from jax.experimental.pallas import tpu as pltpu


# --------------------------------------------------------------------------
# Fused kernel: LSTM1 -> LSTM2 -> Linear -> sigmoid, all in one launch.
# Gate order follows PyTorch: [i, f, g, o]; bias = b_ih + b_hh (combined).
# --------------------------------------------------------------------------
def _fused_predictor_kernel(x_ref, wx1_ref, wh1_ref, b1_ref,
                            wx2_ref, wh2_ref, b2_ref,
                            wfc_ref, bfc_ref, out_ref):
    T, B, _ = x_ref.shape
    H = wh1_ref.shape[0]

    def lstm_unrolled(gx_list, wh):
        """Run the recurrence given pre-computed input projections gx_list[t]."""
        h = jnp.zeros((B, H), jnp.float32)
        c = jnp.zeros((B, H), jnp.float32)
        hs = []
        for t in range(T):  # T is small & static -> fully unrolled
            gates = gx_list[t] + jnp.dot(h, wh, preferred_element_type=jnp.float32)
            i_g = jax.nn.sigmoid(gates[:, 0 * H:1 * H])
            f_g = jax.nn.sigmoid(gates[:, 1 * H:2 * H])
            g_g = jnp.tanh(gates[:, 2 * H:3 * H])
            o_g = jax.nn.sigmoid(gates[:, 3 * H:4 * H])
            c = f_g * c + i_g * g_g
            h = o_g * jnp.tanh(c)
            hs.append(h)
        return hs

    # ---- Layer 1: hoisted input projection (independent of the recurrence) ----
    wx1 = wx1_ref[...]
    b1 = b1_ref[...]                                   # (1, 4H), broadcasts over B
    gx1 = [jnp.dot(x_ref[t], wx1, preferred_element_type=jnp.float32) + b1
           for t in range(T)]                          # T x (B, 4H)
    seq1 = lstm_unrolled(gx1, wh1_ref[...])            # T x (B, H), stays in vregs

    # dropout (eval) = identity; its result (seq1[-1]) is unused by the reference.

    # ---- Layer 2: hoisted input projection over the full layer-1 sequence ----
    wx2 = wx2_ref[...]
    b2 = b2_ref[...]
    gx2 = [jnp.dot(seq1[t], wx2, preferred_element_type=jnp.float32) + b2
           for t in range(T)]
    seq2 = lstm_unrolled(gx2, wh2_ref[...])

    # dropout_2 (eval) = identity.

    # ---- Final Linear + sigmoid on the last hidden state, fused in-kernel ----
    h_last = seq2[-1]                                  # (B, H)
    y = jnp.dot(h_last, wfc_ref[...], preferred_element_type=jnp.float32) + bfc_ref[...]
    out_ref[...] = jax.nn.sigmoid(y).astype(out_ref.dtype)


def fused_predictor(x_tbd, params):
    """x_tbd: (T, B, D) time-major f32.  Returns (B, O)."""
    T, B, D = x_tbd.shape
    H = params["wh1"].shape[0]
    O = params["w_fc"].shape[1]
    b1 = params["b1"].reshape(1, 4 * H)
    b2 = params["b2"].reshape(1, 4 * H)

    return pl.pallas_call(
        _fused_predictor_kernel,
        out_shape=jax.ShapeDtypeStruct((B, O), jnp.float32),
        grid_spec=pltpu.PrefetchScalarGridSpec(
            num_scalar_prefetch=0,
            grid=(1,),                                  # single launch, all resident
            in_specs=[
                pl.BlockSpec((T, B, D), lambda i: (0, 0, 0)),   # x (time-major)
                pl.BlockSpec((D, 4 * H), lambda i: (0, 0)),     # Wx1
                pl.BlockSpec((H, 4 * H), lambda i: (0, 0)),     # Wh1
                pl.BlockSpec((1, 4 * H), lambda i: (0, 0)),     # b1
                pl.BlockSpec((H, 4 * H), lambda i: (0, 0)),     # Wx2
                pl.BlockSpec((H, 4 * H), lambda i: (0, 0)),     # Wh2
                pl.BlockSpec((1, 4 * H), lambda i: (0, 0)),     # b2
                pl.BlockSpec((H, O), lambda i: (0, 0)),         # W_fc
                pl.BlockSpec((1, O), lambda i: (0, 0)),         # b_fc
            ],
            out_specs=pl.BlockSpec((B, O), lambda i: (0, 0)),
        ),
        compiler_params=pltpu.CompilerParams(
            dimension_semantics=("arbitrary",),
        ),
    )(x_tbd, params["wx1"], params["wh1"], b1,
      params["wx2"], params["wh2"], b2,
      params["w_fc"], params["b_fc"])


# --------------------------------------------------------------------------
# Parameter init (PyTorch-like uniform(-1/sqrt(H), 1/sqrt(H)); weights stored
# transposed (in, 4H) so the kernel does x @ Wx directly; bias = b_ih + b_hh).
# --------------------------------------------------------------------------
def init_params(key, input_size, hidden_size, output_size):
    H = hidden_size
    k = 1.0 / jnp.sqrt(H)
    ks = jax.random.split(key, 10)

    def u(kk, shape):
        return jax.random.uniform(kk, shape, jnp.float32, minval=-k, maxval=k)

    return {
        "wx1": u(ks[0], (input_size, 4 * H)),
        "wh1": u(ks[1], (H, 4 * H)),
        "b1": u(ks[2], (4 * H,)) + u(ks[3], (4 * H,)),
        "wx2": u(ks[4], (H, 4 * H)),
        "wh2": u(ks[5], (H, 4 * H)),
        "b2": u(ks[6], (4 * H,)) + u(ks[7], (4 * H,)),
        "w_fc": u(ks[8], (H, output_size)),
        "b_fc": u(ks[9], (1, output_size)),   # matches nn.Linear bias init range
    }


@jax.jit
def stock_price_predictor(x, params):
    """x: (B, T, D) batch-first, like the PyTorch module."""
    x_tbd = jnp.transpose(x, (1, 0, 2)).astype(jnp.float32)   # (T, B, D)
    return fused_predictor(x_tbd, params)


# --------------------------------------------------------------------------
# Pure-JAX reference (lax.scan LSTM) for a correctness self-check.
# --------------------------------------------------------------------------
def reference_forward(x, params):
    hp = jax.lax.Precision.HIGHEST

    def lstm(seq_btd, wx, wh, b):
        B = seq_btd.shape[0]
        H = wh.shape[0]

        def step(carry, x_t):
            h, c = carry
            gates = (jnp.dot(x_t, wx, precision=hp)
                     + jnp.dot(h, wh, precision=hp) + b)
            i = jax.nn.sigmoid(gates[:, 0 * H:1 * H])
            f = jax.nn.sigmoid(gates[:, 1 * H:2 * H])
            g = jnp.tanh(gates[:, 2 * H:3 * H])
            o = jax.nn.sigmoid(gates[:, 3 * H:4 * H])
            c = f * c + i * g
            h = o * jnp.tanh(c)
            return (h, c), h

        xs = jnp.transpose(seq_btd, (1, 0, 2))
        init = (jnp.zeros((B, H), jnp.float32), jnp.zeros((B, H), jnp.float32))
        _, hs = jax.lax.scan(step, init, xs)
        return jnp.transpose(hs, (1, 0, 2))

    seq1 = lstm(x, params["wx1"], params["wh1"], params["b1"])
    seq2 = lstm(seq1, params["wx2"], params["wh2"], params["b2"])
    h_last = seq2[:, -1, :]
    y = jnp.dot(h_last, params["w_fc"], precision=hp) + params["b_fc"]
    return jax.nn.sigmoid(y)


if __name__ == "__main__":
    B, T, D, H, O = 4, 8, 8, 128, 1   # hidden_size=128 is the module's default

    key = jax.random.PRNGKey(0)
    kx, kp = jax.random.split(key)
    x = jax.random.normal(kx, (B, T, D), jnp.float32)
    params = init_params(kp, input_size=D, hidden_size=H, output_size=O)

    out = stock_price_predictor(x, params)
    out = jax.block_until_ready(out)

    assert out.shape == (B, O), out.shape
    assert bool(jnp.all(jnp.isfinite(out)))

    ref = jax.block_until_ready(reference_forward(x, params))
    assert bool(jnp.allclose(out, ref, atol=5e-3, rtol=5e-3)), (out, ref)

    print("KERNEL_OK")
</pallas_src>

<mosaic_0001>
module attributes {stable_mosaic.version = 11 : i64} {
  func.func @_fused_predictor_kernel(%arg0: i32, %arg1: memref<8x4x8xf32, #tpu.memory_space<vmem>>, %arg2: memref<8x512xf32, #tpu.memory_space<vmem>>, %arg3: memref<128x512xf32, #tpu.memory_space<vmem>>, %arg4: memref<1x512xf32, #tpu.memory_space<vmem>>, %arg5: memref<128x512xf32, #tpu.memory_space<vmem>>, %arg6: memref<128x512xf32, #tpu.memory_space<vmem>>, %arg7: memref<1x512xf32, #tpu.memory_space<vmem>>, %arg8: memref<128x1xf32, #tpu.memory_space<vmem>>, %arg9: memref<1x1xf32, #tpu.memory_space<vmem>>, %arg10: memref<4x1xf32, #tpu.memory_space<vmem>>) attributes {dimension_semantics = [#tpu.dimension_semantics<arbitrary>], iteration_bounds = array<i64: 1>, scalar_prefetch = 0 : i64, scratch_operands = 0 : i64, tpu.core_type = #tpu.core_type<tc>, window_params = [{pipeline_mode = #tpu.pipeline_mode<synchronous>, transform_indices = @transform_0, window_bounds = array<i64: 8, 4, 8>}, {pipeline_mode = #tpu.pipeline_mode<synchronous>, transform_indices = @transform_1, window_bounds = array<i64: 8, 512>}, {pipeline_mode = #tpu.pipeline_mode<synchronous>, transform_indices = @transform_2, window_bounds = array<i64: 128, 512>}, {pipeline_mode = #tpu.pipeline_mode<synchronous>, transform_indices = @transform_3, window_bounds = array<i64: 1, 512>}, {pipeline_mode = #tpu.pipeline_mode<synchronous>, transform_indices = @transform_4, window_bounds = array<i64: 128, 512>}, {pipeline_mode = #tpu.pipeline_mode<synchronous>, transform_indices = @transform_5, window_bounds = array<i64: 128, 512>}, {pipeline_mode = #tpu.pipeline_mode<synchronous>, transform_indices = @transform_6, window_bounds = array<i64: 1, 512>}, {pipeline_mode = #tpu.pipeline_mode<synchronous>, transform_indices = @transform_7, window_bounds = array<i64: 128, 1>}, {pipeline_mode = #tpu.pipeline_mode<synchronous>, transform_indices = @transform_8, window_bounds = array<i64: 1, 1>}, {pipeline_mode = #tpu.pipeline_mode<synchronous>, transform_indices = @transform_9, window_bounds = array<i64: 4, 1>}]} {
    %c0 = arith.constant 0 : index
    %c0_0 = arith.constant 0 : index
    %0 = vector.load %arg2[%c0, %c0_0] : memref<8x512xf32, #tpu.memory_space<vmem>>, vector<8x512xf32>
    %c0_1 = arith.constant 0 : index
    %c0_2 = arith.constant 0 : index
    %1 = vector.load %arg4[%c0_1, %c0_2] : memref<1x512xf32, #tpu.memory_space<vmem>>, vector<1x512xf32>
    %c0_3 = arith.constant 0 : index
    %c0_4 = arith.constant 0 : index
    %c0_5 = arith.constant 0 : index
    %2 = vector.load %arg1[%c0_3, %c0_4, %c0_5] : memref<8x4x8xf32, #tpu.memory_space<vmem>>, vector<1x4x8xf32>
    %3 = vector.shape_cast %2 : vector<1x4x8xf32> to vector<4x8xf32>
    %cst = arith.constant dense<0.000000e+00> : vector<4x512xf32>
    %4 = tpu.matmul %3, %0, %cst {dimension_numbers = #tpu.dot_dimension_numbers<[1], [0], [0], [1], [0, 0, 1, 1], [], []>} : vector<4x8xf32>, vector<8x512xf32>, vector<4x512xf32> -> vector<4x512xf32>
    %5 = vector.broadcast %1 : vector<1x512xf32> to vector<4x512xf32>
    %6 = arith.addf %4, %5 : vector<4x512xf32>
    %c1 = arith.constant 1 : index
    %c0_6 = arith.constant 0 : index
    %c0_7 = arith.constant 0 : index
    %7 = vector.load %arg1[%c1, %c0_6, %c0_7] : memref<8x4x8xf32, #tpu.memory_space<vmem>>, vector<1x4x8xf32>
    %8 = vector.shape_cast %7 : vector<1x4x8xf32> to vector<4x8xf32>
    %cst_8 = arith.constant dense<0.000000e+00> : vector<4x512xf32>
    %9 = tpu.matmul %8, %0, %cst_8 {dimension_numbers = #tpu.dot_dimension_numbers<[1], [0], [0], [1], [0, 0, 1, 1], [], []>} : vector<4x8xf32>, vector<8x512xf32>, vector<4x512xf32> -> vector<4x512xf32>
    %10 = vector.broadcast %1 : vector<1x512xf32> to vector<4x512xf32>
    %11 = arith.addf %9, %10 : vector<4x512xf32>
    %c2 = arith.constant 2 : index
    %c0_9 = arith.constant 0 : index
    %c0_10 = arith.constant 0 : index
    %12 = vector.load %arg1[%c2, %c0_9, %c0_10] : memref<8x4x8xf32, #tpu.memory_space<vmem>>, vector<1x4x8xf32>
    %13 = vector.shape_cast %12 : vector<1x4x8xf32> to vector<4x8xf32>
    %cst_11 = arith.constant dense<0.000000e+00> : vector<4x512xf32>
    %14 = tpu.matmul %13, %0, %cst_11 {dimension_numbers = #tpu.dot_dimension_numbers<[1], [0], [0], [1], [0, 0, 1, 1], [], []>} : vector<4x8xf32>, vector<8x512xf32>, vector<4x512xf32> -> vector<4x512xf32>
    %15 = vector.broadcast %1 : vector<1x512xf32> to vector<4x512xf32>
    %16 = arith.addf %14, %15 : vector<4x512xf32>
    %c3 = arith.constant 3 : index
    %c0_12 = arith.constant 0 : index
    %c0_13 = arith.constant 0 : index
    %17 = vector.load %arg1[%c3, %c0_12, %c0_13] : memref<8x4x8xf32, #tpu.memory_space<vmem>>, vector<1x4x8xf32>
    %18 = vector.shape_cast %17 : vector<1x4x8xf32> to vector<4x8xf32>
    %cst_14 = arith.constant dense<0.000000e+00> : vector<4x512xf32>
    %19 = tpu.matmul %18, %0, %cst_14 {dimension_numbers = #tpu.dot_dimension_numbers<[1], [0], [0], [1], [0, 0, 1, 1], [], []>} : vector<4x8xf32>, vector<8x512xf32>, vector<4x512xf32> -> vector<4x512xf32>
    %20 = vector.broadcast %1 : vector<1x512xf32> to vector<4x512xf32>
    %21 = arith.addf %19, %20 : vector<4x512xf32>
    %c4 = arith.constant 4 : index
    %c0_15 = arith.constant 0 : index
    %c0_16 = arith.constant 0 : index
    %22 = vector.load %arg1[%c4, %c0_15, %c0_16] : memref<8x4x8xf32, #tpu.memory_space<vmem>>, vector<1x4x8xf32>
    %23 = vector.shape_cast %22 : vector<1x4x8xf32> to vector<4x8xf32>
    %cst_17 = arith.constant dense<0.000000e+00> : vector<4x512xf32>
    %24 = tpu.matmul %23, %0, %cst_17 {dimension_numbers = #tpu.dot_dimension_numbers<[1], [0], [0], [1], [0, 0, 1, 1], [], []>} : vector<4x8xf32>, vector<8x512xf32>, vector<4x512xf32> -> vector<4x512xf32>
    %25 = vector.broadcast %1 : vector<1x512xf32> to vector<4x512xf32>
    %26 = arith.addf %24, %25 : vector<4x512xf32>
    %c5 = arith.constant 5 : index
    %c0_18 = arith.constant 0 : index
    %c0_19 = arith.constant 0 : index
    %27 = vector.load %arg1[%c5, %c0_18, %c0_19] : memref<8x4x8xf32, #tpu.memory_space<vmem>>, vector<1x4x8xf32>
    %28 = vector.shape_cast %27 : vector<1x4x8xf32> to vector<4x8xf32>
    %cst_20 = arith.constant dense<0.000000e+00> : vector<4x512xf32>
    %29 = tpu.matmul %28, %0, %cst_20 {dimension_numbers = #tpu.dot_dimension_numbers<[1], [0], [0], [1], [0, 0, 1, 1], [], []>} : vector<4x8xf32>, vector<8x512xf32>, vector<4x512xf32> -> vector<4x512xf32>
    %30 = vector.broadcast %1 : vector<1x512xf32> to vector<4x512xf32>
    %31 = arith.addf %29, %30 : vector<4x512xf32>
    %c6 = arith.constant 6 : index
    %c0_21 = arith.constant 0 : index
    %c0_22 = arith.constant 0 : index
    %32 = vector.load %arg1[%c6, %c0_21, %c0_22] : memref<8x4x8xf32, #tpu.memory_space<vmem>>, vector<1x4x8xf32>
    %33 = vector.shape_cast %32 : vector<1x4x8xf32> to vector<4x8xf32>
    %cst_23 = arith.constant dense<0.000000e+00> : vector<4x512xf32>
    %34 = tpu.matmul %33, %0, %cst_23 {dimension_numbers = #tpu.dot_dimension_numbers<[1], [0], [0], [1], [0, 0, 1, 1], [], []>} : vector<4x8xf32>, vector<8x512xf32>, vector<4x512xf32> -> vector<4x512xf32>
    %35 = vector.broadcast %1 : vector<1x512xf32> to vector<4x512xf32>
    %36 = arith.addf %34, %35 : vector<4x512xf32>
    %c7 = arith.constant 7 : index
    %c0_24 = arith.constant 0 : index
    %c0_25 = arith.constant 0 : index
    %37 = vector.load %arg1[%c7, %c0_24, %c0_25] : memref<8x4x8xf32, #tpu.memory_space<vmem>>, vector<1x4x8xf32>
    %38 = vector.shape_cast %37 : vector<1x4x8xf32> to vector<4x8xf32>
    %cst_26 = arith.constant dense<0.000000e+00> : vector<4x512xf32>
    %39 = tpu.matmul %38, %0, %cst_26 {dimension_numbers = #tpu.dot_dimension_numbers<[1], [0], [0], [1], [0, 0, 1, 1], [], []>} : vector<4x8xf32>, vector<8x512xf32>, vector<4x512xf32> -> vector<4x512xf32>
    %40 = vector.broadcast %1 : vector<1x512xf32> to vector<4x512xf32>
    %41 = arith.addf %39, %40 : vector<4x512xf32>
    %c0_27 = arith.constant 0 : index
    %c0_28 = arith.constant 0 : index
    %42 = vector.load %arg3[%c0_27, %c0_28] : memref<128x512xf32, #tpu.memory_space<vmem>>, vector<128x512xf32>
    %cst_29 = arith.constant 0.000000e+00 : f32
    %43 = vector.broadcast %cst_29 : f32 to vector<4x128xf32>
    %cst_30 = arith.constant 0.000000e+00 : f32
    %44 = vector.broadcast %cst_30 : f32 to vector<4x128xf32>
    %cst_31 = arith.constant dense<0.000000e+00> : vector<4x512xf32>
    %45 = tpu.matmul %43, %42, %cst_31 {dimension_numbers = #tpu.dot_dimension_numbers<[1], [0], [0], [1], [0, 0, 1, 1], [], []>} : vector<4x128xf32>, vector<128x512xf32>, vector<4x512xf32> -> vector<4x512xf32>
    %46 = arith.addf %6, %45 : vector<4x512xf32>
    %47 = vector.extract_strided_slice %46 {offsets = [0, 0], sizes = [4, 128], strides = [1, 1]} : vector<4x512xf32> to vector<4x128xf32>
    %48 = arith.negf %47 : vector<4x128xf32>
    %49 = math.exp %48 : vector<4x128xf32>
    %cst_32 = arith.constant 1.000000e+00 : f32
    %50 = vector.broadcast %cst_32 : f32 to vector<4x128xf32>
    %51 = arith.addf %50, %49 : vector<4x128xf32>
    %52 = arith.divf %50, %51 : vector<4x128xf32>
    %53 = vector.extract_strided_slice %46 {offsets = [0, 128], sizes = [4, 128], strides = [1, 1]} : vector<4x512xf32> to vector<4x128xf32>
    %54 = arith.negf %53 : vector<4x128xf32>
    %55 = math.exp %54 : vector<4x128xf32>
    %cst_33 = arith.constant 1.000000e+00 : f32
    %56 = vector.broadcast %cst_33 : f32 to vector<4x128xf32>
    %57 = arith.addf %56, %55 : vector<4x128xf32>
    %58 = arith.divf %56, %57 : vector<4x128xf32>
    %59 = vector.extract_strided_slice %46 {offsets = [0, 256], sizes = [4, 128], strides = [1, 1]} : vector<4x512xf32> to vector<4x128xf32>
    %60 = math.tanh %59 : vector<4x128xf32>
    %61 = vector.extract_strided_slice %46 {offsets = [0, 384], sizes = [4, 128], strides = [1, 1]} : vector<4x512xf32> to vector<4x128xf32>
    %62 = arith.negf %61 : vector<4x128xf32>
    %63 = math.exp %62 : vector<4x128xf32>
    %cst_34 = arith.constant 1.000000e+00 : f32
    %64 = vector.broadcast %cst_34 : f32 to vector<4x128xf32>
    %65 = arith.addf %64, %63 : vector<4x128xf32>
    %66 = arith.divf %64, %65 : vector<4x128xf32>
    %67 = arith.mulf %58, %44 : vector<4x128xf32>
    %68 = arith.mulf %52, %60 : vector<4x128xf32>
    %69 = arith.addf %67, %68 : vector<4x128xf32>
    %70 = math.tanh %69 : vector<4x128xf32>
    %71 = arith.mulf %66, %70 : vector<4x128xf32>
    %cst_35 = arith.constant dense<0.000000e+00> : vector<4x512xf32>
    %72 = tpu.matmul %71, %42, %cst_35 {dimension_numbers = #tpu.dot_dimension_numbers<[1], [0], [0], [1], [0, 0, 1, 1], [], []>} : vector<4x128xf32>, vector<128x512xf32>, vector<4x512xf32> -> vector<4x512xf32>
    %73 = arith.addf %11, %72 : vector<4x512xf32>
    %74 = vector.extract_strided_slice %73 {offsets = [0, 0], sizes = [4, 128], strides = [1, 1]} : vector<4x512xf32> to vector<4x128xf32>
    %75 = arith.negf %74 : vector<4x128xf32>
    %76 = math.exp %75 : vector<4x128xf32>
    %cst_36 = arith.constant 1.000000e+00 : f32
    %77 = vector.broadcast %cst_36 : f32 to vector<4x128xf32>
    %78 = arith.addf %77, %76 : vector<4x128xf32>
    %79 = arith.divf %77, %78 : vector<4x128xf32>
    %80 = vector.extract_strided_slice %73 {offsets = [0, 128], sizes = [4, 128], strides = [1, 1]} : vector<4x512xf32> to vector<4x128xf32>
    %81 = arith.negf %80 : vector<4x128xf32>
    %82 = math.exp %81 : vector<4x128xf32>
    %cst_37 = arith.constant 1.000000e+00 : f32
    %83 = vector.broadcast %cst_37 : f32 to vector<4x128xf32>
    %84 = arith.addf %83, %82 : vector<4x128xf32>
    %85 = arith.divf %83, %84 : vector<4x128xf32>
    %86 = vector.extract_strided_slice %73 {offsets = [0, 256], sizes = [4, 128], strides = [1, 1]} : vector<4x512xf32> to vector<4x128xf32>
    %87 = math.tanh %86 : vector<4x128xf32>
    %88 = vector.extract_strided_slice %73 {offsets = [0, 384], sizes = [4, 128], strides = [1, 1]} : vector<4x512xf32> to vector<4x128xf32>
    %89 = arith.negf %88 : vector<4x128xf32>
    %90 = math.exp %89 : vector<4x128xf32>
    %cst_38 = arith.constant 1.000000e+00 : f32
    %91 = vector.broadcast %cst_38 : f32 to vector<4x128xf32>
    %92 = arith.addf %91, %90 : vector<4x128xf32>
    %93 = arith.divf %91, %92 : vector<4x128xf32>
    %94 = arith.mulf %85, %69 : vector<4x128xf32>
    %95 = arith.mulf %79, %87 : vector<4x128xf32>
    %96 = arith.addf %94, %95 : vector<4x128xf32>
    %97 = math.tanh %96 : vector<4x128xf32>
    %98 = arith.mulf %93, %97 : vector<4x128xf32>
    %cst_39 = arith.constant dense<0.000000e+00> : vector<4x512xf32>
    %99 = tpu.matmul %98, %42, %cst_39 {dimension_numbers = #tpu.dot_dimension_numbers<[1], [0], [0], [1], [0, 0, 1, 1], [], []>} : vector<4x128xf32>, vector<128x512xf32>, vector<4x512xf32> -> vector<4x512xf32>
    %100 = arith.addf %16, %99 : vector<4x512xf32>
    %101 = vector.extract_strided_slice %100 {offsets = [0, 0], sizes = [4, 128], strides = [1, 1]} : vector<4x512xf32> to vector<4x128xf32>
    %102 = arith.negf %101 : vector<4x128xf32>
    %103 = math.exp %102 : vector<4x128xf32>
    %cst_40 = arith.constant 1.000000e+00 : f32
    %104 = vector.broadcast %cst_40 : f32 to vector<4x128xf32>
    %105 = arith.addf %104, %103 : vector<4x128xf32>
    %106 = arith.divf %104, %105 : vector<4x128xf32>
    %107 = vector.extract_strided_slice %100 {offsets = [0, 128], sizes = [4, 128], strides = [1, 1]} : vector<4x512xf32> to vector<4x128xf32>
    %108 = arith.negf %107 : vector<4x128xf32>
    %109 = math.exp %108 : vector<4x128xf32>
    %cst_41 = arith.constant 1.000000e+00 : f32
    %110 = vector.broadcast %cst_41 : f32 to vector<4x128xf32>
    %111 = arith.addf %110, %109 : vector<4x128xf32>
    %112 = arith.divf %110, %111 : vector<4x128xf32>
    %113 = vector.extract_strided_slice %100 {offsets = [0, 256], sizes = [4, 128], strides = [1, 1]} : vector<4x512xf32> to vector<4x128xf32>
    %114 = math.tanh %113 : vector<4x128xf32>
    %115 = vector.extract_strided_slice %100 {offsets = [0, 384], sizes = [4, 128], strides = [1, 1]} : vector<4x512xf32> to vector<4x128xf32>
    %116 = arith.negf %115 : vector<4x128xf32>
    %117 = math.exp %116 : vector<4x128xf32>
    %cst_42 = arith.constant 1.000000e+00 : f32
    %118 = vector.broadcast %cst_42 : f32 to vector<4x128xf32>
    %119 = arith.addf %118, %117 : vector<4x128xf32>
    %120 = arith.divf %118, %119 : vector<4x128xf32>
    %121 = arith.mulf %112, %96 : vector<4x128xf32>
    %122 = arith.mulf %106, %114 : vector<4x128xf32>
    %123 = arith.addf %121, %122 : vector<4x128xf32>
    %124 = math.tanh %123 : vector<4x128xf32>
    %125 = arith.mulf %120, %124 : vector<4x128xf32>
    %cst_43 = arith.constant dense<0.000000e+00> : vector<4x512xf32>
    %126 = tpu.matmul %125, %42, %cst_43 {dimension_numbers = #tpu.dot_dimension_numbers<[1], [0], [0], [1], [0, 0, 1, 1], [], []>} : vector<4x128xf32>, vector<128x512xf32>, vector<4x512xf32> -> vector<4x512xf32>
    %127 = arith.addf %21, %126 : vector<4x512xf32>
    %128 = vector.extract_strided_slice %127 {offsets = [0, 0], sizes = [4, 128], strides = [1, 1]} : vector<4x512xf32> to vector<4x128xf32>
    %129 = arith.negf %128 : vector<4x128xf32>
    %130 = math.exp %129 : vector<4x128xf32>
    %cst_44 = arith.constant 1.000000e+00 : f32
    %131 = vector.broadcast %cst_44 : f32 to vector<4x128xf32>
    %132 = arith.addf %131, %130 : vector<4x128xf32>
    %133 = arith.divf %131, %132 : vector<4x128xf32>
    %134 = vector.extract_strided_slice %127 {offsets = [0, 128], sizes = [4, 128], strides = [1, 1]} : vector<4x512xf32> to vector<4x128xf32>
    %135 = arith.negf %134 : vector<4x128xf32>
    %136 = math.exp %135 : vector<4x128xf32>
    %cst_45 = arith.constant 1.000000e+00 : f32
    %137 = vector.broadcast %cst_45 : f32 to vector<4x128xf32>
    %138 = arith.addf %137, %136 : vector<4x128xf32>
    %139 = arith.divf %137, %138 : vector<4x128xf32>
    %140 = vector.extract_strided_slice %127 {offsets = [0, 256], sizes = [4, 128], strides = [1, 1]} : vector<4x512xf32> to vector<4x128xf32>
    %141 = math.tanh %140 : vector<4x128xf32>
    %142 = vector.extract_strided_slice %127 {offsets = [0, 384], sizes = [4, 128], strides = [1, 1]} : vector<4x512xf32> to vector<4x128xf32>
    %143 = arith.negf %142 : vector<4x128xf32>
    %144 = math.exp %143 : vector<4x128xf32>
    %cst_46 = arith.constant 1.000000e+00 : f32
    %145 = vector.broadcast %cst_46 : f32 to vector<4x128xf32>
    %146 = arith.addf %145, %144 : vector<4x128xf32>
    %147 = arith.divf %145, %146 : vector<4x128xf32>
    %148 = arith.mulf %139, %123 : vector<4x128xf32>
    %149 = arith.mulf %133, %141 : vector<4x128xf32>
    %150 = arith.addf %148, %149 : vector<4x128xf32>
    %151 = math.tanh %150 : vector<4x128xf32>
    %152 = arith.mulf %147, %151 : vector<4x128xf32>
    %cst_47 = arith.constant dense<0.000000e+00> : vector<4x512xf32>
    %153 = tpu.matmul %152, %42, %cst_47 {dimension_numbers = #tpu.dot_dimension_numbers<[1], [0], [0], [1], [0, 0, 1, 1], [], []>} : vector<4x128xf32>, vector<128x512xf32>, vector<4x512xf32> -> vector<4x512xf32>
    %154 = arith.addf %26, %153 : vector<4x512xf32>
    %155 = vector.extract_strided_slice %154 {offsets = [0, 0], sizes = [4, 128], strides = [1, 1]} : vector<4x512xf32> to vector<4x128xf32>
    %156 = arith.negf %155 : vector<4x128xf32>
    %157 = math.exp %156 : vector<4x128xf32>
    %cst_48 = arith.constant 1.000000e+00 : f32
    %158 = vector.broadcast %cst_48 : f32 to vector<4x128xf32>
    %159 = arith.addf %158, %157 : vector<4x128xf32>
    %160 = arith.divf %158, %159 : vector<4x128xf32>
    %161 = vector.extract_strided_slice %154 {offsets = [0, 128], sizes = [4, 128], strides = [1, 1]} : vector<4x512xf32> to vector<4x128xf32>
    %162 = arith.negf %161 : vector<4x128xf32>
    %163 = math.exp %162 : vector<4x128xf32>
    %cst_49 = arith.constant 1.000000e+00 : f32
    %164 = vector.broadcast %cst_49 : f32 to vector<4x128xf32>
    %165 = arith.addf %164, %163 : vector<4x128xf32>
    %166 = arith.divf %164, %165 : vector<4x128xf32>
    %167 = vector.extract_strided_slice %154 {offsets = [0, 256], sizes = [4, 128], strides = [1, 1]} : vector<4x512xf32> to vector<4x128xf32>
    %168 = math.tanh %167 : vector<4x128xf32>
    %169 = vector.extract_strided_slice %154 {offsets = [0, 384], sizes = [4, 128], strides = [1, 1]} : vector<4x512xf32> to vector<4x128xf32>
    %170 = arith.negf %169 : vector<4x128xf32>
    %171 = math.exp %170 : vector<4x128xf32>
    %cst_50 = arith.constant 1.000000e+00 : f32
    %172 = vector.broadcast %cst_50 : f32 to vector<4x128xf32>
    %173 = arith.addf %172, %171 : vector<4x128xf32>
    %174 = arith.divf %172, %173 : vector<4x128xf32>
    %175 = arith.mulf %166, %150 : vector<4x128xf32>
    %176 = arith.mulf %160, %168 : vector<4x128xf32>
    %177 = arith.addf %175, %176 : vector<4x128xf32>
    %178 = math.tanh %177 : vector<4x128xf32>
    %179 = arith.mulf %174, %178 : vector<4x128xf32>
    %cst_51 = arith.constant dense<0.000000e+00> : vector<4x512xf32>
    %180 = tpu.matmul %179, %42, %cst_51 {dimension_numbers = #tpu.dot_dimension_numbers<[1], [0], [0], [1], [0, 0, 1, 1], [], []>} : vector<4x128xf32>, vector<128x512xf32>, vector<4x512xf32> -> vector<4x512xf32>
    %181 = arith.addf %31, %180 : vector<4x512xf32>
    %182 = vector.extract_strided_slice %181 {offsets = [0, 0], sizes = [4, 128], strides = [1, 1]} : vector<4x512xf32> to vector<4x128xf32>
    %183 = arith.negf %182 : vector<4x128xf32>
    %184 = math.exp %183 : vector<4x128xf32>
    %cst_52 = arith.constant 1.000000e+00 : f32
    %185 = vector.broadcast %cst_52 : f32 to vector<4x128xf32>
    %186 = arith.addf %185, %184 : vector<4x128xf32>
    %187 = arith.divf %185, %186 : vector<4x128xf32>
    %188 = vector.extract_strided_slice %181 {offsets = [0, 128], sizes = [4, 128], strides = [1, 1]} : vector<4x512xf32> to vector<4x128xf32>
    %189 = arith.negf %188 : vector<4x128xf32>
    %190 = math.exp %189 : vector<4x128xf32>
    %cst_53 = arith.constant 1.000000e+00 : f32
    %191 = vector.broadcast %cst_53 : f32 to vector<4x128xf32>
    %192 = arith.addf %191, %190 : vector<4x128xf32>
    %193 = arith.divf %191, %192 : vector<4x128xf32>
    %194 = vector.extract_strided_slice %181 {offsets = [0, 256], sizes = [4, 128], strides = [1, 1]} : vector<4x512xf32> to vector<4x128xf32>
    %195 = math.tanh %194 : vector<4x128xf32>
    %196 = vector.extract_strided_slice %181 {offsets = [0, 384], sizes = [4, 128], strides = [1, 1]} : vector<4x512xf32> to vector<4x128xf32>
    %197 = arith.negf %196 : vector<4x128xf32>
    %198 = math.exp %197 : vector<4x128xf32>
    %cst_54 = arith.constant 1.000000e+00 : f32
    %199 = vector.broadcast %cst_54 : f32 to vector<4x128xf32>
    %200 = arith.addf %199, %198 : vector<4x128xf32>
    %201 = arith.divf %199, %200 : vector<4x128xf32>
    %202 = arith.mulf %193, %177 : vector<4x128xf32>
    %203 = arith.mulf %187, %195 : vector<4x128xf32>
    %204 = arith.addf %202, %203 : vector<4x128xf32>
    %205 = math.tanh %204 : vector<4x128xf32>
    %206 = arith.mulf %201, %205 : vector<4x128xf32>
    %cst_55 = arith.constant dense<0.000000e+00> : vector<4x512xf32>
    %207 = tpu.matmul %206, %42, %cst_55 {dimension_numbers = #tpu.dot_dimension_numbers<[1], [0], [0], [1], [0, 0, 1, 1], [], []>} : vector<4x128xf32>, vector<128x512xf32>, vector<4x512xf32> -> vector<4x512xf32>
    %208 = arith.addf %36, %207 : vector<4x512xf32>
    %209 = vector.extract_strided_slice %208 {offsets = [0, 0], sizes = [4, 128], strides = [1, 1]} : vector<4x512xf32> to vector<4x128xf32>
    %210 = arith.negf %209 : vector<4x128xf32>
    %211 = math.exp %210 : vector<4x128xf32>
    %cst_56 = arith.constant 1.000000e+00 : f32
    %212 = vector.broadcast %cst_56 : f32 to vector<4x128xf32>
    %213 = arith.addf %212, %211 : vector<4x128xf32>
    %214 = arith.divf %212, %213 : vector<4x128xf32>
    %215 = vector.extract_strided_slice %208 {offsets = [0, 128], sizes = [4, 128], strides = [1, 1]} : vector<4x512xf32> to vector<4x128xf32>
    %216 = arith.negf %215 : vector<4x128xf32>
    %217 = math.exp %216 : vector<4x128xf32>
    %cst_57 = arith.constant 1.000000e+00 : f32
    %218 = vector.broadcast %cst_57 : f32 to vector<4x128xf32>
    %219 = arith.addf %218, %217 : vector<4x128xf32>
    %220 = arith.divf %218, %219 : vector<4x128xf32>
    %221 = vector.extract_strided_slice %208 {offsets = [0, 256], sizes = [4, 128], strides = [1, 1]} : vector<4x512xf32> to vector<4x128xf32>
    %222 = math.tanh %221 : vector<4x128xf32>
    %223 = vector.extract_strided_slice %208 {offsets = [0, 384], sizes = [4, 128], strides = [1, 1]} : vector<4x512xf32> to vector<4x128xf32>
    %224 = arith.negf %223 : vector<4x128xf32>
    %225 = math.exp %224 : vector<4x128xf32>
    %cst_58 = arith.constant 1.000000e+00 : f32
    %226 = vector.broadcast %cst_58 : f32 to vector<4x128xf32>
    %227 = arith.addf %226, %225 : vector<4x128xf32>
    %228 = arith.divf %226, %227 : vector<4x128xf32>
    %229 = arith.mulf %220, %204 : vector<4x128xf32>
    %230 = arith.mulf %214, %222 : vector<4x128xf32>
    %231 = arith.addf %229, %230 : vector<4x128xf32>
    %232 = math.tanh %231 : vector<4x128xf32>
    %233 = arith.mulf %228, %232 : vector<4x128xf32>
    %cst_59 = arith.constant dense<0.000000e+00> : vector<4x512xf32>
    %234 = tpu.matmul %233, %42, %cst_59 {dimension_numbers = #tpu.dot_dimension_numbers<[1], [0], [0], [1], [0, 0, 1, 1], [], []>} : vector<4x128xf32>, vector<128x512xf32>, vector<4x512xf32> -> vector<4x512xf32>
    %235 = arith.addf %41, %234 : vector<4x512xf32>
    %236 = vector.extract_strided_slice %235 {offsets = [0, 0], sizes = [4, 128], strides = [1, 1]} : vector<4x512xf32> to vector<4x128xf32>
    %237 = arith.negf %236 : vector<4x128xf32>
    %238 = math.exp %237 : vector<4x128xf32>
    %cst_60 = arith.constant 1.000000e+00 : f32
    %239 = vector.broadcast %cst_60 : f32 to vector<4x128xf32>
    %240 = arith.addf %239, %238 : vector<4x128xf32>
    %241 = arith.divf %239, %240 : vector<4x128xf32>
    %242 = vector.extract_strided_slice %235 {offsets = [0, 128], sizes = [4, 128], strides = [1, 1]} : vector<4x512xf32> to vector<4x128xf32>
    %243 = arith.negf %242 : vector<4x128xf32>
    %244 = math.exp %243 : vector<4x128xf32>
    %cst_61 = arith.constant 1.000000e+00 : f32
    %245 = vector.broadcast %cst_61 : f32 to vector<4x128xf32>
    %246 = arith.addf %245, %244 : vector<4x128xf32>
    %247 = arith.divf %245, %246 : vector<4x128xf32>
    %248 = vector.extract_strided_slice %235 {offsets = [0, 256], sizes = [4, 128], strides = [1, 1]} : vector<4x512xf32> to vector<4x128xf32>
    %249 = math.tanh %248 : vector<4x128xf32>
    %250 = vector.extract_strided_slice %235 {offsets = [0, 384], sizes = [4, 128], strides = [1, 1]} : vector<4x512xf32> to vector<4x128xf32>
    %251 = arith.negf %250 : vector<4x128xf32>
    %252 = math.exp %251 : vector<4x128xf32>
    %cst_62 = arith.constant 1.000000e+00 : f32
    %253 = vector.broadcast %cst_62 : f32 to vector<4x128xf32>
    %254 = arith.addf %253, %252 : vector<4x128xf32>
    %255 = arith.divf %253, %254 : vector<4x128xf32>
    %256 = arith.mulf %247, %231 : vector<4x128xf32>
    %257 = arith.mulf %241, %249 : vector<4x128xf32>
    %258 = arith.addf %256, %257 : vector<4x128xf32>
    %259 = math.tanh %258 : vector<4x128xf32>
    %260 = arith.mulf %255, %259 : vector<4x128xf32>
    %c0_63 = arith.constant 0 : index
    %c0_64 = arith.constant 0 : index
    %261 = vector.load %arg5[%c0_63, %c0_64] : memref<128x512xf32, #tpu.memory_space<vmem>>, vector<128x512xf32>
    %c0_65 = arith.constant 0 : index
    %c0_66 = arith.constant 0 : index
    %262 = vector.load %arg7[%c0_65, %c0_66] : memref<1x512xf32, #tpu.memory_space<vmem>>, vector<1x512xf32>
    %cst_67 = arith.constant dense<0.000000e+00> : vector<4x512xf32>
    %263 = tpu.matmul %71, %261, %cst_67 {dimension_numbers = #tpu.dot_dimension_numbers<[1], [0], [0], [1], [0, 0, 1, 1], [], []>} : vector<4x128xf32>, vector<128x512xf32>, vector<4x512xf32> -> vector<4x512xf32>
    %264 = vector.broadcast %262 : vector<1x512xf32> to vector<4x512xf32>
    %265 = arith.addf %263, %264 : vector<4x512xf32>
    %cst_68 = arith.constant dense<0.000000e+00> : vector<4x512xf32>
    %266 = tpu.matmul %98, %261, %cst_68 {dimension_numbers = #tpu.dot_dimension_numbers<[1], [0], [0], [1], [0, 0, 1, 1], [], []>} : vector<4x128xf32>, vector<128x512xf32>, vector<4x512xf32> -> vector<4x512xf32>
    %267 = vector.broadcast %262 : vector<1x512xf32> to vector<4x512xf32>
    %268 = arith.addf %266, %267 : vector<4x512xf32>
    %cst_69 = arith.constant dense<0.000000e+00> : vector<4x512xf32>
    %269 = tpu.matmul %125, %261, %cst_69 {dimension_numbers = #tpu.dot_dimension_numbers<[1], [0], [0], [1], [0, 0, 1, 1], [], []>} : vector<4x128xf32>, vector<128x512xf32>, vector<4x512xf32> -> vector<4x512xf32>
    %270 = vector.broadcast %262 : vector<1x512xf32> to vector<4x512xf32>
    %271 = arith.addf %269, %270 : vector<4x512xf32>
    %cst_70 = arith.constant dense<0.000000e+00> : vector<4x512xf32>
    %272 = tpu.matmul %152, %261, %cst_70 {dimension_numbers = #tpu.dot_dimension_numbers<[1], [0], [0], [1], [0, 0, 1, 1], [], []>} : vector<4x128xf32>, vector<128x512xf32>, vector<4x512xf32> -> vector<4x512xf32>
    %273 = vector.broadcast %262 : vector<1x512xf32> to vector<4x512xf32>
    %274 = arith.addf %272, %273 : vector<4x512xf32>
    %cst_71 = arith.constant dense<0.000000e+00> : vector<4x512xf32>
    %275 = tpu.matmul %179, %261, %cst_71 {dimension_numbers = #tpu.dot_dimension_numbers<[1], [0], [0], [1], [0, 0, 1, 1], [], []>} : vector<4x128xf32>, vector<128x512xf32>, vector<4x512xf32> -> vector<4x512xf32>
    %276 = vector.broadcast %262 : vector<1x512xf32> to vector<4x512xf32>
    %277 = arith.addf %275, %276 : vector<4x512xf32>
    %cst_72 = arith.constant dense<0.000000e+00> : vector<4x512xf32>
    %278 = tpu.matmul %206, %261, %cst_72 {dimension_numbers = #tpu.dot_dimension_numbers<[1], [0], [0], [1], [0, 0, 1, 1], [], []>} : vector<4x128xf32>, vector<128x512xf32>, vector<4x512xf32> -> vector<4x512xf32>
    %279 = vector.broadcast %262 : vector<1x512xf32> to vector<4x512xf32>
    %280 = arith.addf %278, %279 : vector<4x512xf32>
    %cst_73 = arith.constant dense<0.000000e+00> : vector<4x512xf32>
    %281 = tpu.matmul %233, %261, %cst_73 {dimension_numbers = #tpu.dot_dimension_numbers<[1], [0], [0], [1], [0, 0, 1, 1], [], []>} : vector<4x128xf32>, vector<128x512xf32>, vector<4x512xf32> -> vector<4x512xf32>
    %282 = vector.broadcast %262 : vector<1x512xf32> to vector<4x512xf32>
    %283 = arith.addf %281, %282 : vector<4x512xf32>
    %cst_74 = arith.constant dense<0.000000e+00> : vector<4x512xf32>
    %284 = tpu.matmul %260, %261, %cst_74 {dimension_numbers = #tpu.dot_dimension_numbers<[1], [0], [0], [1], [0, 0, 1, 1], [], []>} : vector<4x128xf32>, vector<128x512xf32>, vector<4x512xf32> -> vector<4x512xf32>
    %285 = vector.broadcast %262 : vector<1x512xf32> to vector<4x512xf32>
    %286 = arith.addf %284, %285 : vector<4x512xf32>
    %c0_75 = arith.constant 0 : index
    %c0_76 = arith.constant 0 : index
    %287 = vector.load %arg6[%c0_75, %c0_76] : memref<128x512xf32, #tpu.memory_space<vmem>>, vector<128x512xf32>
    %cst_77 = arith.constant 0.000000e+00 : f32
    %288 = vector.broadcast %cst_77 : f32 to vector<4x128xf32>
    %cst_78 = arith.constant 0.000000e+00 : f32
    %289 = vector.broadcast %cst_78 : f32 to vector<4x128xf32>
    %cst_79 = arith.constant dense<0.000000e+00> : vector<4x512xf32>
    %290 = tpu.matmul %288, %287, %cst_79 {dimension_numbers = #tpu.dot_dimension_numbers<[1], [0], [0], [1], [0, 0, 1, 1], [], []>} : vector<4x128xf32>, vector<128x512xf32>, vector<4x512xf32> -> vector<4x512xf32>
    %291 = arith.addf %265, %290 : vector<4x512xf32>
    %292 = vector.extract_strided_slice %291 {offsets = [0, 0], sizes = [4, 128], strides = [1, 1]} : vector<4x512xf32> to vector<4x128xf32>
    %293 = arith.negf %292 : vector<4x128xf32>
    %294 = math.exp %293 : vector<4x128xf32>
    %cst_80 = arith.constant 1.000000e+00 : f32
    %295 = vector.broadcast %cst_80 : f32 to vector<4x128xf32>
    %296 = arith.addf %295, %294 : vector<4x128xf32>
    %297 = arith.divf %295, %296 : vector<4x128xf32>
    %298 = vector.extract_strided_slice %291 {offsets = [0, 128], sizes = [4, 128], strides = [1, 1]} : vector<4x512xf32> to vector<4x128xf32>
    %299 = arith.negf %298 : vector<4x128xf32>
    %300 = math.exp %299 : vector<4x128xf32>
    %cst_81 = arith.constant 1.000000e+00 : f32
    %301 = vector.broadcast %cst_81 : f32 to vector<4x128xf32>
    %302 = arith.addf %301, %300 : vector<4x128xf32>
    %303 = arith.divf %301, %302 : vector<4x128xf32>
    %304 = vector.extract_strided_slice %291 {offsets = [0, 256], sizes = [4, 128], strides = [1, 1]} : vector<4x512xf32> to vector<4x128xf32>
    %305 = math.tanh %304 : vector<4x128xf32>
    %306 = vector.extract_strided_slice %291 {offsets = [0, 384], sizes = [4, 128], strides = [1, 1]} : vector<4x512xf32> to vector<4x128xf32>
    %307 = arith.negf %306 : vector<4x128xf32>
    %308 = math.exp %307 : vector<4x128xf32>
    %cst_82 = arith.constant 1.000000e+00 : f32
    %309 = vector.broadcast %cst_82 : f32 to vector<4x128xf32>
    %310 = arith.addf %309, %308 : vector<4x128xf32>
    %311 = arith.divf %309, %310 : vector<4x128xf32>
    %312 = arith.mulf %303, %289 : vector<4x128xf32>
    %313 = arith.mulf %297, %305 : vector<4x128xf32>
    %314 = arith.addf %312, %313 : vector<4x128xf32>
    %315 = math.tanh %314 : vector<4x128xf32>
    %316 = arith.mulf %311, %315 : vector<4x128xf32>
    %cst_83 = arith.constant dense<0.000000e+00> : vector<4x512xf32>
    %317 = tpu.matmul %316, %287, %cst_83 {dimension_numbers = #tpu.dot_dimension_numbers<[1], [0], [0], [1], [0, 0, 1, 1], [], []>} : vector<4x128xf32>, vector<128x512xf32>, vector<4x512xf32> -> vector<4x512xf32>
    %318 = arith.addf %268, %317 : vector<4x512xf32>
    %319 = vector.extract_strided_slice %318 {offsets = [0, 0], sizes = [4, 128], strides = [1, 1]} : vector<4x512xf32> to vector<4x128xf32>
    %320 = arith.negf %319 : vector<4x128xf32>
    %321 = math.exp %320 : vector<4x128xf32>
    %cst_84 = arith.constant 1.000000e+00 : f32
    %322 = vector.broadcast %cst_84 : f32 to vector<4x128xf32>
    %323 = arith.addf %322, %321 : vector<4x128xf32>
    %324 = arith.divf %322, %323 : vector<4x128xf32>
    %325 = vector.extract_strided_slice %318 {offsets = [0, 128], sizes = [4, 128], strides = [1, 1]} : vector<4x512xf32> to vector<4x128xf32>
    %326 = arith.negf %325 : vector<4x128xf32>
    %327 = math.exp %326 : vector<4x128xf32>
    %cst_85 = arith.constant 1.000000e+00 : f32
    %328 = vector.broadcast %cst_85 : f32 to vector<4x128xf32>
    %329 = arith.addf %328, %327 : vector<4x128xf32>
    %330 = arith.divf %328, %329 : vector<4x128xf32>
    %331 = vector.extract_strided_slice %318 {offsets = [0, 256], sizes = [4, 128], strides = [1, 1]} : vector<4x512xf32> to vector<4x128xf32>
    %332 = math.tanh %331 : vector<4x128xf32>
    %333 = vector.extract_strided_slice %318 {offsets = [0, 384], sizes = [4, 128], strides = [1, 1]} : vector<4x512xf32> to vector<4x128xf32>
    %334 = arith.negf %333 : vector<4x128xf32>
    %335 = math.exp %334 : vector<4x128xf32>
    %cst_86 = arith.constant 1.000000e+00 : f32
    %336 = vector.broadcast %cst_86 : f32 to vector<4x128xf32>
    %337 = arith.addf %336, %335 : vector<4x128xf32>
    %338 = arith.divf %336, %337 : vector<4x128xf32>
    %339 = arith.mulf %330, %314 : vector<4x128xf32>
    %340 = arith.mulf %324, %332 : vector<4x128xf32>
    %341 = arith.addf %339, %340 : vector<4x128xf32>
    %342 = math.tanh %341 : vector<4x128xf32>
    %343 = arith.mulf %338, %342 : vector<4x128xf32>
    %cst_87 = arith.constant dense<0.000000e+00> : vector<4x512xf32>
    %344 = tpu.matmul %343, %287, %cst_87 {dimension_numbers = #tpu.dot_dimension_numbers<[1], [0], [0], [1], [0, 0, 1, 1], [], []>} : vector<4x128xf32>, vector<128x512xf32>, vector<4x512xf32> -> vector<4x512xf32>
    %345 = arith.addf %271, %344 : vector<4x512xf32>
    %346 = vector.extract_strided_slice %345 {offsets = [0, 0], sizes = [4, 128], strides = [1, 1]} : vector<4x512xf32> to vector<4x128xf32>
    %347 = arith.negf %346 : vector<4x128xf32>
    %348 = math.exp %347 : vector<4x128xf32>
    %cst_88 = arith.constant 1.000000e+00 : f32
    %349 = vector.broadcast %cst_88 : f32 to vector<4x128xf32>
    %350 = arith.addf %349, %348 : vector<4x128xf32>
    %351 = arith.divf %349, %350 : vector<4x128xf32>
    %352 = vector.extract_strided_slice %345 {offsets = [0, 128], sizes = [4, 128], strides = [1, 1]} : vector<4x512xf32> to vector<4x128xf32>
    %353 = arith.negf %352 : vector<4x128xf32>
    %354 = math.exp %353 : vector<4x128xf32>
    %cst_89 = arith.constant 1.000000e+00 : f32
    %355 = vector.broadcast %cst_89 : f32 to vector<4x128xf32>
    %356 = arith.addf %355, %354 : vector<4x128xf32>
    %357 = arith.divf %355, %356 : vector<4x128xf32>
    %358 = vector.extract_strided_slice %345 {offsets = [0, 256], sizes = [4, 128], strides = [1, 1]} : vector<4x512xf32> to vector<4x128xf32>
    %359 = math.tanh %358 : vector<4x128xf32>
    %360 = vector.extract_strided_slice %345 {offsets = [0, 384], sizes = [4, 128], strides = [1, 1]} : vector<4x512xf32> to vector<4x128xf32>
    %361 = arith.negf %360 : vector<4x128xf32>
    %362 = math.exp %361 : vector<4x128xf32>
    %cst_90 = arith.constant 1.000000e+00 : f32
    %363 = vector.broadcast %cst_90 : f32 to vector<4x128xf32>
    %364 = arith.addf %363, %362 : vector<4x128xf32>
    %365 = arith.divf %363, %364 : vector<4x128xf32>
    %366 = arith.mulf %357, %341 : vector<4x128xf32>
    %367 = arith.mulf %351, %359 : vector<4x128xf32>
    %368 = arith.addf %366, %367 : vector<4x128xf32>
    %369 = math.tanh %368 : vector<4x128xf32>
    %370 = arith.mulf %365, %369 : vector<4x128xf32>
    %cst_91 = arith.constant dense<0.000000e+00> : vector<4x512xf32>
    %371 = tpu.matmul %370, %287, %cst_91 {dimension_numbers = #tpu.dot_dimension_numbers<[1], [0], [0], [1], [0, 0, 1, 1], [], []>} : vector<4x128xf32>, vector<128x512xf32>, vector<4x512xf32> -> vector<4x512xf32>
    %372 = arith.addf %274, %371 : vector<4x512xf32>
    %373 = vector.extract_strided_slice %372 {offsets = [0, 0], sizes = [4, 128], strides = [1, 1]} : vector<4x512xf32> to vector<4x128xf32>
    %374 = arith.negf %373 : vector<4x128xf32>
    %375 = math.exp %374 : vector<4x128xf32>
    %cst_92 = arith.constant 1.000000e+00 : f32
    %376 = vector.broadcast %cst_92 : f32 to vector<4x128xf32>
    %377 = arith.addf %376, %375 : vector<4x128xf32>
    %378 = arith.divf %376, %377 : vector<4x128xf32>
    %379 = vector.extract_strided_slice %372 {offsets = [0, 128], sizes = [4, 128], strides = [1, 1]} : vector<4x512xf32> to vector<4x128xf32>
    %380 = arith.negf %379 : vector<4x128xf32>
    %381 = math.exp %380 : vector<4x128xf32>
    %cst_93 = arith.constant 1.000000e+00 : f32
    %382 = vector.broadcast %cst_93 : f32 to vector<4x128xf32>
    %383 = arith.addf %382, %381 : vector<4x128xf32>
    %384 = arith.divf %382, %383 : vector<4x128xf32>
    %385 = vector.extract_strided_slice %372 {offsets = [0, 256], sizes = [4, 128], strides = [1, 1]} : vector<4x512xf32> to vector<4x128xf32>
    %386 = math.tanh %385 : vector<4x128xf32>
    %387 = vector.extract_strided_slice %372 {offsets = [0, 384], sizes = [4, 128], strides = [1, 1]} : vector<4x512xf32> to vector<4x128xf32>
    %388 = arith.negf %387 : vector<4x128xf32>
    %389 = math.exp %388 : vector<4x128xf32>
    %cst_94 = arith.constant 1.000000e+00 : f32
    %390 = vector.broadcast %cst_94 : f32 to vector<4x128xf32>
    %391 = arith.addf %390, %389 : vector<4x128xf32>
    %392 = arith.divf %390, %391 : vector<4x128xf32>
    %393 = arith.mulf %384, %368 : vector<4x128xf32>
    %394 = arith.mulf %378, %386 : vector<4x128xf32>
    %395 = arith.addf %393, %394 : vector<4x128xf32>
    %396 = math.tanh %395 : vector<4x128xf32>
    %397 = arith.mulf %392, %396 : vector<4x128xf32>
    %cst_95 = arith.constant dense<0.000000e+00> : vector<4x512xf32>
    %398 = tpu.matmul %397, %287, %cst_95 {dimension_numbers = #tpu.dot_dimension_numbers<[1], [0], [0], [1], [0, 0, 1, 1], [], []>} : vector<4x128xf32>, vector<128x512xf32>, vector<4x512xf32> -> vector<4x512xf32>
    %399 = arith.addf %277, %398 : vector<4x512xf32>
    %400 = vector.extract_strided_slice %399 {offsets = [0, 0], sizes = [4, 128], strides = [1, 1]} : vector<4x512xf32> to vector<4x128xf32>
    %401 = arith.negf %400 : vector<4x128xf32>
    %402 = math.exp %401 : vector<4x128xf32>
    %cst_96 = arith.constant 1.000000e+00 : f32
    %403 = vector.broadcast %cst_96 : f32 to vector<4x128xf32>
    %404 = arith.addf %403, %402 : vector<4x128xf32>
    %405 = arith.divf %403, %404 : vector<4x128xf32>
    %406 = vector.extract_strided_slice %399 {offsets = [0, 128], sizes = [4, 128], strides = [1, 1]} : vector<4x512xf32> to vector<4x128xf32>
    %407 = arith.negf %406 : vector<4x128xf32>
    %408 = math.exp %407 : vector<4x128xf32>
    %cst_97 = arith.constant 1.000000e+00 : f32
    %409 = vector.broadcast %cst_97 : f32 to vector<4x128xf32>
    %410 = arith.addf %409, %408 : vector<4x128xf32>
    %411 = arith.divf %409, %410 : vector<4x128xf32>
    %412 = vector.extract_strided_slice %399 {offsets = [0, 256], sizes = [4, 128], strides = [1, 1]} : vector<4x512xf32> to vector<4x128xf32>
    %413 = math.tanh %412 : vector<4x128xf32>
    %414 = vector.extract_strided_slice %399 {offsets = [0, 384], sizes = [4, 128], strides = [1, 1]} : vector<4x512xf32> to vector<4x128xf32>
    %415 = arith.negf %414 : vector<4x128xf32>
    %416 = math.exp %415 : vector<4x128xf32>
    %cst_98 = arith.constant 1.000000e+00 : f32
    %417 = vector.broadcast %cst_98 : f32 to vector<4x128xf32>
    %418 = arith.addf %417, %416 : vector<4x128xf32>
    %419 = arith.divf %417, %418 : vector<4x128xf32>
    %420 = arith.mulf %411, %395 : vector<4x128xf32>
    %421 = arith.mulf %405, %413 : vector<4x128xf32>
    %422 = arith.addf %420, %421 : vector<4x128xf32>
    %423 = math.tanh %422 : vector<4x128xf32>
    %424 = arith.mulf %419, %423 : vector<4x128xf32>
    %cst_99 = arith.constant dense<0.000000e+00> : vector<4x512xf32>
    %425 = tpu.matmul %424, %287, %cst_99 {dimension_numbers = #tpu.dot_dimension_numbers<[1], [0], [0], [1], [0, 0, 1, 1], [], []>} : vector<4x128xf32>, vector<128x512xf32>, vector<4x512xf32> -> vector<4x512xf32>
    %426 = arith.addf %280, %425 : vector<4x512xf32>
    %427 = vector.extract_strided_slice %426 {offsets = [0, 0], sizes = [4, 128], strides = [1, 1]} : vector<4x512xf32> to vector<4x128xf32>
    %428 = arith.negf %427 : vector<4x128xf32>
    %429 = math.exp %428 : vector<4x128xf32>
    %cst_100 = arith.constant 1.000000e+00 : f32
    %430 = vector.broadcast %cst_100 : f32 to vector<4x128xf32>
    %431 = arith.addf %430, %429 : vector<4x128xf32>
    %432 = arith.divf %430, %431 : vector<4x128xf32>
    %433 = vector.extract_strided_slice %426 {offsets = [0, 128], sizes = [4, 128], strides = [1, 1]} : vector<4x512xf32> to vector<4x128xf32>
    %434 = arith.negf %433 : vector<4x128xf32>
    %435 = math.exp %434 : vector<4x128xf32>
    %cst_101 = arith.constant 1.000000e+00 : f32
    %436 = vector.broadcast %cst_101 : f32 to vector<4x128xf32>
    %437 = arith.addf %436, %435 : vector<4x128xf32>
    %438 = arith.divf %436, %437 : vector<4x128xf32>
    %439 = vector.extract_strided_slice %426 {offsets = [0, 256], sizes = [4, 128], strides = [1, 1]} : vector<4x512xf32> to vector<4x128xf32>
    %440 = math.tanh %439 : vector<4x128xf32>
    %441 = vector.extract_strided_slice %426 {offsets = [0, 384], sizes = [4, 128], strides = [1, 1]} : vector<4x512xf32> to vector<4x128xf32>
    %442 = arith.negf %441 : vector<4x128xf32>
    %443 = math.exp %442 : vector<4x128xf32>
    %cst_102 = arith.constant 1.000000e+00 : f32
    %444 = vector.broadcast %cst_102 : f32 to vector<4x128xf32>
    %445 = arith.addf %444, %443 : vector<4x128xf32>
    %446 = arith.divf %444, %445 : vector<4x128xf32>
    %447 = arith.mulf %438, %422 : vector<4x128xf32>
    %448 = arith.mulf %432, %440 : vector<4x128xf32>
    %449 = arith.addf %447, %448 : vector<4x128xf32>
    %450 = math.tanh %449 : vector<4x128xf32>
    %451 = arith.mulf %446, %450 : vector<4x128xf32>
    %cst_103 = arith.constant dense<0.000000e+00> : vector<4x512xf32>
    %452 = tpu.matmul %451, %287, %cst_103 {dimension_numbers = #tpu.dot_dimension_numbers<[1], [0], [0], [1], [0, 0, 1, 1], [], []>} : vector<4x128xf32>, vector<128x512xf32>, vector<4x512xf32> -> vector<4x512xf32>
    %453 = arith.addf %283, %452 : vector<4x512xf32>
    %454 = vector.extract_strided_slice %453 {offsets = [0, 0], sizes = [4, 128], strides = [1, 1]} : vector<4x512xf32> to vector<4x128xf32>
    %455 = arith.negf %454 : vector<4x128xf32>
    %456 = math.exp %455 : vector<4x128xf32>
    %cst_104 = arith.constant 1.000000e+00 : f32
    %457 = vector.broadcast %cst_104 : f32 to vector<4x128xf32>
    %458 = arith.addf %457, %456 : vector<4x128xf32>
    %459 = arith.divf %457, %458 : vector<4x128xf32>
    %460 = vector.extract_strided_slice %453 {offsets = [0, 128], sizes = [4, 128], strides = [1, 1]} : vector<4x512xf32> to vector<4x128xf32>
    %461 = arith.negf %460 : vector<4x128xf32>
    %462 = math.exp %461 : vector<4x128xf32>
    %cst_105 = arith.constant 1.000000e+00 : f32
    %463 = vector.broadcast %cst_105 : f32 to vector<4x128xf32>
    %464 = arith.addf %463, %462 : vector<4x128xf32>
    %465 = arith.divf %463, %464 : vector<4x128xf32>
    %466 = vector.extract_strided_slice %453 {offsets = [0, 256], sizes = [4, 128], strides = [1, 1]} : vector<4x512xf32> to vector<4x128xf32>
    %467 = math.tanh %466 : vector<4x128xf32>
    %468 = vector.extract_strided_slice %453 {offsets = [0, 384], sizes = [4, 128], strides = [1, 1]} : vector<4x512xf32> to vector<4x128xf32>
    %469 = arith.negf %468 : vector<4x128xf32>
    %470 = math.exp %469 : vector<4x128xf32>
    %cst_106 = arith.constant 1.000000e+00 : f32
    %471 = vector.broadcast %cst_106 : f32 to vector<4x128xf32>
    %472 = arith.addf %471, %470 : vector<4x128xf32>
    %473 = arith.divf %471, %472 : vector<4x128xf32>
    %474 = arith.mulf %465, %449 : vector<4x128xf32>
    %475 = arith.mulf %459, %467 : vector<4x128xf32>
    %476 = arith.addf %474, %475 : vector<4x128xf32>
    %477 = math.tanh %476 : vector<4x128xf32>
    %478 = arith.mulf %473, %477 : vector<4x128xf32>
    %cst_107 = arith.constant dense<0.000000e+00> : vector<4x512xf32>
    %479 = tpu.matmul %478, %287, %cst_107 {dimension_numbers = #tpu.dot_dimension_numbers<[1], [0], [0], [1], [0, 0, 1, 1], [], []>} : vector<4x128xf32>, vector<128x512xf32>, vector<4x512xf32> -> vector<4x512xf32>
    %480 = arith.addf %286, %479 : vector<4x512xf32>
    %481 = vector.extract_strided_slice %480 {offsets = [0, 0], sizes = [4, 128], strides = [1, 1]} : vector<4x512xf32> to vector<4x128xf32>
    %482 = arith.negf %481 : vector<4x128xf32>
    %483 = math.exp %482 : vector<4x128xf32>
    %cst_108 = arith.constant 1.000000e+00 : f32
    %484 = vector.broadcast %cst_108 : f32 to vector<4x128xf32>
    %485 = arith.addf %484, %483 : vector<4x128xf32>
    %486 = arith.divf %484, %485 : vector<4x128xf32>
    %487 = vector.extract_strided_slice %480 {offsets = [0, 128], sizes = [4, 128], strides = [1, 1]} : vector<4x512xf32> to vector<4x128xf32>
    %488 = arith.negf %487 : vector<4x128xf32>
    %489 = math.exp %488 : vector<4x128xf32>
    %cst_109 = arith.constant 1.000000e+00 : f32
    %490 = vector.broadcast %cst_109 : f32 to vector<4x128xf32>
    %491 = arith.addf %490, %489 : vector<4x128xf32>
    %492 = arith.divf %490, %491 : vector<4x128xf32>
    %493 = vector.extract_strided_slice %480 {offsets = [0, 256], sizes = [4, 128], strides = [1, 1]} : vector<4x512xf32> to vector<4x128xf32>
    %494 = math.tanh %493 : vector<4x128xf32>
    %495 = vector.extract_strided_slice %480 {offsets = [0, 384], sizes = [4, 128], strides = [1, 1]} : vector<4x512xf32> to vector<4x128xf32>
    %496 = arith.negf %495 : vector<4x128xf32>
    %497 = math.exp %496 : vector<4x128xf32>
    %cst_110 = arith.constant 1.000000e+00 : f32
    %498 = vector.broadcast %cst_110 : f32 to vector<4x128xf32>
    %499 = arith.addf %498, %497 : vector<4x128xf32>
    %500 = arith.divf %498, %499 : vector<4x128xf32>
    %501 = arith.mulf %492, %476 : vector<4x128xf32>
    %502 = arith.mulf %486, %494 : vector<4x128xf32>
    %503 = arith.addf %501, %502 : vector<4x128xf32>
    %504 = math.tanh %503 : vector<4x128xf32>
    %505 = arith.mulf %500, %504 : vector<4x128xf32>
    %c0_111 = arith.constant 0 : index
    %c0_112 = arith.constant 0 : index
    %506 = vector.load %arg8[%c0_111, %c0_112] : memref<128x1xf32, #tpu.memory_space<vmem>>, vector<128x1xf32>
    %cst_113 = arith.constant dense<0.000000e+00> : vector<4x1xf32>
    %507 = tpu.matmul %505, %506, %cst_113 {dimension_numbers = #tpu.dot_dimension_numbers<[1], [0], [0], [1], [0, 0, 1, 1], [], []>} : vector<4x128xf32>, vector<128x1xf32>, vector<4x1xf32> -> vector<4x1xf32>
    %c0_114 = arith.constant 0 : index
    %c0_115 = arith.constant 0 : index
    %508 = vector.load %arg9[%c0_114, %c0_115] : memref<1x1xf32, #tpu.memory_space<vmem>>, vector<1x1xf32>
    %509 = vector.broadcast %508 : vector<1x1xf32> to vector<4x1xf32>
    %510 = arith.addf %507, %509 : vector<4x1xf32>
    %511 = arith.negf %510 : vector<4x1xf32>
    %512 = math.exp %511 : vector<4x1xf32>
    %cst_116 = arith.constant 1.000000e+00 : f32
    %513 = vector.broadcast %cst_116 : f32 to vector<4x1xf32>
    %514 = arith.addf %513, %512 : vector<4x1xf32>
    %515 = arith.divf %513, %514 : vector<4x1xf32>
    %c0_117 = arith.constant 0 : index
    %c0_118 = arith.constant 0 : index
    %516 = vector.load %arg10[%c0_117, %c0_118] : memref<4x1xf32, #tpu.memory_space<vmem>>, vector<4x1xf32>
    tpu.vector_store %arg10[%c0_117, %c0_118], %515 {strides = array<i32>} : memref<4x1xf32, #tpu.memory_space<vmem>>, vector<4x1xf32>,
    return
  }
  func.func @transform_0(%arg0: i32) -> (i32, i32, i32) {
    %c0_i32 = arith.constant 0 : i32
    %c0_i32_0 = arith.constant 0 : i32
    %c0_i32_1 = arith.constant 0 : i32
    %c0_i32_2 = arith.constant 0 : i32
    return %c0_i32, %c0_i32_0, %c0_i32_1 : i32, i32, i32
  }
  func.func @transform_1(%arg0: i32) -> (i32, i32) {
    %c0_i32 = arith.constant 0 : i32
    %c0_i32_0 = arith.constant 0 : i32
    %c0_i32_1 = arith.constant 0 : i32
    return %c0_i32, %c0_i32_0 : i32, i32
  }
  func.func @transform_2(%arg0: i32) -> (i32, i32) {
    %c0_i32 = arith.constant 0 : i32
    %c0_i32_0 = arith.constant 0 : i32
    %c0_i32_1 = arith.constant 0 : i32
    return %c0_i32, %c0_i32_0 : i32, i32
  }
  func.func @transform_3(%arg0: i32) -> (i32, i32) {
    %c0_i32 = arith.constant 0 : i32
    %c0_i32_0 = arith.constant 0 : i32
    %c0_i32_1 = arith.constant 0 : i32
    return %c0_i32, %c0_i32_0 : i32, i32
  }
  func.func @transform_4(%arg0: i32) -> (i32, i32) {
    %c0_i32 = arith.constant 0 : i32
    %c0_i32_0 = arith.constant 0 : i32
    %c0_i32_1 = arith.constant 0 : i32
    return %c0_i32, %c0_i32_0 : i32, i32
  }
  func.func @transform_5(%arg0: i32) -> (i32, i32) {
    %c0_i32 = arith.constant 0 : i32
    %c0_i32_0 = arith.constant 0 : i32
    %c0_i32_1 = arith.constant 0 : i32
    return %c0_i32, %c0_i32_0 : i32, i32
  }
  func.func @transform_6(%arg0: i32) -> (i32, i32) {
    %c0_i32 = arith.constant 0 : i32
    %c0_i32_0 = arith.constant 0 : i32
    %c0_i32_1 = arith.constant 0 : i32
    return %c0_i32, %c0_i32_0 : i32, i32
  }
  func.func @transform_7(%arg0: i32) -> (i32, i32) {
    %c0_i32 = arith.constant 0 : i32
    %c0_i32_0 = arith.constant 0 : i32
    %c0_i32_1 = arith.constant 0 : i32
    return %c0_i32, %c0_i32_0 : i32, i32
  }
  func.func @transform_8(%arg0: i32) -> (i32, i32) {
    %c0_i32 = arith.constant 0 : i32
    %c0_i32_0 = arith.constant 0 : i32
    %c0_i32_1 = arith.constant 0 : i32
    return %c0_i32, %c0_i32_0 : i32, i32
  }
  func.func @transform_9(%arg0: i32) -> (i32, i32) {
    %c0_i32 = arith.constant 0 : i32
    %c0_i32_0 = arith.constant 0 : i32
    %c0_i32_1 = arith.constant 0 : i32
    return %c0_i32, %c0_i32_0 : i32, i32
  }
}

</mosaic_0001>

<llo_original>
// kernel: stock_price_predictor.1
$region0: #{stock_price_predictor.1}
  #allocation0 [shape = 'u32[]', space=smem, size = 0x4, offset = 0x4, fixed_abs, tag = 'smem constant byte address 0x4 - core index']
  #allocation1 [shape = 'u32[144,128]{1,0:T(1,128)}', space=vmem, size = 0x12000, scoped, tag = 'internal scratch']
  #allocation2 [shape = 'f32[1,1]{1,0:T(1,128)S(1)}', space=vmem, size = 0x200, scoped, tag = 'scoped memory for stock_price_predictor.1']
  %s0 = inlined_call_operand.vmem [shape: f32[8,4,8], index: 0, kind: input, shape index: {}]
  %s1 = inlined_call_operand.vmem [shape: f32[8,512], index: 1, kind: input, shape index: {}]
  %s2 = inlined_call_operand.hbm [shape: f32[128,512], index: 2, kind: input, shape index: {}]
  %s3 = inlined_call_operand.vmem [shape: f32[1,512], index: 3, kind: input, shape index: {}]
  %s4 = inlined_call_operand.hbm [shape: f32[128,512], index: 4, kind: input, shape index: {}]
  %s5 = inlined_call_operand.hbm [shape: f32[128,512], index: 5, kind: input, shape index: {}]
  %s6 = inlined_call_operand.vmem [shape: f32[1,512], index: 6, kind: input, shape index: {}]
  %s7 = inlined_call_operand.vmem [shape: f32[128,1], index: 7, kind: input, shape index: {}]
  %s8 = inlined_call_operand.<no memory space> [shape: f32[1,1], index: 8, kind: input, shape index: {}]
  %s9 = inlined_call_operand.vmem [shape: f32[4,1], index: 9, kind: output, shape index: {}]
  %s10 = sld [smem:[#allocation0]]
  $region58: #{stock_price_predictor.1} parent=0
    _
  %s12 = ssub.s32 1, %s10
  %s13 = scalar_select 0, %s12, %s10
  %v14 = vstv %s8
  %15 = vst [vmem:[#allocation2] sm:$0x1] %v14
  $region1: #{stock_price_predictor.1} parent=0
    #allocation3 [shape = 'u8[262144]{0}', space=vmem, size = 0x40000, scoped, tag = 'input window, operand 2, single buffered']
    #allocation4 [shape = 's32[1]{0}', space=sflag, size = 0x4, scoped, tag = 'scoped memory for stock_price_predictor.1']
    #allocation5 [shape = 'u8[262144]{0}', space=vmem, size = 0x40000, scoped, tag = 'input window, operand 4, single buffered']
    #allocation6 [shape = 's32[1]{0}', space=sflag, size = 0x4, scoped, tag = 'scoped memory for stock_price_predictor.1']
    #allocation7 [shape = 'u8[262144]{0}', space=vmem, size = 0x40000, scoped, tag = 'input window, operand 5, single buffered']
    %16 = vsyncpa [#allocation4], 0
    %17 = vsyncpa [#allocation6], 0
    // Predicated region
    $region2: #{stock_price_predictor.1} parent=1 // pred_check
      _
    $region3: #{stock_price_predictor.1} parent=1 // pred_check_branch
      %19 = sbr.rel (0) target = $region5
    $region4: #{stock_price_predictor.1} parent=1 // pred_region
      _
    $region5: #{stock_price_predictor.1} parent=1 // pred_fallthru
      _
    // Predicated region
    $region6: #{stock_price_predictor.1} parent=1 // pred_check
      _
    $region7: #{stock_price_predictor.1} parent=1 // pred_check_branch
      %21 = sbr.rel (0) target = $region9
    $region8: #{stock_price_predictor.1} parent=1 // pred_region
      _
    $region9: #{stock_price_predictor.1} parent=1 // pred_fallthru
      _
    // Predicated region
    $region10: #{stock_price_predictor.1} parent=1 // pred_check
      _
    $region11: #{stock_price_predictor.1} parent=1 // pred_check_branch
      %23 = sbr.rel (0) target = $region13
    $region12: #{stock_price_predictor.1} parent=1 // pred_region
      %s25 = ssub.s32 8192, 8192
      %26 = vsyncadd [#allocation4], %s25
      %s27 = sshll.u32 [#allocation3], 4
      %s28 = int_to_ptr.vmem [resolvable:$true] %s27
      %33 = dma.hbm_to_vmem [thread:$0]  %s2, 8192, %s28, [#allocation4], 512, 512, 32
    $region13: #{stock_price_predictor.1} parent=1 // pred_fallthru
      _
    // Predicated region
    $region14: #{stock_price_predictor.1} parent=1 // pred_check
      _
    $region15: #{stock_price_predictor.1} parent=1 // pred_check_branch
      %35 = sbr.rel (0) target = $region17
    $region16: #{stock_price_predictor.1} parent=1 // pred_region
      _
    $region17: #{stock_price_predictor.1} parent=1 // pred_fallthru
      _
    // Predicated region
    $region18: #{stock_price_predictor.1} parent=1 // pred_check
      _
    $region19: #{stock_price_predictor.1} parent=1 // pred_check_branch
      %37 = sbr.rel (0) target = $region21
    $region20: #{stock_price_predictor.1} parent=1 // pred_region
      %s39 = ssub.s32 8192, 8192
      %40 = vsyncadd [#allocation6], %s39
      %s41 = sshll.u32 [#allocation5], 4
      %s42 = int_to_ptr.vmem [resolvable:$true] %s41
      %47 = dma.hbm_to_vmem [thread:$0]  %s4, 8192, %s42, [#allocation6], 512, 512, 32
    $region21: #{stock_price_predictor.1} parent=1 // pred_fallthru
      _
    // Predicated region
    $region22: #{stock_price_predictor.1} parent=1 // pred_check
      _
    $region23: #{stock_price_predictor.1} parent=1 // pred_check_branch
      %49 = sbr.rel (0) target = $region25
    $region24: #{stock_price_predictor.1} parent=1 // pred_region
      %s51 = ssub.s32 8192, 8192
      %52 = vsyncadd [#allocation6], %s51
      %s53 = sshll.u32 [#allocation7], 4
      %s54 = int_to_ptr.vmem [resolvable:$true] %s53
      %59 = dma.hbm_to_vmem [thread:$0]  %s5, 8192, %s54, [#allocation6], 512, 512, 32
    $region25: #{stock_price_predictor.1} parent=1 // pred_fallthru
      _
    // Predicated region
    $region26: #{stock_price_predictor.1} parent=1 // pred_check
      _
    $region27: #{stock_price_predictor.1} parent=1 // pred_check_branch
      %61 = sbr.rel (0) target = $region29
    $region28: #{stock_price_predictor.1} parent=1 // pred_region
      _
    $region29: #{stock_price_predictor.1} parent=1 // pred_fallthru
      _
    // Predicated region
    $region30: #{stock_price_predictor.1} parent=1 // pred_check
      _
    $region31: #{stock_price_predictor.1} parent=1 // pred_check_branch
      %63 = sbr.rel (0) target = $region33
    $region32: #{stock_price_predictor.1} parent=1 // pred_region
      _
    $region33: #{stock_price_predictor.1} parent=1 // pred_fallthru
      _
    // Predicated region
    $region34: #{stock_price_predictor.1} parent=1 // pred_check
      _
    $region35: #{stock_price_predictor.1} parent=1 // pred_check_branch
      %65 = sbr.rel (0) target = $region37
    $region36: #{stock_price_predictor.1} parent=1 // pred_region
      _
    $region37: #{stock_price_predictor.1} parent=1 // pred_fallthru
      _
    // Predicated region
    $region38: #{stock_price_predictor.1} parent=1 // pred_check
      _
    $region39: #{stock_price_predictor.1} parent=1 // pred_check_branch
      %67 = sbr.rel (0) target = $region41
    $region40: #{stock_price_predictor.1} parent=1 // pred_region
      %68 = dma.done [#allocation4], 8192
    $region41: #{stock_price_predictor.1} parent=1 // pred_fallthru
      _
    // Predicated region
    $region42: #{stock_price_predictor.1} parent=1 // pred_check
      _
    $region43: #{stock_price_predictor.1} parent=1 // pred_check_branch
      %70 = sbr.rel (0) target = $region45
    $region44: #{stock_price_predictor.1} parent=1 // pred_region
      %71 = dma.done [#allocation6], 8192
    $region45: #{stock_price_predictor.1} parent=1 // pred_fallthru
      _
    // Predicated region
    $region46: #{stock_price_predictor.1} parent=1 // pred_check
      _
    $region47: #{stock_price_predictor.1} parent=1 // pred_check_branch
      %73 = sbr.rel (0) target = $region49
    $region48: #{stock_price_predictor.1} parent=1 // pred_region
      %74 = dma.done [#allocation6], 8192
    $region49: #{stock_price_predictor.1} parent=1 // pred_fallthru
      _
    %v75 = vld [vmem:[%s1] sm:$0xff]
    %v76 = vld [vmem:[%s1 + $0x8] sm:$0xff]
    %v77 = vld [vmem:[%s1 + $0x10] sm:$0xff]
    %v78 = vld [vmem:[%s1 + $0x18] sm:$0xff]
    %v79 = vld [vmem:[%s3] sm:$0xf]
    %v80 = vld [vmem:[%s0] sm:$0xf]
    %v82 = vlaneseq
    %v83 = vshrl.u32 %v82, 7
    %v84 = vsub.s32 0, %v83
    %v85 = vrot.slane %v79, %v84
    %v86 = vlaneseq
    %v87 = vshrl.u32 %v86, 7
    %v88 = vsub.s32 1, %v87
    %v89 = vrot.slane %v79, %v88
    %v90 = vlaneseq
    %v91 = vshrl.u32 %v90, 7
    %v92 = vsub.s32 2, %v91
    %v93 = vrot.slane %v79, %v92
    %v94 = vlaneseq
    %v95 = vshrl.u32 %v94, 7
    %v96 = vsub.s32 3, %v95
    %v97 = vrot.slane %v79, %v96
    %vm102 = vcmask 64512
    %v104 = vsel %vm102, %v80, 0
    %106 = vmatprep.subr.mxu0 %v76
    %107 = vmatpush1.msra.mxu0 %v75
    %108 = vmatprep.subr.mxu0 0.0
    %109 = vmatpush1.msra.mxu0 0.0
    %110 = vmatprep.subr.mxu0 0.0
    %111 = vmatpush1.msra.mxu0 0.0
    %112 = vmatprep.subr.mxu0 0.0
    %113 = vmatpush1.msra.mxu0 0.0
    %114 = vmatprep.subr.mxu0 0.0
    %115 = vmatpush1.msra.mxu0 0.0
    %116 = vmatprep.subr.mxu0 0.0
    %117 = vmatpush1.msra.mxu0 0.0
    %118 = vmatprep.subr.mxu0 0.0
    %119 = vmatpush1.msra.mxu0 0.0
    %120 = vmatprep.subr.mxu0 0.0
    %121 = vmatpush1.msra.mxu0 0.0
    %122 = vmatprep.subr.mxu0 0.0
    %123 = vmatpush1.msra.mxu0 0.0
    %124 = vmatprep.subr.mxu0 0.0
    %125 = vmatpush1.msra.mxu0 0.0
    %126 = vmatprep.subr.mxu0 0.0
    %127 = vmatpush1.msra.mxu0 0.0
    %128 = vmatprep.subr.mxu0 0.0
    %129 = vmatpush1.msra.mxu0 0.0
    %130 = vmatprep.subr.mxu0 0.0
    %131 = vmatpush1.msra.mxu0 0.0
    %132 = vmatprep.subr.mxu0 0.0
    %133 = vmatpush1.msra.mxu0 0.0
    %134 = vmatprep.subr.mxu0 0.0
    %135 = vmatpush1.msra.mxu0 0.0
    %136 = vmatprep.subr.mxu0 0.0
    %137 = vmatpush1.msra.mxu0 0.0
    %138 = vmatprep.subr.mxu0 0.0
    %139 = vmatpush1.msra.mxu0 0.0
    %140 = vmatprep.subr.mxu0 0.0
    %141 = vmatpush1.msra.mxu0 0.0
    %142 = vmatprep.subr.mxu0 0.0
    %143 = vmatpush1.msra.mxu0 0.0
    %144 = vmatprep.subr.mxu0 0.0
    %145 = vmatpush1.msra.mxu0 0.0
    %146 = vmatprep.subr.mxu0 0.0
    %147 = vmatpush1.msra.mxu0 0.0
    %148 = vmatprep.subr.mxu0 0.0
    %149 = vmatpush1.msra.mxu0 0.0
    %150 = vmatprep.subr.mxu0 0.0
    %151 = vmatpush1.msra.mxu0 0.0
    %152 = vmatprep.subr.mxu0 0.0
    %153 = vmatpush1.msra.mxu0 0.0
    %154 = vmatprep.subr.mxu0 0.0
    %155 = vmatpush1.msra.mxu0 0.0
    %156 = vmatprep.subr.mxu0 0.0
    %157 = vmatpush1.msra.mxu0 0.0
    %158 = vmatprep.subr.mxu0 0.0
    %159 = vmatpush1.msra.mxu0 0.0
    %160 = vmatprep.subr.mxu0 0.0
    %161 = vmatpush1.msra.mxu0 0.0
    %162 = vmatprep.subr.mxu0 0.0
    %163 = vmatpush1.msra.mxu0 0.0
    %164 = vmatprep.subr.mxu0 0.0
    %165 = vmatpush1.msra.mxu0 0.0
    %166 = vmatprep.subr.mxu0 0.0
    %167 = vmatpush1.msra.mxu0 0.0
    %168 = vmatprep.subr.mxu0 0.0
    %169 = vmatpush1.msra.mxu0 0.0
    %170 = vmatprep.mubr.f32.mxu0 0.0
    %171 = vmatmul.mubr.f32.gmra.mrb[0].mxu0 %v104
    %v172 = vpop.f32.mrb[0].mxu0
    %v173 = vadd.f32 %v85, %v172
    %v174 = vpop.f32.mrb[0].mxu0
    %v175 = vadd.f32 %v89, %v174
    %176 = vdwg.mxu0
    %177 = vmatprep.subr.mxu0 %v78
    %178 = vmatpush1.msra.mxu0 %v77
    %179 = vmatprep.subr.mxu0 0.0
    %180 = vmatpush1.msra.mxu0 0.0
    %181 = vmatprep.subr.mxu0 0.0
    %182 = vmatpush1.msra.mxu0 0.0
    %183 = vmatprep.subr.mxu0 0.0
    %184 = vmatpush1.msra.mxu0 0.0
    %185 = vmatprep.subr.mxu0 0.0
    %186 = vmatpush1.msra.mxu0 0.0
    %187 = vmatprep.subr.mxu0 0.0
    %188 = vmatpush1.msra.mxu0 0.0
    %189 = vmatprep.subr.mxu0 0.0
    %190 = vmatpush1.msra.mxu0 0.0
    %191 = vmatprep.subr.mxu0 0.0
    %192 = vmatpush1.msra.mxu0 0.0
    %193 = vmatprep.subr.mxu0 0.0
    %194 = vmatpush1.msra.mxu0 0.0
    %195 = vmatprep.subr.mxu0 0.0
    %196 = vmatpush1.msra.mxu0 0.0
    %197 = vmatprep.subr.mxu0 0.0
    %198 = vmatpush1.msra.mxu0 0.0
    %199 = vmatprep.subr.mxu0 0.0
    %200 = vmatpush1.msra.mxu0 0.0
    %201 = vmatprep.subr.mxu0 0.0
    %202 = vmatpush1.msra.mxu0 0.0
    %203 = vmatprep.subr.mxu0 0.0
    %204 = vmatpush1.msra.mxu0 0.0
    %205 = vmatprep.subr.mxu0 0.0
    %206 = vmatpush1.msra.mxu0 0.0
    %207 = vmatprep.subr.mxu0 0.0
    %208 = vmatpush1.msra.mxu0 0.0
    %209 = vmatprep.subr.mxu0 0.0
    %210 = vmatpush1.msra.mxu0 0.0
    %211 = vmatprep.subr.mxu0 0.0
    %212 = vmatpush1.msra.mxu0 0.0
    %213 = vmatprep.subr.mxu0 0.0
    %214 = vmatpush1.msra.mxu0 0.0
    %215 = vmatprep.subr.mxu0 0.0
    %216 = vmatpush1.msra.mxu0 0.0
    %217 = vmatprep.subr.mxu0 0.0
    %218 = vmatpush1.msra.mxu0 0.0
    %219 = vmatprep.subr.mxu0 0.0
    %220 = vmatpush1.msra.mxu0 0.0
    %221 = vmatprep.subr.mxu0 0.0
    %222 = vmatpush1.msra.mxu0 0.0
    %223 = vmatprep.subr.mxu0 0.0
    %224 = vmatpush1.msra.mxu0 0.0
    %225 = vmatprep.subr.mxu0 0.0
    %226 = vmatpush1.msra.mxu0 0.0
    %227 = vmatprep.subr.mxu0 0.0
    %228 = vmatpush1.msra.mxu0 0.0
    %229 = vmatprep.subr.mxu0 0.0
    %230 = vmatpush1.msra.mxu0 0.0
    %231 = vmatprep.subr.mxu0 0.0
    %232 = vmatpush1.msra.mxu0 0.0
    %233 = vmatprep.subr.mxu0 0.0
    %234 = vmatpush1.msra.mxu0 0.0
    %235 = vmatprep.subr.mxu0 0.0
    %236 = vmatpush1.msra.mxu0 0.0
    %237 = vmatprep.subr.mxu0 0.0
    %238 = vmatpush1.msra.mxu0 0.0
    %239 = vmatprep.subr.mxu0 0.0
    %240 = vmatpush1.msra.mxu0 0.0
    %241 = vmatprep.mubr.f32.mxu0 0.0
    %242 = vmatmul.mubr.f32.gmra.mrb[0].mxu0 %v104
    %v243 = vpop.f32.mrb[0].mxu0
    %v244 = vadd.f32 %v93, %v243
    %v245 = vpop.f32.mrb[0].mxu0
    %v246 = vadd.f32 %v97, %v245
    %247 = vdwg.mxu0
    %s248 = scalar_lea.vmem %s0, 4
    %v249 = vld [vmem:[%s248] sm:$0xf]
    %v251 = vsel %vm102, %v249, 0
    %253 = vmatprep.subr.mxu0 %v76
    %254 = vmatpush1.msra.mxu0 %v75
    %255 = vmatprep.subr.mxu0 0.0
    %256 = vmatpush1.msra.mxu0 0.0
    %257 = vmatprep.subr.mxu0 0.0
    %258 = vmatpush1.msra.mxu0 0.0
    %259 = vmatprep.subr.mxu0 0.0
    %260 = vmatpush1.msra.mxu0 0.0
    %261 = vmatprep.subr.mxu0 0.0
    %262 = vmatpush1.msra.mxu0 0.0
    %263 = vmatprep.subr.mxu0 0.0
    %264 = vmatpush1.msra.mxu0 0.0
    %265 = vmatprep.subr.mxu0 0.0
    %266 = vmatpush1.msra.mxu0 0.0
    %267 = vmatprep.subr.mxu0 0.0
    %268 = vmatpush1.msra.mxu0 0.0
    %269 = vmatprep.subr.mxu0 0.0
    %270 = vmatpush1.msra.mxu0 0.0
    %271 = vmatprep.subr.mxu0 0.0
    %272 = vmatpush1.msra.mxu0 0.0
    %273 = vmatprep.subr.mxu0 0.0
    %274 = vmatpush1.msra.mxu0 0.0
    %275 = vmatprep.subr.mxu0 0.0
    %276 = vmatpush1.msra.mxu0 0.0
    %277 = vmatprep.subr.mxu0 0.0
    %278 = vmatpush1.msra.mxu0 0.0
    %279 = vmatprep.subr.mxu0 0.0
    %280 = vmatpush1.msra.mxu0 0.0
    %281 = vmatprep.subr.mxu0 0.0
    %282 = vmatpush1.msra.mxu0 0.0
    %283 = vmatprep.subr.mxu0 0.0
    %284 = vmatpush1.msra.mxu0 0.0
    %285 = vmatprep.subr.mxu0 0.0
    %286 = vmatpush1.msra.mxu0 0.0
    %287 = vmatprep.subr.mxu0 0.0
    %288 = vmatpush1.msra.mxu0 0.0
    %289 = vmatprep.subr.mxu0 0.0
    %290 = vmatpush1.msra.mxu0 0.0
    %291 = vmatprep.subr.mxu0 0.0
    %292 = vmatpush1.msra.mxu0 0.0
    %293 = vmatprep.subr.mxu0 0.0
    %294 = vmatpush1.msra.mxu0 0.0
    %295 = vmatprep.subr.mxu0 0.0
    %296 = vmatpush1.msra.mxu0 0.0
    %297 = vmatprep.subr.mxu0 0.0
    %298 = vmatpush1.msra.mxu0 0.0
    %299 = vmatprep.subr.mxu0 0.0
    %300 = vmatpush1.msra.mxu0 0.0
    %301 = vmatprep.subr.mxu0 0.0
    %302 = vmatpush1.msra.mxu0 0.0
    %303 = vmatprep.subr.mxu0 0.0
    %304 = vmatpush1.msra.mxu0 0.0
    %305 = vmatprep.subr.mxu0 0.0
    %306 = vmatpush1.msra.mxu0 0.0
    %307 = vmatprep.subr.mxu0 0.0
    %308 = vmatpush1.msra.mxu0 0.0
    %309 = vmatprep.subr.mxu0 0.0
    %310 = vmatpush1.msra.mxu0 0.0
    %311 = vmatprep.subr.mxu0 0.0
    %312 = vmatpush1.msra.mxu0 0.0
    %313 = vmatprep.subr.mxu0 0.0
    %314 = vmatpush1.msra.mxu0 0.0
    %315 = vmatprep.subr.mxu0 0.0
    %316 = vmatpush1.msra.mxu0 0.0
    %317 = vmatprep.mubr.f32.mxu0 0.0
    %318 = vmatmul.mubr.f32.gmra.mrb[0].mxu0 %v251
    %v319 = vpop.f32.mrb[0].mxu0
    %v320 = vadd.f32 %v85, %v319
    %v321 = vpop.f32.mrb[0].mxu0
    %v322 = vadd.f32 %v89, %v321
    %323 = vdwg.mxu0
    %324 = vmatprep.subr.mxu0 %v78
    %325 = vmatpush1.msra.mxu0 %v77
    %326 = vmatprep.subr.mxu0 0.0
    %327 = vmatpush1.msra.mxu0 0.0
    %328 = vmatprep.subr.mxu0 0.0
    %329 = vmatpush1.msra.mxu0 0.0
    %330 = vmatprep.subr.mxu0 0.0
    %331 = vmatpush1.msra.mxu0 0.0
    %332 = vmatprep.subr.mxu0 0.0
    %333 = vmatpush1.msra.mxu0 0.0
    %334 = vmatprep.subr.mxu0 0.0
    %335 = vmatpush1.msra.mxu0 0.0
    %336 = vmatprep.subr.mxu0 0.0
    %337 = vmatpush1.msra.mxu0 0.0
    %338 = vmatprep.subr.mxu0 0.0
    %339 = vmatpush1.msra.mxu0 0.0
    %340 = vmatprep.subr.mxu0 0.0
    %341 = vmatpush1.msra.mxu0 0.0
    %342 = vmatprep.subr.mxu0 0.0
    %343 = vmatpush1.msra.mxu0 0.0
    %344 = vmatprep.subr.mxu0 0.0
    %345 = vmatpush1.msra.mxu0 0.0
    %346 = vmatprep.subr.mxu0 0.0
    %347 = vmatpush1.msra.mxu0 0.0
    %348 = vmatprep.subr.mxu0 0.0
    %349 = vmatpush1.msra.mxu0 0.0
    %350 = vmatprep.subr.mxu0 0.0
    %351 = vmatpush1.msra.mxu0 0.0
    %352 = vmatprep.subr.mxu0 0.0
    %353 = vmatpush1.msra.mxu0 0.0
    %354 = vmatprep.subr.mxu0 0.0
    %355 = vmatpush1.msra.mxu0 0.0
    %356 = vmatprep.subr.mxu0 0.0
    %357 = vmatpush1.msra.mxu0 0.0
    %358 = vmatprep.subr.mxu0 0.0
    %359 = vmatpush1.msra.mxu0 0.0
    %360 = vmatprep.subr.mxu0 0.0
    %361 = vmatpush1.msra.mxu0 0.0
    %362 = vmatprep.subr.mxu0 0.0
    %363 = vmatpush1.msra.mxu0 0.0
    %364 = vmatprep.subr.mxu0 0.0
    %365 = vmatpush1.msra.mxu0 0.0
    %366 = vmatprep.subr.mxu0 0.0
    %367 = vmatpush1.msra.mxu0 0.0
    %368 = vmatprep.subr.mxu0 0.0
    %369 = vmatpush1.msra.mxu0 0.0
    %370 = vmatprep.subr.mxu0 0.0
    %371 = vmatpush1.msra.mxu0 0.0
    %372 = vmatprep.subr.mxu0 0.0
    %373 = vmatpush1.msra.mxu0 0.0
    %374 = vmatprep.subr.mxu0 0.0
    %375 = vmatpush1.msra.mxu0 0.0
    %376 = vmatprep.subr.mxu0 0.0
    %377 = vmatpush1.msra.mxu0 0.0
    %378 = vmatprep.subr.mxu0 0.0
    %379 = vmatpush1.msra.mxu0 0.0
    %380 = vmatprep.subr.mxu0 0.0
    %381 = vmatpush1.msra.mxu0 0.0
    %382 = vmatprep.subr.mxu0 0.0
    %383 = vmatpush1.msra.mxu0 0.0
    %384 = vmatprep.subr.mxu0 0.0
    %385 = vmatpush1.msra.mxu0 0.0
    %386 = vmatprep.subr.mxu0 0.0
    %387 = vmatpush1.msra.mxu0 0.0
    %388 = vmatprep.mubr.f32.mxu0 0.0
    %389 = vmatmul.mubr.f32.gmra.mrb[0].mxu0 %v251
    %v390 = vpop.f32.mrb[0].mxu0
    %v391 = vadd.f32 %v93, %v390
    %v392 = vpop.f32.mrb[0].mxu0
    %v393 = vadd.f32 %v97, %v392
    %394 = vdwg.mxu0
    %s395 = scalar_lea.vmem %s0, 8
    %v396 = vld [vmem:[%s395] sm:$0xf]
    %v398 = vsel %vm102, %v396, 0
    %400 = vmatprep.subr.mxu0 %v76
    %401 = vmatpush1.msra.mxu0 %v75
    %402 = vmatprep.subr.mxu0 0.0
    %403 = vmatpush1.msra.mxu0 0.0
    %404 = vmatprep.subr.mxu0 0.0
    %405 = vmatpush1.msra.mxu0 0.0
    %406 = vmatprep.subr.mxu0 0.0
    %407 = vmatpush1.msra.mxu0 0.0
    %408 = vmatprep.subr.mxu0 0.0
    %409 = vmatpush1.msra.mxu0 0.0
    %410 = vmatprep.subr.mxu0 0.0
    %411 = vmatpush1.msra.mxu0 0.0
    %412 = vmatprep.subr.mxu0 0.0
    %413 = vmatpush1.msra.mxu0 0.0
    %414 = vmatprep.subr.mxu0 0.0
    %415 = vmatpush1.msra.mxu0 0.0
    %416 = vmatprep.subr.mxu0 0.0
    %417 = vmatpush1.msra.mxu0 0.0
    %418 = vmatprep.subr.mxu0 0.0
    %419 = vmatpush1.msra.mxu0 0.0
    %420 = vmatprep.subr.mxu0 0.0
    %421 = vmatpush1.msra.mxu0 0.0
    %422 = vmatprep.subr.mxu0 0.0
    %423 = vmatpush1.msra.mxu0 0.0
    %424 = vmatprep.subr.mxu0 0.0
    %425 = vmatpush1.msra.mxu0 0.0
    %426 = vmatprep.subr.mxu0 0.0
    %427 = vmatpush1.msra.mxu0 0.0
    %428 = vmatprep.subr.mxu0 0.0
    %429 = vmatpush1.msra.mxu0 0.0
    %430 = vmatprep.subr.mxu0 0.0
    %431 = vmatpush1.msra.mxu0 0.0
    %432 = vmatprep.subr.mxu0 0.0
    %433 = vmatpush1.msra.mxu0 0.0
    %434 = vmatprep.subr.mxu0 0.0
    %435 = vmatpush1.msra.mxu0 0.0
    %436 = vmatprep.subr.mxu0 0.0
    %437 = vmatpush1.msra.mxu0 0.0
    %438 = vmatprep.subr.mxu0 0.0
    %439 = vmatpush1.msra.mxu0 0.0
    %440 = vmatprep.subr.mxu0 0.0
    %441 = vmatpush1.msra.mxu0 0.0
    %442 = vmatprep.subr.mxu0 0.0
    %443 = vmatpush1.msra.mxu0 0.0
    %444 = vmatprep.subr.mxu0 0.0
    %445 = vmatpush1.msra.mxu0 0.0
    %446 = vmatprep.subr.mxu0 0.0
    %447 = vmatpush1.msra.mxu0 0.0
    %448 = vmatprep.subr.mxu0 0.0
    %449 = vmatpush1.msra.mxu0 0.0
    %450 = vmatprep.subr.mxu0 0.0
    %451 = vmatpush1.msra.mxu0 0.0
    %452 = vmatprep.subr.mxu0 0.0
    %453 = vmatpush1.msra.mxu0 0.0
    %454 = vmatprep.subr.mxu0 0.0
    %455 = vmatpush1.msra.mxu0 0.0
    %456 = vmatprep.subr.mxu0 0.0
    %457 = vmatpush1.msra.mxu0 0.0
    %458 = vmatprep.subr.mxu0 0.0
    %459 = vmatpush1.msra.mxu0 0.0
    %460 = vmatprep.subr.mxu0 0.0
    %461 = vmatpush1.msra.mxu0 0.0
    %462 = vmatprep.subr.mxu0 0.0
    %463 = vmatpush1.msra.mxu0 0.0
    %464 = vmatprep.mubr.f32.mxu0 0.0
    %465 = vmatmul.mubr.f32.gmra.mrb[0].mxu0 %v398
    %v466 = vpop.f32.mrb[0].mxu0
    %v467 = vadd.f32 %v85, %v466
    %v468 = vpop.f32.mrb[0].mxu0
    %v469 = vadd.f32 %v89, %v468
    %470 = vdwg.mxu0
    %471 = vmatprep.subr.mxu0 %v78
    %472 = vmatpush1.msra.mxu0 %v77
    %473 = vmatprep.subr.mxu0 0.0
    %474 = vmatpush1.msra.mxu0 0.0
    %475 = vmatprep.subr.mxu0 0.0
    %476 = vmatpush1.msra.mxu0 0.0
    %477 = vmatprep.subr.mxu0 0.0
    %478 = vmatpush1.msra.mxu0 0.0
    %479 = vmatprep.subr.mxu0 0.0
    %480 = vmatpush1.msra.mxu0 0.0
    %481 = vmatprep.subr.mxu0 0.0
    %482 = vmatpush1.msra.mxu0 0.0
    %483 = vmatprep.subr.mxu0 0.0
    %484 = vmatpush1.msra.mxu0 0.0
    %485 = vmatprep.subr.mxu0 0.0
    %486 = vmatpush1.msra.mxu0 0.0
    %487 = vmatprep.subr.mxu0 0.0
    %488 = vmatpush1.msra.mxu0 0.0
    %489 = vmatprep.subr.mxu0 0.0
    %490 = vmatpush1.msra.mxu0 0.0
    %491 = vmatprep.subr.mxu0 0.0
    %492 = vmatpush1.msra.mxu0 0.0
    %493 = vmatprep.subr.mxu0 0.0
    %494 = vmatpush1.msra.mxu0 0.0
    %495 = vmatprep.subr.mxu0 0.0
    %496 = vmatpush1.msra.mxu0 0.0
    %497 = vmatprep.subr.mxu0 0.0
    %498 = vmatpush1.msra.mxu0 0.0
    %499 = vmatprep.subr.mxu0 0.0
    %500 = vmatpush1.msra.mxu0 0.0
    %501 = vmatprep.subr.mxu0 0.0
    %502 = vmatpush1.msra.mxu0 0.0
    %503 = vmatprep.subr.mxu0 0.0
    %504 = vmatpush1.msra.mxu0 0.0
    %505 = vmatprep.subr.mxu0 0.0
    %506 = vmatpush1.msra.mxu0 0.0
    %507 = vmatprep.subr.mxu0 0.0
    %508 = vmatpush1.msra.mxu0 0.0
    %509 = vmatprep.subr.mxu0 0.0
    %510 = vmatpush1.msra.mxu0 0.0
    %511 = vmatprep.subr.mxu0 0.0
    %512 = vmatpush1.msra.mxu0 0.0
    %513 = vmatprep.subr.mxu0 0.0
    %514 = vmatpush1.msra.mxu0 0.0
    %515 = vmatprep.subr.mxu0 0.0
    %516 = vmatpush1.msra.mxu0 0.0
    %517 = vmatprep.subr.mxu0 0.0
    %518 = vmatpush1.msra.mxu0 0.0
    %519 = vmatprep.subr.mxu0 0.0
    %520 = vmatpush1.msra.mxu0 0.0
    %521 = vmatprep.subr.mxu0 0.0
    %522 = vmatpush1.msra.mxu0 0.0
    %523 = vmatprep.subr.mxu0 0.0
    %524 = vmatpush1.msra.mxu0 0.0
    %525 = vmatprep.subr.mxu0 0.0
    %526 = vmatpush1.msra.mxu0 0.0
    %527 = vmatprep.subr.mxu0 0.0
    %528 = vmatpush1.msra.mxu0 0.0
    %529 = vmatprep.subr.mxu0 0.0
    %530 = vmatpush1.msra.mxu0 0.0
    %531 = vmatprep.subr.mxu0 0.0
    %532 = vmatpush1.msra.mxu0 0.0
    %533 = vmatprep.subr.mxu0 0.0
    %534 = vmatpush1.msra.mxu0 0.0
    %535 = vmatprep.mubr.f32.mxu0 0.0
    %536 = vmatmul.mubr.f32.gmra.mrb[0].mxu0 %v398
    %v537 = vpop.f32.mrb[0].mxu0
    %v538 = vadd.f32 %v93, %v537
    %v539 = vpop.f32.mrb[0].mxu0
    %v540 = vadd.f32 %v97, %v539
    %541 = vdwg.mxu0
    %s542 = scalar_lea.vmem %s0, 12
    %v543 = vld [vmem:[%s542] sm:$0xf]
    %v545 = vsel %vm102, %v543, 0
    %547 = vmatprep.subr.mxu0 %v76
    %548 = vmatpush1.msra.mxu0 %v75
    %549 = vmatprep.subr.mxu0 0.0
    %550 = vmatpush1.msra.mxu0 0.0
    %551 = vmatprep.subr.mxu0 0.0
    %552 = vmatpush1.msra.mxu0 0.0
    %553 = vmatprep.subr.mxu0 0.0
    %554 = vmatpush1.msra.mxu0 0.0
    %555 = vmatprep.subr.mxu0 0.0
    %556 = vmatpush1.msra.mxu0 0.0
    %557 = vmatprep.subr.mxu0 0.0
    %558 = vmatpush1.msra.mxu0 0.0
    %559 = vmatprep.subr.mxu0 0.0
    %560 = vmatpush1.msra.mxu0 0.0
    %561 = vmatprep.subr.mxu0 0.0
    %562 = vmatpush1.msra.mxu0 0.0
    %563 = vmatprep.subr.mxu0 0.0
    %564 = vmatpush1.msra.mxu0 0.0
    %565 = vmatprep.subr.mxu0 0.0
    %566 = vmatpush1.msra.mxu0 0.0
    %567 = vmatprep.subr.mxu0 0.0
    %568 = vmatpush1.msra.mxu0 0.0
    %569 = vmatprep.subr.mxu0 0.0
    %570 = vmatpush1.msra.mxu0 0.0
    %571 = vmatprep.subr.mxu0 0.0
    %572 = vmatpush1.msra.mxu0 0.0
    %573 = vmatprep.subr.mxu0 0.0
    %574 = vmatpush1.msra.mxu0 0.0
    %575 = vmatprep.subr.mxu0 0.0
    %576 = vmatpush1.msra.mxu0 0.0
    %577 = vmatprep.subr.mxu0 0.0
    %578 = vmatpush1.msra.mxu0 0.0
    %579 = vmatprep.subr.mxu0 0.0
    %580 = vmatpush1.msra.mxu0 0.0
    %581 = vmatprep.subr.mxu0 0.0
    %582 = vmatpush1.msra.mxu0 0.0
    %583 = vmatprep.subr.mxu0 0.0
    %584 = vmatpush1.msra.mxu0 0.0
    %585 = vmatprep.subr.mxu0 0.0
    %586 = vmatpush1.msra.mxu0 0.0
    %587 = vmatprep.subr.mxu0 0.0
    %588 = vmatpush1.msra.mxu0 0.0
    %589 = vmatprep.subr.mxu0 0.0
    %590 = vmatpush1.msra.mxu0 0.0
    %591 = vmatprep.subr.mxu0 0.0
    %592 = vmatpush1.msra.mxu0 0.0
    %593 = vmatprep.subr.mxu0 0.0
    %594 = vmatpush1.msra.mxu0 0.0
    %595 = vmatprep.subr.mxu0 0.0
    %596 = vmatpush1.msra.mxu0 0.0
    %597 = vmatprep.subr.mxu0 0.0
    %598 = vmatpush1.msra.mxu0 0.0
    %599 = vmatprep.subr.mxu0 0.0
    %600 = vmatpush1.msra.mxu0 0.0
    %601 = vmatprep.subr.mxu0 0.0
    %602 = vmatpush1.msra.mxu0 0.0
    %603 = vmatprep.subr.mxu0 0.0
    %604 = vmatpush1.msra.mxu0 0.0
    %605 = vmatprep.subr.mxu0 0.0
    %606 = vmatpush1.msra.mxu0 0.0
    %607 = vmatprep.subr.mxu0 0.0
    %608 = vmatpush1.msra.mxu0 0.0
    %609 = vmatprep.subr.mxu0 0.0
    %610 = vmatpush1.msra.mxu0 0.0
    %611 = vmatprep.mubr.f32.mxu0 0.0
    %612 = vmatmul.mubr.f32.gmra.mrb[0].mxu0 %v545
    %v613 = vpop.f32.mrb[0].mxu0
    %v614 = vadd.f32 %v85, %v613
    %v615 = vpop.f32.mrb[0].mxu0
    %v616 = vadd.f32 %v89, %v615
    %617 = vdwg.mxu0
    %618 = vmatprep.subr.mxu0 %v78
    %619 = vmatpush1.msra.mxu0 %v77
    %620 = vmatprep.subr.mxu0 0.0
    %621 = vmatpush1.msra.mxu0 0.0
    %622 = vmatprep.subr.mxu0 0.0
    %623 = vmatpush1.msra.mxu0 0.0
    %624 = vmatprep.subr.mxu0 0.0
    %625 = vmatpush1.msra.mxu0 0.0
    %626 = vmatprep.subr.mxu0 0.0
    %627 = vmatpush1.msra.mxu0 0.0
    %628 = vmatprep.subr.mxu0 0.0
    %629 = vmatpush1.msra.mxu0 0.0
    %630 = vmatprep.subr.mxu0 0.0
    %631 = vmatpush1.msra.mxu0 0.0
    %632 = vmatprep.subr.mxu0 0.0
    %633 = vmatpush1.msra.mxu0 0.0
    %634 = vmatprep.subr.mxu0 0.0
    %635 = vmatpush1.msra.mxu0 0.0
    %636 = vmatprep.subr.mxu0 0.0
    %637 = vmatpush1.msra.mxu0 0.0
    %638 = vmatprep.subr.mxu0 0.0
    %639 = vmatpush1.msra.mxu0 0.0
    %640 = vmatprep.subr.mxu0 0.0
    %641 = vmatpush1.msra.mxu0 0.0
    %642 = vmatprep.subr.mxu0 0.0
    %643 = vmatpush1.msra.mxu0 0.0
    %644 = vmatprep.subr.mxu0 0.0
    %645 = vmatpush1.msra.mxu0 0.0
    %646 = vmatprep.subr.mxu0 0.0
    %647 = vmatpush1.msra.mxu0 0.0
    %648 = vmatprep.subr.mxu0 0.0
    %649 = vmatpush1.msra.mxu0 0.0
    %650 = vmatprep.subr.mxu0 0.0
    %651 = vmatpush1.msra.mxu0 0.0
    %652 = vmatprep.subr.mxu0 0.0
    %653 = vmatpush1.msra.mxu0 0.0
    %654 = vmatprep.subr.mxu0 0.0
    %655 = vmatpush1.msra.mxu0 0.0
    %656 = vmatprep.subr.mxu0 0.0
    %657 = vmatpush1.msra.mxu0 0.0
    %658 = vmatprep.subr.mxu0 0.0
    %659 = vmatpush1.msra.mxu0 0.0
    %660 = vmatprep.subr.mxu0 0.0
    %661 = vmatpush1.msra.mxu0 0.0
    %662 = vmatprep.subr.mxu0 0.0
    %663 = vmatpush1.msra.mxu0 0.0
    %664 = vmatprep.subr.mxu0 0.0
    %665 = vmatpush1.msra.mxu0 0.0
    %666 = vmatprep.subr.mxu0 0.0
    %667 = vmatpush1.msra.mxu0 0.0
    %668 = vmatprep.subr.mxu0 0.0
    %669 = vmatpush1.msra.mxu0 0.0
    %670 = vmatprep.subr.mxu0 0.0
    %671 = vmatpush1.msra.mxu0 0.0
    %672 = vmatprep.subr.mxu0 0.0
    %673 = vmatpush1.msra.mxu0 0.0
    %674 = vmatprep.subr.mxu0 0.0
    %675 = vmatpush1.msra.mxu0 0.0
    %676 = vmatprep.subr.mxu0 0.0
    %677 = vmatpush1.msra.mxu0 0.0
    %678 = vmatprep.subr.mxu0 0.0
    %679 = vmatpush1.msra.mxu0 0.0
    %680 = vmatprep.subr.mxu0 0.0
    %681 = vmatpush1.msra.mxu0 0.0
    %682 = vmatprep.mubr.f32.mxu0 0.0
    %683 = vmatmul.mubr.f32.gmra.mrb[0].mxu0 %v545
    %v684 = vpop.f32.mrb[0].mxu0
    %v685 = vadd.f32 %v93, %v684
    %v686 = vpop.f32.mrb[0].mxu0
    %v687 = vadd.f32 %v97, %v686
    %688 = vdwg.mxu0
    %s689 = scalar_lea.vmem %s0, 16
    %v690 = vld [vmem:[%s689] sm:$0xf]
    %v692 = vsel %vm102, %v690, 0
    %694 = vmatprep.subr.mxu0 %v76
    %695 = vmatpush1.msra.mxu0 %v75
    %696 = vmatprep.subr.mxu0 0.0
    %697 = vmatpush1.msra.mxu0 0.0
    %698 = vmatprep.subr.mxu0 0.0
    %699 = vmatpush1.msra.mxu0 0.0
    %700 = vmatprep.subr.mxu0 0.0
    %701 = vmatpush1.msra.mxu0 0.0
    %702 = vmatprep.subr.mxu0 0.0
    %703 = vmatpush1.msra.mxu0 0.0
    %704 = vmatprep.subr.mxu0 0.0
    %705 = vmatpush1.msra.mxu0 0.0
    %706 = vmatprep.subr.mxu0 0.0
    %707 = vmatpush1.msra.mxu0 0.0
    %708 = vmatprep.subr.mxu0 0.0
    %709 = vmatpush1.msra.mxu0 0.0
    %710 = vmatprep.subr.mxu0 0.0
    %711 = vmatpush1.msra.mxu0 0.0
    %712 = vmatprep.subr.mxu0 0.0
    %713 = vmatpush1.msra.mxu0 0.0
    %714 = vmatprep.subr.mxu0 0.0
    %715 = vmatpush1.msra.mxu0 0.0
    %716 = vmatprep.subr.mxu0 0.0
    %717 = vmatpush1.msra.mxu0 0.0
    %718 = vmatprep.subr.mxu0 0.0
    %719 = vmatpush1.msra.mxu0 0.0
    %720 = vmatprep.subr.mxu0 0.0
    %721 = vmatpush1.msra.mxu0 0.0
    %722 = vmatprep.subr.mxu0 0.0
    %723 = vmatpush1.msra.mxu0 0.0
    %724 = vmatprep.subr.mxu0 0.0
    %725 = vmatpush1.msra.mxu0 0.0
    %726 = vmatprep.subr.mxu0 0.0
    %727 = vmatpush1.msra.mxu0 0.0
    %728 = vmatprep.subr.mxu0 0.0
    %729 = vmatpush1.msra.mxu0 0.0
    %730 = vmatprep.subr.mxu0 0.0
    %731 = vmatpush1.msra.mxu0 0.0
    %732 = vmatprep.subr.mxu0 0.0
    %733 = vmatpush1.msra.mxu0 0.0
    %734 = vmatprep.subr.mxu0 0.0
    %735 = vmatpush1.msra.mxu0 0.0
    %736 = vmatprep.subr.mxu0 0.0
    %737 = vmatpush1.msra.mxu0 0.0
    %738 = vmatprep.subr.mxu0 0.0
    %739 = vmatpush1.msra.mxu0 0.0
    %740 = vmatprep.subr.mxu0 0.0
    %741 = vmatpush1.msra.mxu0 0.0
    %742 = vmatprep.subr.mxu0 0.0
    %743 = vmatpush1.msra.mxu0 0.0
    %744 = vmatprep.subr.mxu0 0.0
    %745 = vmatpush1.msra.mxu0 0.0
    %746 = vmatprep.subr.mxu0 0.0
    %747 = vmatpush1.msra.mxu0 0.0
    %748 = vmatprep.subr.mxu0 0.0
    %749 = vmatpush1.msra.mxu0 0.0
    %750 = vmatprep.subr.mxu0 0.0
    %751 = vmatpush1.msra.mxu0 0.0
    %752 = vmatprep.subr.mxu0 0.0
    %753 = vmatpush1.msra.mxu0 0.0
    %754 = vmatprep.subr.mxu0 0.0
    %755 = vmatpush1.msra.mxu0 0.0
    %756 = vmatprep.subr.mxu0 0.0
    %757 = vmatpush1.msra.mxu0 0.0
    %758 = vmatprep.mubr.f32.mxu0 0.0
    %759 = vmatmul.mubr.f32.gmra.mrb[0].mxu0 %v692
    %v760 = vpop.f32.mrb[0].mxu0
    %v761 = vadd.f32 %v85, %v760
    %v762 = vpop.f32.mrb[0].mxu0
    %v763 = vadd.f32 %v89, %v762
    %764 = vdwg.mxu0
    %765 = vmatprep.subr.mxu0 %v78
    %766 = vmatpush1.msra.mxu0 %v77
    %767 = vmatprep.subr.mxu0 0.0
    %768 = vmatpush1.msra.mxu0 0.0
    %769 = vmatprep.subr.mxu0 0.0
    %770 = vmatpush1.msra.mxu0 0.0
    %771 = vmatprep.subr.mxu0 0.0
    %772 = vmatpush1.msra.mxu0 0.0
    %773 = vmatprep.subr.mxu0 0.0
    %774 = vmatpush1.msra.mxu0 0.0
    %775 = vmatprep.subr.mxu0 0.0
    %776 = vmatpush1.msra.mxu0 0.0
    %777 = vmatprep.subr.mxu0 0.0
    %778 = vmatpush1.msra.mxu0 0.0
    %779 = vmatprep.subr.mxu0 0.0
    %780 = vmatpush1.msra.mxu0 0.0
    %781 = vmatprep.subr.mxu0 0.0
    %782 = vmatpush1.msra.mxu0 0.0
    %783 = vmatprep.subr.mxu0 0.0
    %784 = vmatpush1.msra.mxu0 0.0
    %785 = vmatprep.subr.mxu0 0.0
    %786 = vmatpush1.msra.mxu0 0.0
    %787 = vmatprep.subr.mxu0 0.0
    %788 = vmatpush1.msra.mxu0 0.0
    %789 = vmatprep.subr.mxu0 0.0
    %790 = vmatpush1.msra.mxu0 0.0
    %791 = vmatprep.subr.mxu0 0.0
    %792 = vmatpush1.msra.mxu0 0.0
    %793 = vmatprep.subr.mxu0 0.0
    %794 = vmatpush1.msra.mxu0 0.0
    %795 = vmatprep.subr.mxu0 0.0
    %796 = vmatpush1.msra.mxu0 0.0
    %797 = vmatprep.subr.mxu0 0.0
    %798 = vmatpush1.msra.mxu0 0.0
    %799 = vmatprep.subr.mxu0 0.0
    %800 = vmatpush1.msra.mxu0 0.0
    %801 = vmatprep.subr.mxu0 0.0
    %802 = vmatpush1.msra.mxu0 0.0
    %803 = vmatprep.subr.mxu0 0.0
    %804 = vmatpush1.msra.mxu0 0.0
    %805 = vmatprep.subr.mxu0 0.0
    %806 = vmatpush1.msra.mxu0 0.0
    %807 = vmatprep.subr.mxu0 0.0
    %808 = vmatpush1.msra.mxu0 0.0
    %809 = vmatprep.subr.mxu0 0.0
    %810 = vmatpush1.msra.mxu0 0.0
    %811 = vmatprep.subr.mxu0 0.0
    %812 = vmatpush1.msra.mxu0 0.0
    %813 = vmatprep.subr.mxu0 0.0
    %814 = vmatpush1.msra.mxu0 0.0
    %815 = vmatprep.subr.mxu0 0.0
    %816 = vmatpush1.msra.mxu0 0.0
    %817 = vmatprep.subr.mxu0 0.0
    %818 = vmatpush1.msra.mxu0 0.0
    %819 = vmatprep.subr.mxu0 0.0
    %820 = vmatpush1.msra.mxu0 0.0
    %821 = vmatprep.subr.mxu0 0.0
    %822 = vmatpush1.msra.mxu0 0.0
    %823 = vmatprep.subr.mxu0 0.0
    %824 = vmatpush1.msra.mxu0 0.0
    %825 = vmatprep.subr.mxu0 0.0
    %826 = vmatpush1.msra.mxu0 0.0
    %827 = vmatprep.subr.mxu0 0.0
    %828 = vmatpush1.msra.mxu0 0.0
    %829 = vmatprep.mubr.f32.mxu0 0.0
    %830 = vmatmul.mubr.f32.gmra.mrb[0].mxu0 %v692
    %v831 = vpop.f32.mrb[0].mxu0
    %v832 = vadd.f32 %v93, %v831
    %v833 = vpop.f32.mrb[0].mxu0
    %v834 = vadd.f32 %v97, %v833
    %835 = vdwg.mxu0
    %s836 = scalar_lea.vmem %s0, 20
    %v837 = vld [vmem:[%s836] sm:$0xf]
    %v839 = vsel %vm102, %v837, 0
    %841 = vmatprep.subr.mxu0 %v76
    %842 = vmatpush1.msra.mxu0 %v75
    %843 = vmatprep.subr.mxu0 0.0
    %844 = vmatpush1.msra.mxu0 0.0
    %845 = vmatprep.subr.mxu0 0.0
    %846 = vmatpush1.msra.mxu0 0.0
    %847 = vmatprep.subr.mxu0 0.0
    %848 = vmatpush1.msra.mxu0 0.0
    %849 = vmatprep.subr.mxu0 0.0
    %850 = vmatpush1.msra.mxu0 0.0
    %851 = vmatprep.subr.mxu0 0.0
    %852 = vmatpush1.msra.mxu0 0.0
    %853 = vmatprep.subr.mxu0 0.0
    %854 = vmatpush1.msra.mxu0 0.0
    %855 = vmatprep.subr.mxu0 0.0
    %856 = vmatpush1.msra.mxu0 0.0
    %857 = vmatprep.subr.mxu0 0.0
    %858 = vmatpush1.msra.mxu0 0.0
    %859 = vmatprep.subr.mxu0 0.0
    %860 = vmatpush1.msra.mxu0 0.0
    %861 = vmatprep.subr.mxu0 0.0
    %862 = vmatpush1.msra.mxu0 0.0
    %863 = vmatprep.subr.mxu0 0.0
    %864 = vmatpush1.msra.mxu0 0.0
    %865 = vmatprep.subr.mxu0 0.0
    %866 = vmatpush1.msra.mxu0 0.0
    %867 = vmatprep.subr.mxu0 0.0
    %868 = vmatpush1.msra.mxu0 0.0
    %869 = vmatprep.subr.mxu0 0.0
    %870 = vmatpush1.msra.mxu0 0.0
    %871 = vmatprep.subr.mxu0 0.0
    %872 = vmatpush1.msra.mxu0 0.0
    %873 = vmatprep.subr.mxu0 0.0
    %874 = vmatpush1.msra.mxu0 0.0
    %875 = vmatprep.subr.mxu0 0.0
    %876 = vmatpush1.msra.mxu0 0.0
    %877 = vmatprep.subr.mxu0 0.0
    %878 = vmatpush1.msra.mxu0 0.0
    %879 = vmatprep.subr.mxu0 0.0
    %880 = vmatpush1.msra.mxu0 0.0
    %881 = vmatprep.subr.mxu0 0.0
    %882 = vmatpush1.msra.mxu0 0.0
    %883 = vmatprep.subr.mxu0 0.0
    %884 = vmatpush1.msra.mxu0 0.0
    %885 = vmatprep.subr.mxu0 0.0
    %886 = vmatpush1.msra.mxu0 0.0
    %887 = vmatprep.subr.mxu0 0.0
    %888 = vmatpush1.msra.mxu0 0.0
    %889 = vmatprep.subr.mxu0 0.0
    %890 = vmatpush1.msra.mxu0 0.0
    %891 = vmatprep.subr.mxu0 0.0
    %892 = vmatpush1.msra.mxu0 0.0
    %893 = vmatprep.subr.mxu0 0.0
    %894 = vmatpush1.msra.mxu0 0.0
    %895 = vmatprep.subr.mxu0 0.0
    %896 = vmatpush1.msra.mxu0 0.0
    %897 = vmatprep.subr.mxu0 0.0
    %898 = vmatpush1.msra.mxu0 0.0
    %899 = vmatprep.subr.mxu0 0.0
    %900 = vmatpush1.msra.mxu0 0.0
    %901 = vmatprep.subr.mxu0 0.0
    %902 = vmatpush1.msra.mxu0 0.0
    %903 = vmatprep.subr.mxu0 0.0
    %904 = vmatpush1.msra.mxu0 0.0
    %905 = vmatprep.mubr.f32.mxu0 0.0
    %906 = vmatmul.mubr.f32.gmra.mrb[0].mxu0 %v839
    %v907 = vpop.f32.mrb[0].mxu0
    %v908 = vadd.f32 %v85, %v907
    %v909 = vpop.f32.mrb[0].mxu0
    %v910 = vadd.f32 %v89, %v909
    %911 = vdwg.mxu0
    %912 = vmatprep.subr.mxu0 %v78
    %913 = vmatpush1.msra.mxu0 %v77
    %914 = vmatprep.subr.mxu0 0.0
    %915 = vmatpush1.msra.mxu0 0.0
    %916 = vmatprep.subr.mxu0 0.0
    %917 = vmatpush1.msra.mxu0 0.0
    %918 = vmatprep.subr.mxu0 0.0
    %919 = vmatpush1.msra.mxu0 0.0
    %920 = vmatprep.subr.mxu0 0.0
    %921 = vmatpush1.msra.mxu0 0.0
    %922 = vmatprep.subr.mxu0 0.0
    %923 = vmatpush1.msra.mxu0 0.0
    %924 = vmatprep.subr.mxu0 0.0
    %925 = vmatpush1.msra.mxu0 0.0
    %926 = vmatprep.subr.mxu0 0.0
    %927 = vmatpush1.msra.mxu0 0.0
    %928 = vmatprep.subr.mxu0 0.0
    %929 = vmatpush1.msra.mxu0 0.0
    %930 = vmatprep.subr.mxu0 0.0
    %931 = vmatpush1.msra.mxu0 0.0
    %932 = vmatprep.subr.mxu0 0.0
    %933 = vmatpush1.msra.mxu0 0.0
    %934 = vmatprep.subr.mxu0 0.0
    %935 = vmatpush1.msra.mxu0 0.0
    %936 = vmatprep.subr.mxu0 0.0
    %937 = vmatpush1.msra.mxu0 0.0
    %938 = vmatprep.subr.mxu0 0.0
    %939 = vmatpush1.msra.mxu0 0.0
    %940 = vmatprep.subr.mxu0 0.0
    %941 = vmatpush1.msra.mxu0 0.0
    %942 = vmatprep.subr.mxu0 0.0
    %943 = vmatpush1.msra.mxu0 0.0
    %944 = vmatprep.subr.mxu0 0.0
    %945 = vmatpush1.msra.mxu0 0.0
    %946 = vmatprep.subr.mxu0 0.0
    %947 = vmatpush1.msra.mxu0 0.0
    %948 = vmatprep.subr.mxu0 0.0
    %949 = vmatpush1.msra.mxu0 0.0
    %950 = vmatprep.subr.mxu0 0.0
    %951 = vmatpush1.msra.mxu0 0.0
    %952 = vmatprep.subr.mxu0 0.0
    %953 = vmatpush1.msra.mxu0 0.0
    %954 = vmatprep.subr.mxu0 0.0
    %955 = vmatpush1.msra.mxu0 0.0
    %956 = vmatprep.subr.mxu0 0.0
    %957 = vmatpush1.msra.mxu0 0.0
    %958 = vmatprep.subr.mxu0 0.0
    %959 = vmatpush1.msra.mxu0 0.0
    %960 = vmatprep.subr.mxu0 0.0
    %961 = vmatpush1.msra.mxu0 0.0
    %962 = vmatprep.subr.mxu0 0.0
    %963 = vmatpush1.msra.mxu0 0.0
    %964 = vmatprep.subr.mxu0 0.0
    %965 = vmatpush1.msra.mxu0 0.0
    %966 = vmatprep.subr.mxu0 0.0
    %967 = vmatpush1.msra.mxu0 0.0
    %968 = vmatprep.subr.mxu0 0.0
    %969 = vmatpush1.msra.mxu0 0.0
    %970 = vmatprep.subr.mxu0 0.0
    %971 = vmatpush1.msra.mxu0 0.0
    %972 = vmatprep.subr.mxu0 0.0
    %973 = vmatpush1.msra.mxu0 0.0
    %974 = vmatprep.subr.mxu0 0.0
    %975 = vmatpush1.msra.mxu0 0.0
    %976 = vmatprep.mubr.f32.mxu0 0.0
    %977 = vmatmul.mubr.f32.gmra.mrb[0].mxu0 %v839
    %v978 = vpop.f32.mrb[0].mxu0
    %v979 = vadd.f32 %v93, %v978
    %v980 = vpop.f32.mrb[0].mxu0
    %v981 = vadd.f32 %v97, %v980
    %982 = vdwg.mxu0
    %s983 = scalar_lea.vmem %s0, 24
    %v984 = vld [vmem:[%s983] sm:$0xf]
    %v986 = vsel %vm102, %v984, 0
    %988 = vmatprep.subr.mxu0 %v76
    %989 = vmatpush1.msra.mxu0 %v75
    %990 = vmatprep.subr.mxu0 0.0
    %991 = vmatpush1.msra.mxu0 0.0
    %992 = vmatprep.subr.mxu0 0.0
    %993 = vmatpush1.msra.mxu0 0.0
    %994 = vmatprep.subr.mxu0 0.0
    %995 = vmatpush1.msra.mxu0 0.0
    %996 = vmatprep.subr.mxu0 0.0
    %997 = vmatpush1.msra.mxu0 0.0
    %998 = vmatprep.subr.mxu0 0.0
    %999 = vmatpush1.msra.mxu0 0.0
    %1000 = vmatprep.subr.mxu0 0.0
    %1001 = vmatpush1.msra.mxu0 0.0
    %1002 = vmatprep.subr.mxu0 0.0
    %1003 = vmatpush1.msra.mxu0 0.0
    %1004 = vmatprep.subr.mxu0 0.0
    %1005 = vmatpush1.msra.mxu0 0.0
    %1006 = vmatprep.subr.mxu0 0.0
    %1007 = vmatpush1.msra.mxu0 0.0
    %1008 = vmatprep.subr.mxu0 0.0
    %1009 = vmatpush1.msra.mxu0 0.0
    %1010 = vmatprep.subr.mxu0 0.0
    %1011 = vmatpush1.msra.mxu0 0.0
    %1012 = vmatprep.subr.mxu0 0.0
    %1013 = vmatpush1.msra.mxu0 0.0
    %1014 = vmatprep.subr.mxu0 0.0
    %1015 = vmatpush1.msra.mxu0 0.0
    %1016 = vmatprep.subr.mxu0 0.0
    %1017 = vmatpush1.msra.mxu0 0.0
    %1018 = vmatprep.subr.mxu0 0.0
    %1019 = vmatpush1.msra.mxu0 0.0
    %1020 = vmatprep.subr.mxu0 0.0
    %1021 = vmatpush1.msra.mxu0 0.0
    %1022 = vmatprep.subr.mxu0 0.0
    %1023 = vmatpush1.msra.mxu0 0.0
    %1024 = vmatprep.subr.mxu0 0.0
    %1025 = vmatpush1.msra.mxu0 0.0
    %1026 = vmatprep.subr.mxu0 0.0
    %1027 = vmatpush1.msra.mxu0 0.0
    %1028 = vmatprep.subr.mxu0 0.0
    %1029 = vmatpush1.msra.mxu0 0.0
    %1030 = vmatprep.subr.mxu0 0.0
    %1031 = vmatpush1.msra.mxu0 0.0
    %1032 = vmatprep.subr.mxu0 0.0
    %1033 = vmatpush1.msra.mxu0 0.0
    %1034 = vmatprep.subr.mxu0 0.0
    %1035 = vmatpush1.msra.mxu0 0.0
    %1036 = vmatprep.subr.mxu0 0.0
    %1037 = vmatpush1.msra.mxu0 0.0
    %1038 = vmatprep.subr.mxu0 0.0
    %1039 = vmatpush1.msra.mxu0 0.0
    %1040 = vmatprep.subr.mxu0 0.0
    %1041 = vmatpush1.msra.mxu0 0.0
    %1042 = vmatprep.subr.mxu0 0.0
    %1043 = vmatpush1.msra.mxu0 0.0
    %1044 = vmatprep.subr.mxu0 0.0
    %1045 = vmatpush1.msra.mxu0 0.0
    %1046 = vmatprep.subr.mxu0 0.0
    %1047 = vmatpush1.msra.mxu0 0.0
    %1048 = vmatprep.subr.mxu0 0.0
    %1049 = vmatpush1.msra.mxu0 0.0
    %1050 = vmatprep.subr.mxu0 0.0
    %1051 = vmatpush1.msra.mxu0 0.0
    %1052 = vmatprep.mubr.f32.mxu0 0.0
    %1053 = vmatmul.mubr.f32.gmra.mrb[0].mxu0 %v986
    %v1054 = vpop.f32.mrb[0].mxu0
    %v1055 = vadd.f32 %v85, %v1054
    %v1056 = vpop.f32.mrb[0].mxu0
    %v1057 = vadd.f32 %v89, %v1056
    %1058 = vdwg.mxu0
    %1059 = vmatprep.subr.mxu0 %v78
    %1060 = vmatpush1.msra.mxu0 %v77
    %1061 = vmatprep.subr.mxu0 0.0
    %1062 = vmatpush1.msra.mxu0 0.0
    %1063 = vmatprep.subr.mxu0 0.0
    %1064 = vmatpush1.msra.mxu0 0.0
    %1065 = vmatprep.subr.mxu0 0.0
    %1066 = vmatpush1.msra.mxu0 0.0
    %1067 = vmatprep.subr.mxu0 0.0
    %1068 = vmatpush1.msra.mxu0 0.0
    %1069 = vmatprep.subr.mxu0 0.0
    %1070 = vmatpush1.msra.mxu0 0.0
    %1071 = vmatprep.subr.mxu0 0.0
    %1072 = vmatpush1.msra.mxu0 0.0
    %1073 = vmatprep.subr.mxu0 0.0
    %1074 = vmatpush1.msra.mxu0 0.0
    %1075 = vmatprep.subr.mxu0 0.0
    %1076 = vmatpush1.msra.mxu0 0.0
    %1077 = vmatprep.subr.mxu0 0.0
    %1078 = vmatpush1.msra.mxu0 0.0
    %1079 = vmatprep.subr.mxu0 0.0
    %1080 = vmatpush1.msra.mxu0 0.0
    %1081 = vmatprep.subr.mxu0 0.0
    %1082 = vmatpush1.msra.mxu0 0.0
    %1083 = vmatprep.subr.mxu0 0.0
    %1084 = vmatpush1.msra.mxu0 0.0
    %1085 = vmatprep.subr.mxu0 0.0
    %1086 = vmatpush1.msra.mxu0 0.0
    %1087 = vmatprep.subr.mxu0 0.0
    %1088 = vmatpush1.msra.mxu0 0.0
    %1089 = vmatprep.subr.mxu0 0.0
    %1090 = vmatpush1.msra.mxu0 0.0
    %1091 = vmatprep.subr.mxu0 0.0
    %1092 = vmatpush1.msra.mxu0 0.0
    %1093 = vmatprep.subr.mxu0 0.0
    %1094 = vmatpush1.msra.mxu0 0.0
    %1095 = vmatprep.subr.mxu0 0.0
    %1096 = vmatpush1.msra.mxu0 0.0
    %1097 = vmatprep.subr.mxu0 0.0
    %1098 = vmatpush1.msra.mxu0 0.0
    %1099 = vmatprep.subr.mxu0 0.0
    %1100 = vmatpush1.msra.mxu0 0.0
    %1101 = vmatprep.subr.mxu0 0.0
    %1102 = vmatpush1.msra.mxu0 0.0
    %1103 = vmatprep.subr.mxu0 0.0
    %1104 = vmatpush1.msra.mxu0 0.0
    %1105 = vmatprep.subr.mxu0 0.0
    %1106 = vmatpush1.msra.mxu0 0.0
    %1107 = vmatprep.subr.mxu0 0.0
    %1108 = vmatpush1.msra.mxu0 0.0
    %1109 = vmatprep.subr.mxu0 0.0
    %1110 = vmatpush1.msra.mxu0 0.0
    %1111 = vmatprep.subr.mxu0 0.0
    %1112 = vmatpush1.msra.mxu0 0.0
    %1113 = vmatprep.subr.mxu0 0.0
    %1114 = vmatpush1.msra.mxu0 0.0
    %1115 = vmatprep.subr.mxu0 0.0
    %1116 = vmatpush1.msra.mxu0 0.0
    %1117 = vmatprep.subr.mxu0 0.0
    %1118 = vmatpush1.msra.mxu0 0.0
    %1119 = vmatprep.subr.mxu0 0.0
    %1120 = vmatpush1.msra.mxu0 0.0
    %1121 = vmatprep.subr.mxu0 0.0
    %1122 = vmatpush1.msra.mxu0 0.0
    %1123 = vmatprep.mubr.f32.mxu0 0.0
    %1124 = vmatmul.mubr.f32.gmra.mrb[0].mxu0 %v986
    %v1125 = vpop.f32.mrb[0].mxu0
    %v1126 = vadd.f32 %v93, %v1125
    %v1127 = vpop.f32.mrb[0].mxu0
    %v1128 = vadd.f32 %v97, %v1127
    %1129 = vdwg.mxu0
    %s1130 = scalar_lea.vmem %s0, 28
    %v1131 = vld [vmem:[%s1130] sm:$0xf]
    %v1133 = vsel %vm102, %v1131, 0
    %1135 = vmatprep.subr.mxu0 %v76
    %1136 = vmatpush1.msra.mxu0 %v75
    %1137 = vmatprep.subr.mxu0 0.0
    %1138 = vmatpush1.msra.mxu0 0.0
    %1139 = vmatprep.subr.mxu0 0.0
    %1140 = vmatpush1.msra.mxu0 0.0
    %1141 = vmatprep.subr.mxu0 0.0
    %1142 = vmatpush1.msra.mxu0 0.0
    %1143 = vmatprep.subr.mxu0 0.0
    %1144 = vmatpush1.msra.mxu0 0.0
    %1145 = vmatprep.subr.mxu0 0.0
    %1146 = vmatpush1.msra.mxu0 0.0
    %1147 = vmatprep.subr.mxu0 0.0
    %1148 = vmatpush1.msra.mxu0 0.0
    %1149 = vmatprep.subr.mxu0 0.0
    %1150 = vmatpush1.msra.mxu0 0.0
    %1151 = vmatprep.subr.mxu0 0.0
    %1152 = vmatpush1.msra.mxu0 0.0
    %1153 = vmatprep.subr.mxu0 0.0
    %1154 = vmatpush1.msra.mxu0 0.0
    %1155 = vmatprep.subr.mxu0 0.0
    %1156 = vmatpush1.msra.mxu0 0.0
    %1157 = vmatprep.subr.mxu0 0.0
    %1158 = vmatpush1.msra.mxu0 0.0
    %1159 = vmatprep.subr.mxu0 0.0
    %1160 = vmatpush1.msra.mxu0 0.0
    %1161 = vmatprep.subr.mxu0 0.0
    %1162 = vmatpush1.msra.mxu0 0.0
    %1163 = vmatprep.subr.mxu0 0.0
    %1164 = vmatpush1.msra.mxu0 0.0
    %1165 = vmatprep.subr.mxu0 0.0
    %1166 = vmatpush1.msra.mxu0 0.0
    %1167 = vmatprep.subr.mxu0 0.0
    %1168 = vmatpush1.msra.mxu0 0.0
    %1169 = vmatprep.subr.mxu0 0.0
    %1170 = vmatpush1.msra.mxu0 0.0
    %1171 = vmatprep.subr.mxu0 0.0
    %1172 = vmatpush1.msra.mxu0 0.0
    %1173 = vmatprep.subr.mxu0 0.0
    %1174 = vmatpush1.msra.mxu0 0.0
    %1175 = vmatprep.subr.mxu0 0.0
    %1176 = vmatpush1.msra.mxu0 0.0
    %1177 = vmatprep.subr.mxu0 0.0
    %1178 = vmatpush1.msra.mxu0 0.0
    %1179 = vmatprep.subr.mxu0 0.0
    %1180 = vmatpush1.msra.mxu0 0.0
    %1181 = vmatprep.subr.mxu0 0.0
    %1182 = vmatpush1.msra.mxu0 0.0
    %1183 = vmatprep.subr.mxu0 0.0
    %1184 = vmatpush1.msra.mxu0 0.0
    %1185 = vmatprep.subr.mxu0 0.0
    %1186 = vmatpush1.msra.mxu0 0.0
    %1187 = vmatprep.subr.mxu0 0.0
    %1188 = vmatpush1.msra.mxu0 0.0
    %1189 = vmatprep.subr.mxu0 0.0
    %1190 = vmatpush1.msra.mxu0 0.0
    %1191 = vmatprep.subr.mxu0 0.0
    %1192 = vmatpush1.msra.mxu0 0.0
    %1193 = vmatprep.subr.mxu0 0.0
    %1194 = vmatpush1.msra.mxu0 0.0
    %1195 = vmatprep.subr.mxu0 0.0
    %1196 = vmatpush1.msra.mxu0 0.0
    %1197 = vmatprep.subr.mxu0 0.0
    %1198 = vmatpush1.msra.mxu0 0.0
    %1199 = vmatprep.mubr.f32.mxu0 0.0
    %1200 = vmatmul.mubr.f32.gmra.mrb[0].mxu0 %v1133
    %v1201 = vpop.f32.mrb[0].mxu0
    %v1202 = vadd.f32 %v85, %v1201
    %v1203 = vpop.f32.mrb[0].mxu0
    %v1204 = vadd.f32 %v89, %v1203
    %1205 = vdwg.mxu0
    %1206 = vmatprep.subr.mxu0 %v78
    %1207 = vmatpush1.msra.mxu0 %v77
    %1208 = vmatprep.subr.mxu0 0.0
    %1209 = vmatpush1.msra.mxu0 0.0
    %1210 = vmatprep.subr.mxu0 0.0
    %1211 = vmatpush1.msra.mxu0 0.0
    %1212 = vmatprep.subr.mxu0 0.0
    %1213 = vmatpush1.msra.mxu0 0.0
    %1214 = vmatprep.subr.mxu0 0.0
    %1215 = vmatpush1.msra.mxu0 0.0
    %1216 = vmatprep.subr.mxu0 0.0
    %1217 = vmatpush1.msra.mxu0 0.0
    %1218 = vmatprep.subr.mxu0 0.0
    %1219 = vmatpush1.msra.mxu0 0.0
    %1220 = vmatprep.subr.mxu0 0.0
    %1221 = vmatpush1.msra.mxu0 0.0
    %1222 = vmatprep.subr.mxu0 0.0
    %1223 = vmatpush1.msra.mxu0 0.0
    %1224 = vmatprep.subr.mxu0 0.0
    %1225 = vmatpush1.msra.mxu0 0.0
    %1226 = vmatprep.subr.mxu0 0.0
    %1227 = vmatpush1.msra.mxu0 0.0
    %1228 = vmatprep.subr.mxu0 0.0
    %1229 = vmatpush1.msra.mxu0 0.0
    %1230 = vmatprep.subr.mxu0 0.0
    %1231 = vmatpush1.msra.mxu0 0.0
    %1232 = vmatprep.subr.mxu0 0.0
    %1233 = vmatpush1.msra.mxu0 0.0
    %1234 = vmatprep.subr.mxu0 0.0
    %1235 = vmatpush1.msra.mxu0 0.0
    %1236 = vmatprep.subr.mxu0 0.0
    %1237 = vmatpush1.msra.mxu0 0.0
    %1238 = vmatprep.subr.mxu0 0.0
    %1239 = vmatpush1.msra.mxu0 0.0
    %1240 = vmatprep.subr.mxu0 0.0
    %1241 = vmatpush1.msra.mxu0 0.0
    %1242 = vmatprep.subr.mxu0 0.0
    %1243 = vmatpush1.msra.mxu0 0.0
    %1244 = vmatprep.subr.mxu0 0.0
    %1245 = vmatpush1.msra.mxu0 0.0
    %1246 = vmatprep.subr.mxu0 0.0
    %1247 = vmatpush1.msra.mxu0 0.0
    %1248 = vmatprep.subr.mxu0 0.0
    %1249 = vmatpush1.msra.mxu0 0.0
    %1250 = vmatprep.subr.mxu0 0.0
    %1251 = vmatpush1.msra.mxu0 0.0
    %1252 = vmatprep.subr.mxu0 0.0
    %1253 = vmatpush1.msra.mxu0 0.0
    %1254 = vmatprep.subr.mxu0 0.0
    %1255 = vmatpush1.msra.mxu0 0.0
    %1256 = vmatprep.subr.mxu0 0.0
    %1257 = vmatpush1.msra.mxu0 0.0
    %1258 = vmatprep.subr.mxu0 0.0
    %1259 = vmatpush1.msra.mxu0 0.0
    %1260 = vmatprep.subr.mxu0 0.0
    %1261 = vmatpush1.msra.mxu0 0.0
    %1262 = vmatprep.subr.mxu0 0.0
    %1263 = vmatpush1.msra.mxu0 0.0
    %1264 = vmatprep.subr.mxu0 0.0
    %1265 = vmatpush1.msra.mxu0 0.0
    %1266 = vmatprep.subr.mxu0 0.0
    %1267 = vmatpush1.msra.mxu0 0.0
    %1268 = vmatprep.subr.mxu0 0.0
    %1269 = vmatpush1.msra.mxu0 0.0
    %1270 = vmatprep.mubr.f32.mxu0 0.0
    %1271 = vmatmul.mubr.f32.gmra.mrb[0].mxu0 %v1133
    %v1272 = vpop.f32.mrb[0].mxu0
    %v1273 = vadd.f32 %v93, %v1272
    %v1274 = vpop.f32.mrb[0].mxu0
    %v1275 = vadd.f32 %v97, %v1274
    %1276 = vdwg.mxu0
    %v1277 = vld [vmem:[#allocation3] sm:$0xff]
    %v1278 = vld [vmem:[#allocation3 + $0x8] sm:$0xff]
    %v1279 = vld [vmem:[#allocation3 + $0x10] sm:$0xff]
    %v1280 = vld [vmem:[#allocation3 + $0x18] sm:$0xff]
    %v1281 = vld [vmem:[#allocation3 + $0x20] sm:$0xff]
    %v1282 = vld [vmem:[#allocation3 + $0x28] sm:$0xff]
    %v1283 = vld [vmem:[#allocation3 + $0x30] sm:$0xff]
    %v1284 = vld [vmem:[#allocation3 + $0x38] sm:$0xff]
    %v1285 = vld [vmem:[#allocation3 + $0x40] sm:$0xff]
    %v1286 = vld [vmem:[#allocation3 + $0x48] sm:$0xff]
    %v1287 = vld [vmem:[#allocation3 + $0x50] sm:$0xff]
    %v1288 = vld [vmem:[#allocation3 + $0x58] sm:$0xff]
    %v1289 = vld [vmem:[#allocation3 + $0x60] sm:$0xff]
    %v1290 = vld [vmem:[#allocation3 + $0x68] sm:$0xff]
    %v1291 = vld [vmem:[#allocation3 + $0x70] sm:$0xff]
    %v1292 = vld [vmem:[#allocation3 + $0x78] sm:$0xff]
    %v1293 = vld [vmem:[#allocation3 + $0x80] sm:$0xff]
    %v1294 = vld [vmem:[#allocation3 + $0x88] sm:$0xff]
    %v1295 = vld [vmem:[#allocation3 + $0x90] sm:$0xff]
    %v1296 = vld [vmem:[#allocation3 + $0x98] sm:$0xff]
    %v1297 = vld [vmem:[#allocation3 + $0xa0] sm:$0xff]
    %v1298 = vld [vmem:[#allocation3 + $0xa8] sm:$0xff]
    %v1299 = vld [vmem:[#allocation3 + $0xb0] sm:$0xff]
    %v1300 = vld [vmem:[#allocation3 + $0xb8] sm:$0xff]
    %v1301 = vld [vmem:[#allocation3 + $0xc0] sm:$0xff]
    %v1302 = vld [vmem:[#allocation3 + $0xc8] sm:$0xff]
    %v1303 = vld [vmem:[#allocation3 + $0xd0] sm:$0xff]
    %v1304 = vld [vmem:[#allocation3 + $0xd8] sm:$0xff]
    %v1305 = vld [vmem:[#allocation3 + $0xe0] sm:$0xff]
    %v1306 = vld [vmem:[#allocation3 + $0xe8] sm:$0xff]
    %v1307 = vld [vmem:[#allocation3 + $0xf0] sm:$0xff]
    %v1308 = vld [vmem:[#allocation3 + $0xf8] sm:$0xff]
    %v1309 = vld [vmem:[#allocation3 + $0x100] sm:$0xff]
    %v1310 = vld [vmem:[#allocation3 + $0x108] sm:$0xff]
    %v1311 = vld [vmem:[#allocation3 + $0x110] sm:$0xff]
    %v1312 = vld [vmem:[#allocation3 + $0x118] sm:$0xff]
    %v1313 = vld [vmem:[#allocation3 + $0x120] sm:$0xff]
    %v1314 = vld [vmem:[#allocation3 + $0x128] sm:$0xff]
    %v1315 = vld [vmem:[#allocation3 + $0x130] sm:$0xff]
    %v1316 = vld [vmem:[#allocation3 + $0x138] sm:$0xff]
    %v1317 = vld [vmem:[#allocation3 + $0x140] sm:$0xff]
    %v1318 = vld [vmem:[#allocation3 + $0x148] sm:$0xff]
    %v1319 = vld [vmem:[#allocation3 + $0x150] sm:$0xff]
    %v1320 = vld [vmem:[#allocation3 + $0x158] sm:$0xff]
    %v1321 = vld [vmem:[#allocation3 + $0x160] sm:$0xff]
    %v1322 = vld [vmem:[#allocation3 + $0x168] sm:$0xff]
    %v1323 = vld [vmem:[#allocation3 + $0x170] sm:$0xff]
    %v1324 = vld [vmem:[#allocation3 + $0x178] sm:$0xff]
    %v1325 = vld [vmem:[#allocation3 + $0x180] sm:$0xff]
    %v1326 = vld [vmem:[#allocation3 + $0x188] sm:$0xff]
    %v1327 = vld [vmem:[#allocation3 + $0x190] sm:$0xff]
    %v1328 = vld [vmem:[#allocation3 + $0x198] sm:$0xff]
    %v1329 = vld [vmem:[#allocation3 + $0x1a0] sm:$0xff]
    %v1330 = vld [vmem:[#allocation3 + $0x1a8] sm:$0xff]
    %v1331 = vld [vmem:[#allocation3 + $0x1b0] sm:$0xff]
    %v1332 = vld [vmem:[#allocation3 + $0x1b8] sm:$0xff]
    %v1333 = vld [vmem:[#allocation3 + $0x1c0] sm:$0xff]
    %v1334 = vld [vmem:[#allocation3 + $0x1c8] sm:$0xff]
    %v1335 = vld [vmem:[#allocation3 + $0x1d0] sm:$0xff]
    %v1336 = vld [vmem:[#allocation3 + $0x1d8] sm:$0xff]
    %v1337 = vld [vmem:[#allocation3 + $0x1e0] sm:$0xff]
    %v1338 = vld [vmem:[#allocation3 + $0x1e8] sm:$0xff]
    %v1339 = vld [vmem:[#allocation3 + $0x1f0] sm:$0xff]
    %v1340 = vld [vmem:[#allocation3 + $0x1f8] sm:$0xff]
    %1341 = vmatprep.subr.mxu0 %v1278
    %1342 = vmatpush1.msra.mxu0 %v1277
    %1343 = vmatprep.subr.mxu0 %v1282
    %1344 = vmatpush1.msra.mxu0 %v1281
    %1345 = vmatprep.subr.mxu0 %v1286
    %1346 = vmatpush1.msra.mxu0 %v1285
    %1347 = vmatprep.subr.mxu0 %v1290
    %1348 = vmatpush1.msra.mxu0 %v1289
    %1349 = vmatprep.subr.mxu0 %v1294
    %1350 = vmatpush1.msra.mxu0 %v1293
    %1351 = vmatprep.subr.mxu0 %v1298
    %1352 = vmatpush1.msra.mxu0 %v1297
    %1353 = vmatprep.subr.mxu0 %v1302
    %1354 = vmatpush1.msra.mxu0 %v1301
    %1355 = vmatprep.subr.mxu0 %v1306
    %1356 = vmatpush1.msra.mxu0 %v1305
    %1357 = vmatprep.subr.mxu0 %v1310
    %1358 = vmatpush1.msra.mxu0 %v1309
    %1359 = vmatprep.subr.mxu0 %v1314
    %1360 = vmatpush1.msra.mxu0 %v1313
    %1361 = vmatprep.subr.mxu0 %v1318
    %1362 = vmatpush1.msra.mxu0 %v1317
    %1363 = vmatprep.subr.mxu0 %v1322
    %1364 = vmatpush1.msra.mxu0 %v1321
    %1365 = vmatprep.subr.mxu0 %v1326
    %1366 = vmatpush1.msra.mxu0 %v1325
    %1367 = vmatprep.subr.mxu0 %v1330
    %1368 = vmatpush1.msra.mxu0 %v1329
    %1369 = vmatprep.subr.mxu0 %v1334
    %1370 = vmatpush1.msra.mxu0 %v1333
    %1371 = vmatprep.subr.mxu0 %v1338
    %1372 = vmatpush1.msra.mxu0 %v1337
    %1373 = vmatprep.subr.mxu0 0.0
    %1374 = vmatpush1.msra.mxu0 0.0
    %1375 = vmatprep.subr.mxu0 0.0
    %1376 = vmatpush1.msra.mxu0 0.0
    %1377 = vmatprep.subr.mxu0 0.0
    %1378 = vmatpush1.msra.mxu0 0.0
    %1379 = vmatprep.subr.mxu0 0.0
    %1380 = vmatpush1.msra.mxu0 0.0
    %1381 = vmatprep.subr.mxu0 0.0
    %1382 = vmatpush1.msra.mxu0 0.0
    %1383 = vmatprep.subr.mxu0 0.0
    %1384 = vmatpush1.msra.mxu0 0.0
    %1385 = vmatprep.subr.mxu0 0.0
    %1386 = vmatpush1.msra.mxu0 0.0
    %1387 = vmatprep.subr.mxu0 0.0
    %1388 = vmatpush1.msra.mxu0 0.0
    %1389 = vmatprep.subr.mxu0 0.0
    %1390 = vmatpush1.msra.mxu0 0.0
    %1391 = vmatprep.subr.mxu0 0.0
    %1392 = vmatpush1.msra.mxu0 0.0
    %1393 = vmatprep.subr.mxu0 0.0
    %1394 = vmatpush1.msra.mxu0 0.0
    %1395 = vmatprep.subr.mxu0 0.0
    %1396 = vmatpush1.msra.mxu0 0.0
    %1397 = vmatprep.subr.mxu0 0.0
    %1398 = vmatpush1.msra.mxu0 0.0
    %1399 = vmatprep.subr.mxu0 0.0
    %1400 = vmatpush1.msra.mxu0 0.0
    %1401 = vmatprep.subr.mxu0 0.0
    %1402 = vmatpush1.msra.mxu0 0.0
    %1403 = vmatprep.subr.mxu0 0.0
    %1404 = vmatpush1.msra.mxu0 0.0
    %1405 = vmatprep.mubr.f32.mxu0 0.0
    %1406 = vmatmul.mubr.f32.gmra.mrb[0].mxu0 0.0
    %v1407 = vpop.f32.mrb[0].mxu0
    %v1408 = vadd.f32 0.0, %v1407
    %v1409 = vpop.f32.mrb[0].mxu0
    %v1410 = vadd.f32 0.0, %v1409
    %1411 = vdwg.mxu0
    %1412 = vmatprep.subr.mxu0 %v1280
    %1413 = vmatpush1.msra.mxu0 %v1279
    %1414 = vmatprep.subr.mxu0 %v1284
    %1415 = vmatpush1.msra.mxu0 %v1283
    %1416 = vmatprep.subr.mxu0 %v1288
    %1417 = vmatpush1.msra.mxu0 %v1287
    %1418 = vmatprep.subr.mxu0 %v1292
    %1419 = vmatpush1.msra.mxu0 %v1291
    %1420 = vmatprep.subr.mxu0 %v1296
    %1421 = vmatpush1.msra.mxu0 %v1295
    %1422 = vmatprep.subr.mxu0 %v1300
    %1423 = vmatpush1.msra.mxu0 %v1299
    %1424 = vmatprep.subr.mxu0 %v1304
    %1425 = vmatpush1.msra.mxu0 %v1303
    %1426 = vmatprep.subr.mxu0 %v1308
    %1427 = vmatpush1.msra.mxu0 %v1307
    %1428 = vmatprep.subr.mxu0 %v1312
    %1429 = vmatpush1.msra.mxu0 %v1311
    %1430 = vmatprep.subr.mxu0 %v1316
    %1431 = vmatpush1.msra.mxu0 %v1315
    %1432 = vmatprep.subr.mxu0 %v1320
    %1433 = vmatpush1.msra.mxu0 %v1319
    %1434 = vmatprep.subr.mxu0 %v1324
    %1435 = vmatpush1.msra.mxu0 %v1323
    %1436 = vmatprep.subr.mxu0 %v1328
    %1437 = vmatpush1.msra.mxu0 %v1327
    %1438 = vmatprep.subr.mxu0 %v1332
    %1439 = vmatpush1.msra.mxu0 %v1331
    %1440 = vmatprep.subr.mxu0 %v1336
    %1441 = vmatpush1.msra.mxu0 %v1335
    %1442 = vmatprep.subr.mxu0 %v1340
    %1443 = vmatpush1.msra.mxu0 %v1339
    %1444 = vmatprep.subr.mxu0 0.0
    %1445 = vmatpush1.msra.mxu0 0.0
    %1446 = vmatprep.subr.mxu0 0.0
    %1447 = vmatpush1.msra.mxu0 0.0
    %1448 = vmatprep.subr.mxu0 0.0
    %1449 = vmatpush1.msra.mxu0 0.0
    %1450 = vmatprep.subr.mxu0 0.0
    %1451 = vmatpush1.msra.mxu0 0.0
    %1452 = vmatprep.subr.mxu0 0.0
    %1453 = vmatpush1.msra.mxu0 0.0
    %1454 = vmatprep.subr.mxu0 0.0
    %1455 = vmatpush1.msra.mxu0 0.0
    %1456 = vmatprep.subr.mxu0 0.0
    %1457 = vmatpush1.msra.mxu0 0.0
    %1458 = vmatprep.subr.mxu0 0.0
    %1459 = vmatpush1.msra.mxu0 0.0
    %1460 = vmatprep.subr.mxu0 0.0
    %1461 = vmatpush1.msra.mxu0 0.0
    %1462 = vmatprep.subr.mxu0 0.0
    %1463 = vmatpush1.msra.mxu0 0.0
    %1464 = vmatprep.subr.mxu0 0.0
    %1465 = vmatpush1.msra.mxu0 0.0
    %1466 = vmatprep.subr.mxu0 0.0
    %1467 = vmatpush1.msra.mxu0 0.0
    %1468 = vmatprep.subr.mxu0 0.0
    %1469 = vmatpush1.msra.mxu0 0.0
    %1470 = vmatprep.subr.mxu0 0.0
    %1471 = vmatpush1.msra.mxu0 0.0
    %1472 = vmatprep.subr.mxu0 0.0
    %1473 = vmatpush1.msra.mxu0 0.0
    %1474 = vmatprep.subr.mxu0 0.0
    %1475 = vmatpush1.msra.mxu0 0.0
    %1476 = vmatprep.mubr.f32.mxu0 0.0
    %1477 = vmatmul.mubr.f32.gmra.mrb[0].mxu0 0.0
    %v1478 = vpop.f32.mrb[0].mxu0
    %v1479 = vadd.f32 0.0, %v1478
    %v1480 = vpop.f32.mrb[0].mxu0
    %v1481 = vadd.f32 0.0, %v1480
    %1482 = vdwg.mxu0
    %v1483 = vadd.f32 %v173, %v1408
    %v1484 = vadd.f32 %v175, %v1410
    %v1485 = vadd.f32 %v244, %v1479
    %v1486 = vadd.f32 %v246, %v1481
    %v1487 = vxor.u32 %v1483, 2147483648
    %v1488 = vmul.f32 %v1487, 1.442695
    %v1489 = vpow.pop %v1488
    %v1490 = vadd.f32 %v1489, 1.0
    %v1491 = vrcp.pop %v1490
    %v1492 = vmul.f32 1.0, %v1491
    %v1493 = vxor.u32 %v1484, 2147483648
    %v1494 = vmul.f32 %v1493, 1.442695
    %v1495 = vpow.pop %v1494
    %v1496 = vadd.f32 %v1495, 1.0
    %v1497 = vrcp.pop %v1496
    %v1498 = vmul.f32 1.0, %v1497
    %v1499 = vtanh.pop %v1485
    %v1500 = vxor.u32 %v1486, 2147483648
    %v1501 = vmul.f32 %v1500, 1.442695
    %v1502 = vpow.pop %v1501
    %v1503 = vadd.f32 %v1502, 1.0
    %v1504 = vrcp.pop %v1503
    %v1505 = vmul.f32 1.0, %v1504
    %v1506 = vmul.f32 %v1498, 0.0
    %v1507 = vmul.f32 %v1492, %v1499
    %v1508 = vadd.f32 %v1506, %v1507
    %v1509 = vtanh.pop %v1508
    %v1510 = vmul.f32 %v1505, %v1509
    %1511 = vmatprep.subr.mxu0 %v1278
    %1512 = vmatpush1.msra.mxu0 %v1277
    %1513 = vmatprep.subr.mxu0 %v1282
    %1514 = vmatpush1.msra.mxu0 %v1281
    %1515 = vmatprep.subr.mxu0 %v1286
    %1516 = vmatpush1.msra.mxu0 %v1285
    %1517 = vmatprep.subr.mxu0 %v1290
    %1518 = vmatpush1.msra.mxu0 %v1289
    %1519 = vmatprep.subr.mxu0 %v1294
    %1520 = vmatpush1.msra.mxu0 %v1293
    %1521 = vmatprep.subr.mxu0 %v1298
    %1522 = vmatpush1.msra.mxu0 %v1297
    %1523 = vmatprep.subr.mxu0 %v1302
    %1524 = vmatpush1.msra.mxu0 %v1301
    %1525 = vmatprep.subr.mxu0 %v1306
    %1526 = vmatpush1.msra.mxu0 %v1305
    %1527 = vmatprep.subr.mxu0 %v1310
    %1528 = vmatpush1.msra.mxu0 %v1309
    %1529 = vmatprep.subr.mxu0 %v1314
    %1530 = vmatpush1.msra.mxu0 %v1313
    %1531 = vmatprep.subr.mxu0 %v1318
    %1532 = vmatpush1.msra.mxu0 %v1317
    %1533 = vmatprep.subr.mxu0 %v1322
    %1534 = vmatpush1.msra.mxu0 %v1321
    %1535 = vmatprep.subr.mxu0 %v1326
    %1536 = vmatpush1.msra.mxu0 %v1325
    %1537 = vmatprep.subr.mxu0 %v1330
    %1538 = vmatpush1.msra.mxu0 %v1329
    %1539 = vmatprep.subr.mxu0 %v1334
    %1540 = vmatpush1.msra.mxu0 %v1333
    %1541 = vmatprep.subr.mxu0 %v1338
    %1542 = vmatpush1.msra.mxu0 %v1337
    %1543 = vmatprep.subr.mxu0 0.0
    %1544 = vmatpush1.msra.mxu0 0.0
    %1545 = vmatprep.subr.mxu0 0.0
    %1546 = vmatpush1.msra.mxu0 0.0
    %1547 = vmatprep.subr.mxu0 0.0
    %1548 = vmatpush1.msra.mxu0 0.0
    %1549 = vmatprep.subr.mxu0 0.0
    %1550 = vmatpush1.msra.mxu0 0.0
    %1551 = vmatprep.subr.mxu0 0.0
    %1552 = vmatpush1.msra.mxu0 0.0
    %1553 = vmatprep.subr.mxu0 0.0
    %1554 = vmatpush1.msra.mxu0 0.0
    %1555 = vmatprep.subr.mxu0 0.0
    %1556 = vmatpush1.msra.mxu0 0.0
    %1557 = vmatprep.subr.mxu0 0.0
    %1558 = vmatpush1.msra.mxu0 0.0
    %1559 = vmatprep.subr.mxu0 0.0
    %1560 = vmatpush1.msra.mxu0 0.0
    %1561 = vmatprep.subr.mxu0 0.0
    %1562 = vmatpush1.msra.mxu0 0.0
    %1563 = vmatprep.subr.mxu0 0.0
    %1564 = vmatpush1.msra.mxu0 0.0
    %1565 = vmatprep.subr.mxu0 0.0
    %1566 = vmatpush1.msra.mxu0 0.0
    %1567 = vmatprep.subr.mxu0 0.0
    %1568 = vmatpush1.msra.mxu0 0.0
    %1569 = vmatprep.subr.mxu0 0.0
    %1570 = vmatpush1.msra.mxu0 0.0
    %1571 = vmatprep.subr.mxu0 0.0
    %1572 = vmatpush1.msra.mxu0 0.0
    %1573 = vmatprep.subr.mxu0 0.0
    %1574 = vmatpush1.msra.mxu0 0.0
    %1575 = vmatprep.mubr.f32.mxu0 0.0
    %1576 = vmatmul.mubr.f32.gmra.mrb[0].mxu0 %v1510
    %v1577 = vpop.f32.mrb[0].mxu0
    %v1578 = vadd.f32 0.0, %v1577
    %v1579 = vpop.f32.mrb[0].mxu0
    %v1580 = vadd.f32 0.0, %v1579
    %1581 = vdwg.mxu0
    %1582 = vmatprep.subr.mxu0 %v1280
    %1583 = vmatpush1.msra.mxu0 %v1279
    %1584 = vmatprep.subr.mxu0 %v1284
    %1585 = vmatpush1.msra.mxu0 %v1283
    %1586 = vmatprep.subr.mxu0 %v1288
    %1587 = vmatpush1.msra.mxu0 %v1287
    %1588 = vmatprep.subr.mxu0 %v1292
    %1589 = vmatpush1.msra.mxu0 %v1291
    %1590 = vmatprep.subr.mxu0 %v1296
    %1591 = vmatpush1.msra.mxu0 %v1295
    %1592 = vmatprep.subr.mxu0 %v1300
    %1593 = vmatpush1.msra.mxu0 %v1299
    %1594 = vmatprep.subr.mxu0 %v1304
    %1595 = vmatpush1.msra.mxu0 %v1303
    %1596 = vmatprep.subr.mxu0 %v1308
    %1597 = vmatpush1.msra.mxu0 %v1307
    %1598 = vmatprep.subr.mxu0 %v1312
    %1599 = vmatpush1.msra.mxu0 %v1311
    %1600 = vmatprep.subr.mxu0 %v1316
    %1601 = vmatpush1.msra.mxu0 %v1315
    %1602 = vmatprep.subr.mxu0 %v1320
    %1603 = vmatpush1.msra.mxu0 %v1319
    %1604 = vmatprep.subr.mxu0 %v1324
    %1605 = vmatpush1.msra.mxu0 %v1323
    %1606 = vmatprep.subr.mxu0 %v1328
    %1607 = vmatpush1.msra.mxu0 %v1327
    %1608 = vmatprep.subr.mxu0 %v1332
    %1609 = vmatpush1.msra.mxu0 %v1331
    %1610 = vmatprep.subr.mxu0 %v1336
    %1611 = vmatpush1.msra.mxu0 %v1335
    %1612 = vmatprep.subr.mxu0 %v1340
    %1613 = vmatpush1.msra.mxu0 %v1339
    %1614 = vmatprep.subr.mxu0 0.0
    %1615 = vmatpush1.msra.mxu0 0.0
    %1616 = vmatprep.subr.mxu0 0.0
    %1617 = vmatpush1.msra.mxu0 0.0
    %1618 = vmatprep.subr.mxu0 0.0
    %1619 = vmatpush1.msra.mxu0 0.0
    %1620 = vmatprep.subr.mxu0 0.0
    %1621 = vmatpush1.msra.mxu0 0.0
    %1622 = vmatprep.subr.mxu0 0.0
    %1623 = vmatpush1.msra.mxu0 0.0
    %1624 = vmatprep.subr.mxu0 0.0
    %1625 = vmatpush1.msra.mxu0 0.0
    %1626 = vmatprep.subr.mxu0 0.0
    %1627 = vmatpush1.msra.mxu0 0.0
    %1628 = vmatprep.subr.mxu0 0.0
    %1629 = vmatpush1.msra.mxu0 0.0
    %1630 = vmatprep.subr.mxu0 0.0
    %1631 = vmatpush1.msra.mxu0 0.0
    %1632 = vmatprep.subr.mxu0 0.0
    %1633 = vmatpush1.msra.mxu0 0.0
    %1634 = vmatprep.subr.mxu0 0.0
    %1635 = vmatpush1.msra.mxu0 0.0
    %1636 = vmatprep.subr.mxu0 0.0
    %1637 = vmatpush1.msra.mxu0 0.0
    %1638 = vmatprep.subr.mxu0 0.0
    %1639 = vmatpush1.msra.mxu0 0.0
    %1640 = vmatprep.subr.mxu0 0.0
    %1641 = vmatpush1.msra.mxu0 0.0
    %1642 = vmatprep.subr.mxu0 0.0
    %1643 = vmatpush1.msra.mxu0 0.0
    %1644 = vmatprep.subr.mxu0 0.0
    %1645 = vmatpush1.msra.mxu0 0.0
    %1646 = vmatprep.mubr.f32.mxu0 0.0
    %1647 = vmatmul.mubr.f32.gmra.mrb[0].mxu0 %v1510
    %v1648 = vpop.f32.mrb[0].mxu0
    %v1649 = vadd.f32 0.0, %v1648
    %v1650 = vpop.f32.mrb[0].mxu0
    %v1651 = vadd.f32 0.0, %v1650
    %1652 = vdwg.mxu0
    %v1653 = vadd.f32 %v320, %v1578
    %v1654 = vadd.f32 %v322, %v1580
    %v1655 = vadd.f32 %v391, %v1649
    %v1656 = vadd.f32 %v393, %v1651
    %v1657 = vxor.u32 %v1653, 2147483648
    %v1658 = vmul.f32 %v1657, 1.442695
    %v1659 = vpow.pop %v1658
    %v1660 = vadd.f32 %v1659, 1.0
    %v1661 = vrcp.pop %v1660
    %v1662 = vmul.f32 1.0, %v1661
    %v1663 = vxor.u32 %v1654, 2147483648
    %v1664 = vmul.f32 %v1663, 1.442695
    %v1665 = vpow.pop %v1664
    %v1666 = vadd.f32 %v1665, 1.0
    %v1667 = vrcp.pop %v1666
    %v1668 = vmul.f32 1.0, %v1667
    %v1669 = vtanh.pop %v1655
    %v1670 = vxor.u32 %v1656, 2147483648
    %v1671 = vmul.f32 %v1670, 1.442695
    %v1672 = vpow.pop %v1671
    %v1673 = vadd.f32 %v1672, 1.0
    %v1674 = vrcp.pop %v1673
    %v1675 = vmul.f32 1.0, %v1674
    %v1676 = vmul.f32 %v1668, %v1508
    %v1677 = vmul.f32 %v1662, %v1669
    %v1678 = vadd.f32 %v1676, %v1677
    %v1679 = vtanh.pop %v1678
    %v1680 = vmul.f32 %v1675, %v1679
    %1681 = vmatprep.subr.mxu0 %v1278
    %1682 = vmatpush1.msra.mxu0 %v1277
    %1683 = vmatprep.subr.mxu0 %v1282
    %1684 = vmatpush1.msra.mxu0 %v1281
    %1685 = vmatprep.subr.mxu0 %v1286
    %1686 = vmatpush1.msra.mxu0 %v1285
    %1687 = vmatprep.subr.mxu0 %v1290
    %1688 = vmatpush1.msra.mxu0 %v1289
    %1689 = vmatprep.subr.mxu0 %v1294
    %1690 = vmatpush1.msra.mxu0 %v1293
    %1691 = vmatprep.subr.mxu0 %v1298
    %1692 = vmatpush1.msra.mxu0 %v1297
    %1693 = vmatprep.subr.mxu0 %v1302
    %1694 = vmatpush1.msra.mxu0 %v1301
    %1695 = vmatprep.subr.mxu0 %v1306
    %1696 = vmatpush1.msra.mxu0 %v1305
    %1697 = vmatprep.subr.mxu0 %v1310
    %1698 = vmatpush1.msra.mxu0 %v1309
    %1699 = vmatprep.subr.mxu0 %v1314
    %1700 = vmatpush1.msra.mxu0 %v1313
    %1701 = vmatprep.subr.mxu0 %v1318
    %1702 = vmatpush1.msra.mxu0 %v1317
    %1703 = vmatprep.subr.mxu0 %v1322
    %1704 = vmatpush1.msra.mxu0 %v1321
    %1705 = vmatprep.subr.mxu0 %v1326
    %1706 = vmatpush1.msra.mxu0 %v1325
    %1707 = vmatprep.subr.mxu0 %v1330
    %1708 = vmatpush1.msra.mxu0 %v1329
    %1709 = vmatprep.subr.mxu0 %v1334
    %1710 = vmatpush1.msra.mxu0 %v1333
    %1711 = vmatprep.subr.mxu0 %v1338
    %1712 = vmatpush1.msra.mxu0 %v1337
    %1713 = vmatprep.subr.mxu0 0.0
    %1714 = vmatpush1.msra.mxu0 0.0
    %1715 = vmatprep.subr.mxu0 0.0
    %1716 = vmatpush1.msra.mxu0 0.0
    %1717 = vmatprep.subr.mxu0 0.0
    %1718 = vmatpush1.msra.mxu0 0.0
    %1719 = vmatprep.subr.mxu0 0.0
    %1720 = vmatpush1.msra.mxu0 0.0
    %1721 = vmatprep.subr.mxu0 0.0
    %1722 = vmatpush1.msra.mxu0 0.0
    %1723 = vmatprep.subr.mxu0 0.0
    %1724 = vmatpush1.msra.mxu0 0.0
    %1725 = vmatprep.subr.mxu0 0.0
    %1726 = vmatpush1.msra.mxu0 0.0
    %1727 = vmatprep.subr.mxu0 0.0
    %1728 = vmatpush1.msra.mxu0 0.0
    %1729 = vmatprep.subr.mxu0 0.0
    %1730 = vmatpush1.msra.mxu0 0.0
    %1731 = vmatprep.subr.mxu0 0.0
    %1732 = vmatpush1.msra.mxu0 0.0
    %1733 = vmatprep.subr.mxu0 0.0
    %1734 = vmatpush1.msra.mxu0 0.0
    %1735 = vmatprep.subr.mxu0 0.0
    %1736 = vmatpush1.msra.mxu0 0.0
    %1737 = vmatprep.subr.mxu0 0.0
    %1738 = vmatpush1.msra.mxu0 0.0
    %1739 = vmatprep.subr.mxu0 0.0
    %1740 = vmatpush1.msra.mxu0 0.0
    %1741 = vmatprep.subr.mxu0 0.0
    %1742 = vmatpush1.msra.mxu0 0.0
    %1743 = vmatprep.subr.mxu0 0.0
    %1744 = vmatpush1.msra.mxu0 0.0
    %1745 = vmatprep.mubr.f32.mxu0 0.0
    %1746 = vmatmul.mubr.f32.gmra.mrb[0].mxu0 %v1680
    %v1747 = vpop.f32.mrb[0].mxu0
    %v1748 = vadd.f32 0.0, %v1747
    %v1749 = vpop.f32.mrb[0].mxu0
    %v1750 = vadd.f32 0.0, %v1749
    %1751 = vdwg.mxu0
    %1752 = vmatprep.subr.mxu0 %v1280
    %1753 = vmatpush1.msra.mxu0 %v1279
    %1754 = vmatprep.subr.mxu0 %v1284
    %1755 = vmatpush1.msra.mxu0 %v1283
    %1756 = vmatprep.subr.mxu0 %v1288
    %1757 = vmatpush1.msra.mxu0 %v1287
    %1758 = vmatprep.subr.mxu0 %v1292
    %1759 = vmatpush1.msra.mxu0 %v1291
    %1760 = vmatprep.subr.mxu0 %v1296
    %1761 = vmatpush1.msra.mxu0 %v1295
    %1762 = vmatprep.subr.mxu0 %v1300
    %1763 = vmatpush1.msra.mxu0 %v1299
    %1764 = vmatprep.subr.mxu0 %v1304
    %1765 = vmatpush1.msra.mxu0 %v1303
    %1766 = vmatprep.subr.mxu0 %v1308
    %1767 = vmatpush1.msra.mxu0 %v1307
    %1768 = vmatprep.subr.mxu0 %v1312
    %1769 = vmatpush1.msra.mxu0 %v1311
    %1770 = vmatprep.subr.mxu0 %v1316
    %1771 = vmatpush1.msra.mxu0 %v1315
    %1772 = vmatprep.subr.mxu0 %v1320
    %1773 = vmatpush1.msra.mxu0 %v1319
    %1774 = vmatprep.subr.mxu0 %v1324
    %1775 = vmatpush1.msra.mxu0 %v1323
    %1776 = vmatprep.subr.mxu0 %v1328
    %1777 = vmatpush1.msra.mxu0 %v1327
    %1778 = vmatprep.subr.mxu0 %v1332
    %1779 = vmatpush1.msra.mxu0 %v1331
    %1780 = vmatprep.subr.mxu0 %v1336
    %1781 = vmatpush1.msra.mxu0 %v1335
    %1782 = vmatprep.subr.mxu0 %v1340
    %1783 = vmatpush1.msra.mxu0 %v1339
    %1784 = vmatprep.subr.mxu0 0.0
    %1785 = vmatpush1.msra.mxu0 0.0
    %1786 = vmatprep.subr.mxu0 0.0
    %1787 = vmatpush1.msra.mxu0 0.0
    %1788 = vmatprep.subr.mxu0 0.0
    %1789 = vmatpush1.msra.mxu0 0.0
    %1790 = vmatprep.subr.mxu0 0.0
    %1791 = vmatpush1.msra.mxu0 0.0
    %1792 = vmatprep.subr.mxu0 0.0
    %1793 = vmatpush1.msra.mxu0 0.0
    %1794 = vmatprep.subr.mxu0 0.0
    %1795 = vmatpush1.msra.mxu0 0.0
    %1796 = vmatprep.subr.mxu0 0.0
    %1797 = vmatpush1.msra.mxu0 0.0
    %1798 = vmatprep.subr.mxu0 0.0
    %1799 = vmatpush1.msra.mxu0 0.0
    %1800 = vmatprep.subr.mxu0 0.0
    %1801 = vmatpush1.msra.mxu0 0.0
    %1802 = vmatprep.subr.mxu0 0.0
    %1803 = vmatpush1.msra.mxu0 0.0
    %1804 = vmatprep.subr.mxu0 0.0
    %1805 = vmatpush1.msra.mxu0 0.0
    %1806 = vmatprep.subr.mxu0 0.0
    %1807 = vmatpush1.msra.mxu0 0.0
    %1808 = vmatprep.subr.mxu0 0.0
    %1809 = vmatpush1.msra.mxu0 0.0
    %1810 = vmatprep.subr.mxu0 0.0
    %1811 = vmatpush1.msra.mxu0 0.0
    %1812 = vmatprep.subr.mxu0 0.0
    %1813 = vmatpush1.msra.mxu0 0.0
    %1814 = vmatprep.subr.mxu0 0.0
    %1815 = vmatpush1.msra.mxu0 0.0
    %1816 = vmatprep.mubr.f32.mxu0 0.0
    %1817 = vmatmul.mubr.f32.gmra.mrb[0].mxu0 %v1680
    %v1818 = vpop.f32.mrb[0].mxu0
    %v1819 = vadd.f32 0.0, %v1818
    %v1820 = vpop.f32.mrb[0].mxu0
    %v1821 = vadd.f32 0.0, %v1820
    %1822 = vdwg.mxu0
    %v1823 = vadd.f32 %v467, %v1748
    %v1824 = vadd.f32 %v469, %v1750
    %v1825 = vadd.f32 %v538, %v1819
    %v1826 = vadd.f32 %v540, %v1821
    %v1827 = vxor.u32 %v1823, 2147483648
    %v1828 = vmul.f32 %v1827, 1.442695
    %v1829 = vpow.pop %v1828
    %v1830 = vadd.f32 %v1829, 1.0
    %v1831 = vrcp.pop %v1830
    %v1832 = vmul.f32 1.0, %v1831
    %v1833 = vxor.u32 %v1824, 2147483648
    %v1834 = vmul.f32 %v1833, 1.442695
    %v1835 = vpow.pop %v1834
    %v1836 = vadd.f32 %v1835, 1.0
    %v1837 = vrcp.pop %v1836
    %v1838 = vmul.f32 1.0, %v1837
    %v1839 = vtanh.pop %v1825
    %v1840 = vxor.u32 %v1826, 2147483648
    %v1841 = vmul.f32 %v1840, 1.442695
    %v1842 = vpow.pop %v1841
    %v1843 = vadd.f32 %v1842, 1.0
    %v1844 = vrcp.pop %v1843
    %v1845 = vmul.f32 1.0, %v1844
    %v1846 = vmul.f32 %v1838, %v1678
    %v1847 = vmul.f32 %v1832, %v1839
    %v1848 = vadd.f32 %v1846, %v1847
    %v1849 = vtanh.pop %v1848
    %v1850 = vmul.f32 %v1845, %v1849
    %1851 = vmatprep.subr.mxu0 %v1278
    %1852 = vmatpush1.msra.mxu0 %v1277
    %1853 = vmatprep.subr.mxu0 %v1282
    %1854 = vmatpush1.msra.mxu0 %v1281
    %1855 = vmatprep.subr.mxu0 %v1286
    %1856 = vmatpush1.msra.mxu0 %v1285
    %1857 = vmatprep.subr.mxu0 %v1290
    %1858 = vmatpush1.msra.mxu0 %v1289
    %1859 = vmatprep.subr.mxu0 %v1294
    %1860 = vmatpush1.msra.mxu0 %v1293
    %1861 = vmatprep.subr.mxu0 %v1298
    %1862 = vmatpush1.msra.mxu0 %v1297
    %1863 = vmatprep.subr.mxu0 %v1302
    %1864 = vmatpush1.msra.mxu0 %v1301
    %1865 = vmatprep.subr.mxu0 %v1306
    %1866 = vmatpush1.msra.mxu0 %v1305
    %1867 = vmatprep.subr.mxu0 %v1310
    %1868 = vmatpush1.msra.mxu0 %v1309
    %1869 = vmatprep.subr.mxu0 %v1314
    %1870 = vmatpush1.msra.mxu0 %v1313
    %1871 = vmatprep.subr.mxu0 %v1318
    %1872 = vmatpush1.msra.mxu0 %v1317
    %1873 = vmatprep.subr.mxu0 %v1322
    %1874 = vmatpush1.msra.mxu0 %v1321
    %1875 = vmatprep.subr.mxu0 %v1326
    %1876 = vmatpush1.msra.mxu0 %v1325
    %1877 = vmatprep.subr.mxu0 %v1330
    %1878 = vmatpush1.msra.mxu0 %v1329
    %1879 = vmatprep.subr.mxu0 %v1334
    %1880 = vmatpush1.msra.mxu0 %v1333
    %1881 = vmatprep.subr.mxu0 %v1338
    %1882 = vmatpush1.msra.mxu0 %v1337
    %1883 = vmatprep.subr.mxu0 0.0
    %1884 = vmatpush1.msra.mxu0 0.0
    %1885 = vmatprep.subr.mxu0 0.0
    %1886 = vmatpush1.msra.mxu0 0.0
    %1887 = vmatprep.subr.mxu0 0.0
    %1888 = vmatpush1.msra.mxu0 0.0
    %1889 = vmatprep.subr.mxu0 0.0
    %1890 = vmatpush1.msra.mxu0 0.0
    %1891 = vmatprep.subr.mxu0 0.0
    %1892 = vmatpush1.msra.mxu0 0.0
    %1893 = vmatprep.subr.mxu0 0.0
    %1894 = vmatpush1.msra.mxu0 0.0
    %1895 = vmatprep.subr.mxu0 0.0
    %1896 = vmatpush1.msra.mxu0 0.0
    %1897 = vmatprep.subr.mxu0 0.0
    %1898 = vmatpush1.msra.mxu0 0.0
    %1899 = vmatprep.subr.mxu0 0.0
    %1900 = vmatpush1.msra.mxu0 0.0
    %1901 = vmatprep.subr.mxu0 0.0
    %1902 = vmatpush1.msra.mxu0 0.0
    %1903 = vmatprep.subr.mxu0 0.0
    %1904 = vmatpush1.msra.mxu0 0.0
    %1905 = vmatprep.subr.mxu0 0.0
    %1906 = vmatpush1.msra.mxu0 0.0
    %1907 = vmatprep.subr.mxu0 0.0
    %1908 = vmatpush1.msra.mxu0 0.0
    %1909 = vmatprep.subr.mxu0 0.0
    %1910 = vmatpush1.msra.mxu0 0.0
    %1911 = vmatprep.subr.mxu0 0.0
    %1912 = vmatpush1.msra.mxu0 0.0
    %1913 = vmatprep.subr.mxu0 0.0
    %1914 = vmatpush1.msra.mxu0 0.0
    %1915 = vmatprep.mubr.f32.mxu0 0.0
    %1916 = vmatmul.mubr.f32.gmra.mrb[0].mxu0 %v1850
    %v1917 = vpop.f32.mrb[0].mxu0
    %v1918 = vadd.f32 0.0, %v1917
    %v1919 = vpop.f32.mrb[0].mxu0
    %v1920 = vadd.f32 0.0, %v1919
    %1921 = vdwg.mxu0
    %1922 = vmatprep.subr.mxu0 %v1280
    %1923 = vmatpush1.msra.mxu0 %v1279
    %1924 = vmatprep.subr.mxu0 %v1284
    %1925 = vmatpush1.msra.mxu0 %v1283
    %1926 = vmatprep.subr.mxu0 %v1288
    %1927 = vmatpush1.msra.mxu0 %v1287
    %1928 = vmatprep.subr.mxu0 %v1292
    %1929 = vmatpush1.msra.mxu0 %v1291
    %1930 = vmatprep.subr.mxu0 %v1296
    %1931 = vmatpush1.msra.mxu0 %v1295
    %1932 = vmatprep.subr.mxu0 %v1300
    %1933 = vmatpush1.msra.mxu0 %v1299
    %1934 = vmatprep.subr.mxu0 %v1304
    %1935 = vmatpush1.msra.mxu0 %v1303
    %1936 = vmatprep.subr.mxu0 %v1308
    %1937 = vmatpush1.msra.mxu0 %v1307
    %1938 = vmatprep.subr.mxu0 %v1312
    %1939 = vmatpush1.msra.mxu0 %v1311
    %1940 = vmatprep.subr.mxu0 %v1316
    %1941 = vmatpush1.msra.mxu0 %v1315
    %1942 = vmatprep.subr.mxu0 %v1320
    %1943 = vmatpush1.msra.mxu0 %v1319
    %1944 = vmatprep.subr.mxu0 %v1324
    %1945 = vmatpush1.msra.mxu0 %v1323
    %1946 = vmatprep.subr.mxu0 %v1328
    %1947 = vmatpush1.msra.mxu0 %v1327
    %1948 = vmatprep.subr.mxu0 %v1332
    %1949 = vmatpush1.msra.mxu0 %v1331
    %1950 = vmatprep.subr.mxu0 %v1336
    %1951 = vmatpush1.msra.mxu0 %v1335
    %1952 = vmatprep.subr.mxu0 %v1340
    %1953 = vmatpush1.msra.mxu0 %v1339
    %1954 = vmatprep.subr.mxu0 0.0
    %1955 = vmatpush1.msra.mxu0 0.0
    %1956 = vmatprep.subr.mxu0 0.0
    %1957 = vmatpush1.msra.mxu0 0.0
    %1958 = vmatprep.subr.mxu0 0.0
    %1959 = vmatpush1.msra.mxu0 0.0
    %1960 = vmatprep.subr.mxu0 0.0
    %1961 = vmatpush1.msra.mxu0 0.0
    %1962 = vmatprep.subr.mxu0 0.0
    %1963 = vmatpush1.msra.mxu0 0.0
    %1964 = vmatprep.subr.mxu0 0.0
    %1965 = vmatpush1.msra.mxu0 0.0
    %1966 = vmatprep.subr.mxu0 0.0
    %1967 = vmatpush1.msra.mxu0 0.0
    %1968 = vmatprep.subr.mxu0 0.0
    %1969 = vmatpush1.msra.mxu0 0.0
    %1970 = vmatprep.subr.mxu0 0.0
    %1971 = vmatpush1.msra.mxu0 0.0
    %1972 = vmatprep.subr.mxu0 0.0
    %1973 = vmatpush1.msra.mxu0 0.0
    %1974 = vmatprep.subr.mxu0 0.0
    %1975 = vmatpush1.msra.mxu0 0.0
    %1976 = vmatprep.subr.mxu0 0.0
    %1977 = vmatpush1.msra.mxu0 0.0
    %1978 = vmatprep.subr.mxu0 0.0
    %1979 = vmatpush1.msra.mxu0 0.0
    %1980 = vmatprep.subr.mxu0 0.0
    %1981 = vmatpush1.msra.mxu0 0.0
    %1982 = vmatprep.subr.mxu0 0.0
    %1983 = vmatpush1.msra.mxu0 0.0
    %1984 = vmatprep.subr.mxu0 0.0
    %1985 = vmatpush1.msra.mxu0 0.0
    %1986 = vmatprep.mubr.f32.mxu0 0.0
    %1987 = vmatmul.mubr.f32.gmra.mrb[0].mxu0 %v1850
    %v1988 = vpop.f32.mrb[0].mxu0
    %v1989 = vadd.f32 0.0, %v1988
    %v1990 = vpop.f32.mrb[0].mxu0
    %v1991 = vadd.f32 0.0, %v1990
    %1992 = vdwg.mxu0
    %v1993 = vadd.f32 %v614, %v1918
    %v1994 = vadd.f32 %v616, %v1920
    %v1995 = vadd.f32 %v685, %v1989
    %v1996 = vadd.f32 %v687, %v1991
    %v1997 = vxor.u32 %v1993, 2147483648
    %v1998 = vmul.f32 %v1997, 1.442695
    %v1999 = vpow.pop %v1998
    %v2000 = vadd.f32 %v1999, 1.0
    %v2001 = vrcp.pop %v2000
    %v2002 = vmul.f32 1.0, %v2001
    %v2003 = vxor.u32 %v1994, 2147483648
    %v2004 = vmul.f32 %v2003, 1.442695
    %v2005 = vpow.pop %v2004
    %v2006 = vadd.f32 %v2005, 1.0
    %v2007 = vrcp.pop %v2006
    %v2008 = vmul.f32 1.0, %v2007
    %v2009 = vtanh.pop %v1995
    %v2010 = vxor.u32 %v1996, 2147483648
    %v2011 = vmul.f32 %v2010, 1.442695
    %v2012 = vpow.pop %v2011
    %v2013 = vadd.f32 %v2012, 1.0
    %v2014 = vrcp.pop %v2013
    %v2015 = vmul.f32 1.0, %v2014
    %v2016 = vmul.f32 %v2008, %v1848
    %v2017 = vmul.f32 %v2002, %v2009
    %v2018 = vadd.f32 %v2016, %v2017
    %v2019 = vtanh.pop %v2018
    %v2020 = vmul.f32 %v2015, %v2019
    %2021 = vmatprep.subr.mxu0 %v1278
    %2022 = vmatpush1.msra.mxu0 %v1277
    %2023 = vmatprep.subr.mxu0 %v1282
    %2024 = vmatpush1.msra.mxu0 %v1281
    %2025 = vmatprep.subr.mxu0 %v1286
    %2026 = vmatpush1.msra.mxu0 %v1285
    %2027 = vmatprep.subr.mxu0 %v1290
    %2028 = vmatpush1.msra.mxu0 %v1289
    %2029 = vmatprep.subr.mxu0 %v1294
    %2030 = vmatpush1.msra.mxu0 %v1293
    %2031 = vmatprep.subr.mxu0 %v1298
    %2032 = vmatpush1.msra.mxu0 %v1297
    %2033 = vmatprep.subr.mxu0 %v1302
    %2034 = vmatpush1.msra.mxu0 %v1301
    %2035 = vmatprep.subr.mxu0 %v1306
    %2036 = vmatpush1.msra.mxu0 %v1305
    %2037 = vmatprep.subr.mxu0 %v1310
    %2038 = vmatpush1.msra.mxu0 %v1309
    %2039 = vmatprep.subr.mxu0 %v1314
    %2040 = vmatpush1.msra.mxu0 %v1313
    %2041 = vmatprep.subr.mxu0 %v1318
    %2042 = vmatpush1.msra.mxu0 %v1317
    %2043 = vmatprep.subr.mxu0 %v1322
    %2044 = vmatpush1.msra.mxu0 %v1321
    %2045 = vmatprep.subr.mxu0 %v1326
    %2046 = vmatpush1.msra.mxu0 %v1325
    %2047 = vmatprep.subr.mxu0 %v1330
    %2048 = vmatpush1.msra.mxu0 %v1329
    %2049 = vmatprep.subr.mxu0 %v1334
    %2050 = vmatpush1.msra.mxu0 %v1333
    %2051 = vmatprep.subr.mxu0 %v1338
    %2052 = vmatpush1.msra.mxu0 %v1337
    %2053 = vmatprep.subr.mxu0 0.0
    %2054 = vmatpush1.msra.mxu0 0.0
    %2055 = vmatprep.subr.mxu0 0.0
    %2056 = vmatpush1.msra.mxu0 0.0
    %2057 = vmatprep.subr.mxu0 0.0
    %2058 = vmatpush1.msra.mxu0 0.0
    %2059 = vmatprep.subr.mxu0 0.0
    %2060 = vmatpush1.msra.mxu0 0.0
    %2061 = vmatprep.subr.mxu0 0.0
    %2062 = vmatpush1.msra.mxu0 0.0
    %2063 = vmatprep.subr.mxu0 0.0
    %2064 = vmatpush1.msra.mxu0 0.0
    %2065 = vmatprep.subr.mxu0 0.0
    %2066 = vmatpush1.msra.mxu0 0.0
    %2067 = vmatprep.subr.mxu0 0.0
    %2068 = vmatpush1.msra.mxu0 0.0
    %2069 = vmatprep.subr.mxu0 0.0
    %2070 = vmatpush1.msra.mxu0 0.0
    %2071 = vmatprep.subr.mxu0 0.0
    %2072 = vmatpush1.msra.mxu0 0.0
    %2073 = vmatprep.subr.mxu0 0.0
    %2074 = vmatpush1.msra.mxu0 0.0
    %2075 = vmatprep.subr.mxu0 0.0
    %2076 = vmatpush1.msra.mxu0 0.0
    %2077 = vmatprep.subr.mxu0 0.0
    %2078 = vmatpush1.msra.mxu0 0.0
    %2079 = vmatprep.subr.mxu0 0.0
    %2080 = vmatpush1.msra.mxu0 0.0
    %2081 = vmatprep.subr.mxu0 0.0
    %2082 = vmatpush1.msra.mxu0 0.0
    %2083 = vmatprep.subr.mxu0 0.0
    %2084 = vmatpush1.msra.mxu0 0.0
    %2085 = vmatprep.mubr.f32.mxu0 0.0
    %2086 = vmatmul.mubr.f32.gmra.mrb[0].mxu0 %v2020
    %v2087 = vpop.f32.mrb[0].mxu0
    %v2088 = vadd.f32 0.0, %v2087
    %v2089 = vpop.f32.mrb[0].mxu0
    %v2090 = vadd.f32 0.0, %v2089
    %2091 = vdwg.mxu0
    %2092 = vmatprep.subr.mxu0 %v1280
    %2093 = vmatpush1.msra.mxu0 %v1279
    %2094 = vmatprep.subr.mxu0 %v1284
    %2095 = vmatpush1.msra.mxu0 %v1283
    %2096 = vmatprep.subr.mxu0 %v1288
    %2097 = vmatpush1.msra.mxu0 %v1287
    %2098 = vmatprep.subr.mxu0 %v1292
    %2099 = vmatpush1.msra.mxu0 %v1291
    %2100 = vmatprep.subr.mxu0 %v1296
    %2101 = vmatpush1.msra.mxu0 %v1295
    %2102 = vmatprep.subr.mxu0 %v1300
    %2103 = vmatpush1.msra.mxu0 %v1299
    %2104 = vmatprep.subr.mxu0 %v1304
    %2105 = vmatpush1.msra.mxu0 %v1303
    %2106 = vmatprep.subr.mxu0 %v1308
    %2107 = vmatpush1.msra.mxu0 %v1307
    %2108 = vmatprep.subr.mxu0 %v1312
    %2109 = vmatpush1.msra.mxu0 %v1311
    %2110 = vmatprep.subr.mxu0 %v1316
    %2111 = vmatpush1.msra.mxu0 %v1315
    %2112 = vmatprep.subr.mxu0 %v1320
    %2113 = vmatpush1.msra.mxu0 %v1319
    %2114 = vmatprep.subr.mxu0 %v1324
    %2115 = vmatpush1.msra.mxu0 %v1323
    %2116 = vmatprep.subr.mxu0 %v1328
    %2117 = vmatpush1.msra.mxu0 %v1327
    %2118 = vmatprep.subr.mxu0 %v1332
    %2119 = vmatpush1.msra.mxu0 %v1331
    %2120 = vmatprep.subr.mxu0 %v1336
    %2121 = vmatpush1.msra.mxu0 %v1335
    %2122 = vmatprep.subr.mxu0 %v1340
    %2123 = vmatpush1.msra.mxu0 %v1339
    %2124 = vmatprep.subr.mxu0 0.0
    %2125 = vmatpush1.msra.mxu0 0.0
    %2126 = vmatprep.subr.mxu0 0.0
    %2127 = vmatpush1.msra.mxu0 0.0
    %2128 = vmatprep.subr.mxu0 0.0
    %2129 = vmatpush1.msra.mxu0 0.0
    %2130 = vmatprep.subr.mxu0 0.0
    %2131 = vmatpush1.msra.mxu0 0.0
    %2132 = vmatprep.subr.mxu0 0.0
    %2133 = vmatpush1.msra.mxu0 0.0
    %2134 = vmatprep.subr.mxu0 0.0
    %2135 = vmatpush1.msra.mxu0 0.0
    %2136 = vmatprep.subr.mxu0 0.0
    %2137 = vmatpush1.msra.mxu0 0.0
    %2138 = vmatprep.subr.mxu0 0.0
    %2139 = vmatpush1.msra.mxu0 0.0
    %2140 = vmatprep.subr.mxu0 0.0
    %2141 = vmatpush1.msra.mxu0 0.0
    %2142 = vmatprep.subr.mxu0 0.0
    %2143 = vmatpush1.msra.mxu0 0.0
    %2144 = vmatprep.subr.mxu0 0.0
    %2145 = vmatpush1.msra.mxu0 0.0
    %2146 = vmatprep.subr.mxu0 0.0
    %2147 = vmatpush1.msra.mxu0 0.0
    %2148 = vmatprep.subr.mxu0 0.0
    %2149 = vmatpush1.msra.mxu0 0.0
    %2150 = vmatprep.subr.mxu0 0.0
    %2151 = vmatpush1.msra.mxu0 0.0
    %2152 = vmatprep.subr.mxu0 0.0
    %2153 = vmatpush1.msra.mxu0 0.0
    %2154 = vmatprep.subr.mxu0 0.0
    %2155 = vmatpush1.msra.mxu0 0.0
    %2156 = vmatprep.mubr.f32.mxu0 0.0
    %2157 = vmatmul.mubr.f32.gmra.mrb[0].mxu0 %v2020
    %v2158 = vpop.f32.mrb[0].mxu0
    %v2159 = vadd.f32 0.0, %v2158
    %v2160 = vpop.f32.mrb[0].mxu0
    %v2161 = vadd.f32 0.0, %v2160
    %2162 = vdwg.mxu0
    %v2163 = vadd.f32 %v761, %v2088
    %v2164 = vadd.f32 %v763, %v2090
    %v2165 = vadd.f32 %v832, %v2159
    %v2166 = vadd.f32 %v834, %v2161
    %v2167 = vxor.u32 %v2163, 2147483648
    %v2168 = vmul.f32 %v2167, 1.442695
    %v2169 = vpow.pop %v2168
    %v2170 = vadd.f32 %v2169, 1.0
    %v2171 = vrcp.pop %v2170
    %v2172 = vmul.f32 1.0, %v2171
    %v2173 = vxor.u32 %v2164, 2147483648
    %v2174 = vmul.f32 %v2173, 1.442695
    %v2175 = vpow.pop %v2174
    %v2176 = vadd.f32 %v2175, 1.0
    %v2177 = vrcp.pop %v2176
    %v2178 = vmul.f32 1.0, %v2177
    %v2179 = vtanh.pop %v2165
    %v2180 = vxor.u32 %v2166, 2147483648
    %v2181 = vmul.f32 %v2180, 1.442695
    %v2182 = vpow.pop %v2181
    %v2183 = vadd.f32 %v2182, 1.0
    %v2184 = vrcp.pop %v2183
    %v2185 = vmul.f32 1.0, %v2184
    %v2186 = vmul.f32 %v2178, %v2018
    %v2187 = vmul.f32 %v2172, %v2179
    %v2188 = vadd.f32 %v2186, %v2187
    %v2189 = vtanh.pop %v2188
    %v2190 = vmul.f32 %v2185, %v2189
    %2191 = vmatprep.subr.mxu0 %v1278
    %2192 = vmatpush1.msra.mxu0 %v1277
    %2193 = vmatprep.subr.mxu0 %v1282
    %2194 = vmatpush1.msra.mxu0 %v1281
    %2195 = vmatprep.subr.mxu0 %v1286
    %2196 = vmatpush1.msra.mxu0 %v1285
    %2197 = vmatprep.subr.mxu0 %v1290
    %2198 = vmatpush1.msra.mxu0 %v1289
    %2199 = vmatprep.subr.mxu0 %v1294
    %2200 = vmatpush1.msra.mxu0 %v1293
    %2201 = vmatprep.subr.mxu0 %v1298
    %2202 = vmatpush1.msra.mxu0 %v1297
    %2203 = vmatprep.subr.mxu0 %v1302
    %2204 = vmatpush1.msra.mxu0 %v1301
    %2205 = vmatprep.subr.mxu0 %v1306
    %2206 = vmatpush1.msra.mxu0 %v1305
    %2207 = vmatprep.subr.mxu0 %v1310
    %2208 = vmatpush1.msra.mxu0 %v1309
    %2209 = vmatprep.subr.mxu0 %v1314
    %2210 = vmatpush1.msra.mxu0 %v1313
    %2211 = vmatprep.subr.mxu0 %v1318
    %2212 = vmatpush1.msra.mxu0 %v1317
    %2213 = vmatprep.subr.mxu0 %v1322
    %2214 = vmatpush1.msra.mxu0 %v1321
    %2215 = vmatprep.subr.mxu0 %v1326
    %2216 = vmatpush1.msra.mxu0 %v1325
    %2217 = vmatprep.subr.mxu0 %v1330
    %2218 = vmatpush1.msra.mxu0 %v1329
    %2219 = vmatprep.subr.mxu0 %v1334
    %2220 = vmatpush1.msra.mxu0 %v1333
    %2221 = vmatprep.subr.mxu0 %v1338
    %2222 = vmatpush1.msra.mxu0 %v1337
    %2223 = vmatprep.subr.mxu0 0.0
    %2224 = vmatpush1.msra.mxu0 0.0
    %2225 = vmatprep.subr.mxu0 0.0
    %2226 = vmatpush1.msra.mxu0 0.0
    %2227 = vmatprep.subr.mxu0 0.0
    %2228 = vmatpush1.msra.mxu0 0.0
    %2229 = vmatprep.subr.mxu0 0.0
    %2230 = vmatpush1.msra.mxu0 0.0
    %2231 = vmatprep.subr.mxu0 0.0
    %2232 = vmatpush1.msra.mxu0 0.0
    %2233 = vmatprep.subr.mxu0 0.0
    %2234 = vmatpush1.msra.mxu0 0.0
    %2235 = vmatprep.subr.mxu0 0.0
    %2236 = vmatpush1.msra.mxu0 0.0
    %2237 = vmatprep.subr.mxu0 0.0
    %2238 = vmatpush1.msra.mxu0 0.0
    %2239 = vmatprep.subr.mxu0 0.0
    %2240 = vmatpush1.msra.mxu0 0.0
    %2241 = vmatprep.subr.mxu0 0.0
    %2242 = vmatpush1.msra.mxu0 0.0
    %2243 = vmatprep.subr.mxu0 0.0
    %2244 = vmatpush1.msra.mxu0 0.0
    %2245 = vmatprep.subr.mxu0 0.0
    %2246 = vmatpush1.msra.mxu0 0.0
    %2247 = vmatprep.subr.mxu0 0.0
    %2248 = vmatpush1.msra.mxu0 0.0
    %2249 = vmatprep.subr.mxu0 0.0
    %2250 = vmatpush1.msra.mxu0 0.0
    %2251 = vmatprep.subr.mxu0 0.0
    %2252 = vmatpush1.msra.mxu0 0.0
    %2253 = vmatprep.subr.mxu0 0.0
    %2254 = vmatpush1.msra.mxu0 0.0
    %2255 = vmatprep.mubr.f32.mxu0 0.0
    %2256 = vmatmul.mubr.f32.gmra.mrb[0].mxu0 %v2190
    %v2257 = vpop.f32.mrb[0].mxu0
    %v2258 = vadd.f32 0.0, %v2257
    %v2259 = vpop.f32.mrb[0].mxu0
    %v2260 = vadd.f32 0.0, %v2259
    %2261 = vdwg.mxu0
    %2262 = vmatprep.subr.mxu0 %v1280
    %2263 = vmatpush1.msra.mxu0 %v1279
    %2264 = vmatprep.subr.mxu0 %v1284
    %2265 = vmatpush1.msra.mxu0 %v1283
    %2266 = vmatprep.subr.mxu0 %v1288
    %2267 = vmatpush1.msra.mxu0 %v1287
    %2268 = vmatprep.subr.mxu0 %v1292
    %2269 = vmatpush1.msra.mxu0 %v1291
    %2270 = vmatprep.subr.mxu0 %v1296
    %2271 = vmatpush1.msra.mxu0 %v1295
    %2272 = vmatprep.subr.mxu0 %v1300
    %2273 = vmatpush1.msra.mxu0 %v1299
    %2274 = vmatprep.subr.mxu0 %v1304
    %2275 = vmatpush1.msra.mxu0 %v1303
    %2276 = vmatprep.subr.mxu0 %v1308
    %2277 = vmatpush1.msra.mxu0 %v1307
    %2278 = vmatprep.subr.mxu0 %v1312
    %2279 = vmatpush1.msra.mxu0 %v1311
    %2280 = vmatprep.subr.mxu0 %v1316
    %2281 = vmatpush1.msra.mxu0 %v1315
    %2282 = vmatprep.subr.mxu0 %v1320
    %2283 = vmatpush1.msra.mxu0 %v1319
    %2284 = vmatprep.subr.mxu0 %v1324
    %2285 = vmatpush1.msra.mxu0 %v1323
    %2286 = vmatprep.subr.mxu0 %v1328
    %2287 = vmatpush1.msra.mxu0 %v1327
    %2288 = vmatprep.subr.mxu0 %v1332
    %2289 = vmatpush1.msra.mxu0 %v1331
    %2290 = vmatprep.subr.mxu0 %v1336
    %2291 = vmatpush1.msra.mxu0 %v1335
    %2292 = vmatprep.subr.mxu0 %v1340
    %2293 = vmatpush1.msra.mxu0 %v1339
    %2294 = vmatprep.subr.mxu0 0.0
    %2295 = vmatpush1.msra.mxu0 0.0
    %2296 = vmatprep.subr.mxu0 0.0
    %2297 = vmatpush1.msra.mxu0 0.0
    %2298 = vmatprep.subr.mxu0 0.0
    %2299 = vmatpush1.msra.mxu0 0.0
    %2300 = vmatprep.subr.mxu0 0.0
    %2301 = vmatpush1.msra.mxu0 0.0
    %2302 = vmatprep.subr.mxu0 0.0
    %2303 = vmatpush1.msra.mxu0 0.0
    %2304 = vmatprep.subr.mxu0 0.0
    %2305 = vmatpush1.msra.mxu0 0.0
    %2306 = vmatprep.subr.mxu0 0.0
    %2307 = vmatpush1.msra.mxu0 0.0
    %2308 = vmatprep.subr.mxu0 0.0
    %2309 = vmatpush1.msra.mxu0 0.0
    %2310 = vmatprep.subr.mxu0 0.0
    %2311 = vmatpush1.msra.mxu0 0.0
    %2312 = vmatprep.subr.mxu0 0.0
    %2313 = vmatpush1.msra.mxu0 0.0
    %2314 = vmatprep.subr.mxu0 0.0
    %2315 = vmatpush1.msra.mxu0 0.0
    %2316 = vmatprep.subr.mxu0 0.0
    %2317 = vmatpush1.msra.mxu0 0.0
    %2318 = vmatprep.subr.mxu0 0.0
    %2319 = vmatpush1.msra.mxu0 0.0
    %2320 = vmatprep.subr.mxu0 0.0
    %2321 = vmatpush1.msra.mxu0 0.0
    %2322 = vmatprep.subr.mxu0 0.0
    %2323 = vmatpush1.msra.mxu0 0.0
    %2324 = vmatprep.subr.mxu0 0.0
    %2325 = vmatpush1.msra.mxu0 0.0
    %2326 = vmatprep.mubr.f32.mxu0 0.0
    %2327 = vmatmul.mubr.f32.gmra.mrb[0].mxu0 %v2190
    %v2328 = vpop.f32.mrb[0].mxu0
    %v2329 = vadd.f32 0.0, %v2328
    %v2330 = vpop.f32.mrb[0].mxu0
    %v2331 = vadd.f32 0.0, %v2330
    %2332 = vdwg.mxu0
    %v2333 = vadd.f32 %v908, %v2258
    %v2334 = vadd.f32 %v910, %v2260
    %v2335 = vadd.f32 %v979, %v2329
    %v2336 = vadd.f32 %v981, %v2331
    %v2337 = vxor.u32 %v2333, 2147483648
    %v2338 = vmul.f32 %v2337, 1.442695
    %v2339 = vpow.pop %v2338
    %v2340 = vadd.f32 %v2339, 1.0
    %v2341 = vrcp.pop %v2340
    %v2342 = vmul.f32 1.0, %v2341
    %v2343 = vxor.u32 %v2334, 2147483648
    %v2344 = vmul.f32 %v2343, 1.442695
    %v2345 = vpow.pop %v2344
    %v2346 = vadd.f32 %v2345, 1.0
    %v2347 = vrcp.pop %v2346
    %v2348 = vmul.f32 1.0, %v2347
    %v2349 = vtanh.pop %v2335
    %v2350 = vxor.u32 %v2336, 2147483648
    %v2351 = vmul.f32 %v2350, 1.442695
    %v2352 = vpow.pop %v2351
    %v2353 = vadd.f32 %v2352, 1.0
    %v2354 = vrcp.pop %v2353
    %v2355 = vmul.f32 1.0, %v2354
    %v2356 = vmul.f32 %v2348, %v2188
    %v2357 = vmul.f32 %v2342, %v2349
    %v2358 = vadd.f32 %v2356, %v2357
    %v2359 = vtanh.pop %v2358
    %v2360 = vmul.f32 %v2355, %v2359
    %2361 = vmatprep.subr.mxu0 %v1278
    %2362 = vmatpush1.msra.mxu0 %v1277
    %2363 = vmatprep.subr.mxu0 %v1282
    %2364 = vmatpush1.msra.mxu0 %v1281
    %2365 = vmatprep.subr.mxu0 %v1286
    %2366 = vmatpush1.msra.mxu0 %v1285
    %2367 = vmatprep.subr.mxu0 %v1290
    %2368 = vmatpush1.msra.mxu0 %v1289
    %2369 = vmatprep.subr.mxu0 %v1294
    %2370 = vmatpush1.msra.mxu0 %v1293
    %2371 = vmatprep.subr.mxu0 %v1298
    %2372 = vmatpush1.msra.mxu0 %v1297
    %2373 = vmatprep.subr.mxu0 %v1302
    %2374 = vmatpush1.msra.mxu0 %v1301
    %2375 = vmatprep.subr.mxu0 %v1306
    %2376 = vmatpush1.msra.mxu0 %v1305
    %2377 = vmatprep.subr.mxu0 %v1310
    %2378 = vmatpush1.msra.mxu0 %v1309
    %2379 = vmatprep.subr.mxu0 %v1314
    %2380 = vmatpush1.msra.mxu0 %v1313
    %2381 = vmatprep.subr.mxu0 %v1318
    %2382 = vmatpush1.msra.mxu0 %v1317
    %2383 = vmatprep.subr.mxu0 %v1322
    %2384 = vmatpush1.msra.mxu0 %v1321
    %2385 = vmatprep.subr.mxu0 %v1326
    %2386 = vmatpush1.msra.mxu0 %v1325
    %2387 = vmatprep.subr.mxu0 %v1330
    %2388 = vmatpush1.msra.mxu0 %v1329
    %2389 = vmatprep.subr.mxu0 %v1334
    %2390 = vmatpush1.msra.mxu0 %v1333
    %2391 = vmatprep.subr.mxu0 %v1338
    %2392 = vmatpush1.msra.mxu0 %v1337
    %2393 = vmatprep.subr.mxu0 0.0
    %2394 = vmatpush1.msra.mxu0 0.0
    %2395 = vmatprep.subr.mxu0 0.0
    %2396 = vmatpush1.msra.mxu0 0.0
    %2397 = vmatprep.subr.mxu0 0.0
    %2398 = vmatpush1.msra.mxu0 0.0
    %2399 = vmatprep.subr.mxu0 0.0
    %2400 = vmatpush1.msra.mxu0 0.0
    %2401 = vmatprep.subr.mxu0 0.0
    %2402 = vmatpush1.msra.mxu0 0.0
    %2403 = vmatprep.subr.mxu0 0.0
    %2404 = vmatpush1.msra.mxu0 0.0
    %2405 = vmatprep.subr.mxu0 0.0
    %2406 = vmatpush1.msra.mxu0 0.0
    %2407 = vmatprep.subr.mxu0 0.0
    %2408 = vmatpush1.msra.mxu0 0.0
    %2409 = vmatprep.subr.mxu0 0.0
    %2410 = vmatpush1.msra.mxu0 0.0
    %2411 = vmatprep.subr.mxu0 0.0
    %2412 = vmatpush1.msra.mxu0 0.0
    %2413 = vmatprep.subr.mxu0 0.0
    %2414 = vmatpush1.msra.mxu0 0.0
    %2415 = vmatprep.subr.mxu0 0.0
    %2416 = vmatpush1.msra.mxu0 0.0
    %2417 = vmatprep.subr.mxu0 0.0
    %2418 = vmatpush1.msra.mxu0 0.0
    %2419 = vmatprep.subr.mxu0 0.0
    %2420 = vmatpush1.msra.mxu0 0.0
    %2421 = vmatprep.subr.mxu0 0.0
    %2422 = vmatpush1.msra.mxu0 0.0
    %2423 = vmatprep.subr.mxu0 0.0
    %2424 = vmatpush1.msra.mxu0 0.0
    %2425 = vmatprep.mubr.f32.mxu0 0.0
    %2426 = vmatmul.mubr.f32.gmra.mrb[0].mxu0 %v2360
    %v2427 = vpop.f32.mrb[0].mxu0
    %v2428 = vadd.f32 0.0, %v2427
    %v2429 = vpop.f32.mrb[0].mxu0
    %v2430 = vadd.f32 0.0, %v2429
    %2431 = vdwg.mxu0
    %2432 = vmatprep.subr.mxu0 %v1280
    %2433 = vmatpush1.msra.mxu0 %v1279
    %2434 = vmatprep.subr.mxu0 %v1284
    %2435 = vmatpush1.msra.mxu0 %v1283
    %2436 = vmatprep.subr.mxu0 %v1288
    %2437 = vmatpush1.msra.mxu0 %v1287
    %2438 = vmatprep.subr.mxu0 %v1292
    %2439 = vmatpush1.msra.mxu0 %v1291
    %2440 = vmatprep.subr.mxu0 %v1296
    %2441 = vmatpush1.msra.mxu0 %v1295
    %2442 = vmatprep.subr.mxu0 %v1300
    %2443 = vmatpush1.msra.mxu0 %v1299
    %2444 = vmatprep.subr.mxu0 %v1304
    %2445 = vmatpush1.msra.mxu0 %v1303
    %2446 = vmatprep.subr.mxu0 %v1308
    %2447 = vmatpush1.msra.mxu0 %v1307
    %2448 = vmatprep.subr.mxu0 %v1312
    %2449 = vmatpush1.msra.mxu0 %v1311
    %2450 = vmatprep.subr.mxu0 %v1316
    %2451 = vmatpush1.msra.mxu0 %v1315
    %2452 = vmatprep.subr.mxu0 %v1320
    %2453 = vmatpush1.msra.mxu0 %v1319
    %2454 = vmatprep.subr.mxu0 %v1324
    %2455 = vmatpush1.msra.mxu0 %v1323
    %2456 = vmatprep.subr.mxu0 %v1328
    %2457 = vmatpush1.msra.mxu0 %v1327
    %2458 = vmatprep.subr.mxu0 %v1332
    %2459 = vmatpush1.msra.mxu0 %v1331
    %2460 = vmatprep.subr.mxu0 %v1336
    %2461 = vmatpush1.msra.mxu0 %v1335
    %2462 = vmatprep.subr.mxu0 %v1340
    %2463 = vmatpush1.msra.mxu0 %v1339
    %2464 = vmatprep.subr.mxu0 0.0
    %2465 = vmatpush1.msra.mxu0 0.0
    %2466 = vmatprep.subr.mxu0 0.0
    %2467 = vmatpush1.msra.mxu0 0.0
    %2468 = vmatprep.subr.mxu0 0.0
    %2469 = vmatpush1.msra.mxu0 0.0
    %2470 = vmatprep.subr.mxu0 0.0
    %2471 = vmatpush1.msra.mxu0 0.0
    %2472 = vmatprep.subr.mxu0 0.0
    %2473 = vmatpush1.msra.mxu0 0.0
    %2474 = vmatprep.subr.mxu0 0.0
    %2475 = vmatpush1.msra.mxu0 0.0
    %2476 = vmatprep.subr.mxu0 0.0
    %2477 = vmatpush1.msra.mxu0 0.0
    %2478 = vmatprep.subr.mxu0 0.0
    %2479 = vmatpush1.msra.mxu0 0.0
    %2480 = vmatprep.subr.mxu0 0.0
    %2481 = vmatpush1.msra.mxu0 0.0
    %2482 = vmatprep.subr.mxu0 0.0
    %2483 = vmatpush1.msra.mxu0 0.0
    %2484 = vmatprep.subr.mxu0 0.0
    %2485 = vmatpush1.msra.mxu0 0.0
    %2486 = vmatprep.subr.mxu0 0.0
    %2487 = vmatpush1.msra.mxu0 0.0
    %2488 = vmatprep.subr.mxu0 0.0
    %2489 = vmatpush1.msra.mxu0 0.0
    %2490 = vmatprep.subr.mxu0 0.0
    %2491 = vmatpush1.msra.mxu0 0.0
    %2492 = vmatprep.subr.mxu0 0.0
    %2493 = vmatpush1.msra.mxu0 0.0
    %2494 = vmatprep.subr.mxu0 0.0
    %2495 = vmatpush1.msra.mxu0 0.0
    %2496 = vmatprep.mubr.f32.mxu0 0.0
    %2497 = vmatmul.mubr.f32.gmra.mrb[0].mxu0 %v2360
    %v2498 = vpop.f32.mrb[0].mxu0
    %v2499 = vadd.f32 0.0, %v2498
    %v2500 = vpop.f32.mrb[0].mxu0
    %v2501 = vadd.f32 0.0, %v2500
    %2502 = vdwg.mxu0
    %v2503 = vadd.f32 %v1055, %v2428
    %v2504 = vadd.f32 %v1057, %v2430
    %v2505 = vadd.f32 %v1126, %v2499
    %v2506 = vadd.f32 %v1128, %v2501
    %v2507 = vxor.u32 %v2503, 2147483648
    %v2508 = vmul.f32 %v2507, 1.442695
    %v2509 = vpow.pop %v2508
    %v2510 = vadd.f32 %v2509, 1.0
    %v2511 = vrcp.pop %v2510
    %v2512 = vmul.f32 1.0, %v2511
    %v2513 = vxor.u32 %v2504, 2147483648
    %v2514 = vmul.f32 %v2513, 1.442695
    %v2515 = vpow.pop %v2514
    %v2516 = vadd.f32 %v2515, 1.0
    %v2517 = vrcp.pop %v2516
    %v2518 = vmul.f32 1.0, %v2517
    %v2519 = vtanh.pop %v2505
    %v2520 = vxor.u32 %v2506, 2147483648
    %v2521 = vmul.f32 %v2520, 1.442695
    %v2522 = vpow.pop %v2521
    %v2523 = vadd.f32 %v2522, 1.0
    %v2524 = vrcp.pop %v2523
    %v2525 = vmul.f32 1.0, %v2524
    %v2526 = vmul.f32 %v2518, %v2358
    %v2527 = vmul.f32 %v2512, %v2519
    %v2528 = vadd.f32 %v2526, %v2527
    %v2529 = vtanh.pop %v2528
    %v2530 = vmul.f32 %v2525, %v2529
    %2531 = vmatprep.subr.mxu0 %v1278
    %2532 = vmatpush1.msra.mxu0 %v1277
    %2533 = vmatprep.subr.mxu0 %v1282
    %2534 = vmatpush1.msra.mxu0 %v1281
    %2535 = vmatprep.subr.mxu0 %v1286
    %2536 = vmatpush1.msra.mxu0 %v1285
    %2537 = vmatprep.subr.mxu0 %v1290
    %2538 = vmatpush1.msra.mxu0 %v1289
    %2539 = vmatprep.subr.mxu0 %v1294
    %2540 = vmatpush1.msra.mxu0 %v1293
    %2541 = vmatprep.subr.mxu0 %v1298
    %2542 = vmatpush1.msra.mxu0 %v1297
    %2543 = vmatprep.subr.mxu0 %v1302
    %2544 = vmatpush1.msra.mxu0 %v1301
    %2545 = vmatprep.subr.mxu0 %v1306
    %2546 = vmatpush1.msra.mxu0 %v1305
    %2547 = vmatprep.subr.mxu0 %v1310
    %2548 = vmatpush1.msra.mxu0 %v1309
    %2549 = vmatprep.subr.mxu0 %v1314
    %2550 = vmatpush1.msra.mxu0 %v1313
    %2551 = vmatprep.subr.mxu0 %v1318
    %2552 = vmatpush1.msra.mxu0 %v1317
    %2553 = vmatprep.subr.mxu0 %v1322
    %2554 = vmatpush1.msra.mxu0 %v1321
    %2555 = vmatprep.subr.mxu0 %v1326
    %2556 = vmatpush1.msra.mxu0 %v1325
    %2557 = vmatprep.subr.mxu0 %v1330
    %2558 = vmatpush1.msra.mxu0 %v1329
    %2559 = vmatprep.subr.mxu0 %v1334
    %2560 = vmatpush1.msra.mxu0 %v1333
    %2561 = vmatprep.subr.mxu0 %v1338
    %2562 = vmatpush1.msra.mxu0 %v1337
    %2563 = vmatprep.subr.mxu0 0.0
    %2564 = vmatpush1.msra.mxu0 0.0
    %2565 = vmatprep.subr.mxu0 0.0
    %2566 = vmatpush1.msra.mxu0 0.0
    %2567 = vmatprep.subr.mxu0 0.0
    %2568 = vmatpush1.msra.mxu0 0.0
    %2569 = vmatprep.subr.mxu0 0.0
    %2570 = vmatpush1.msra.mxu0 0.0
    %2571 = vmatprep.subr.mxu0 0.0
    %2572 = vmatpush1.msra.mxu0 0.0
    %2573 = vmatprep.subr.mxu0 0.0
    %2574 = vmatpush1.msra.mxu0 0.0
    %2575 = vmatprep.subr.mxu0 0.0
    %2576 = vmatpush1.msra.mxu0 0.0
    %2577 = vmatprep.subr.mxu0 0.0
    %2578 = vmatpush1.msra.mxu0 0.0
    %2579 = vmatprep.subr.mxu0 0.0
    %2580 = vmatpush1.msra.mxu0 0.0
    %2581 = vmatprep.subr.mxu0 0.0
    %2582 = vmatpush1.msra.mxu0 0.0
    %2583 = vmatprep.subr.mxu0 0.0
    %2584 = vmatpush1.msra.mxu0 0.0
    %2585 = vmatprep.subr.mxu0 0.0
    %2586 = vmatpush1.msra.mxu0 0.0
    %2587 = vmatprep.subr.mxu0 0.0
    %2588 = vmatpush1.msra.mxu0 0.0
    %2589 = vmatprep.subr.mxu0 0.0
    %2590 = vmatpush1.msra.mxu0 0.0
    %2591 = vmatprep.subr.mxu0 0.0
    %2592 = vmatpush1.msra.mxu0 0.0
    %2593 = vmatprep.subr.mxu0 0.0
    %2594 = vmatpush1.msra.mxu0 0.0
    %2595 = vmatprep.mubr.f32.mxu0 0.0
    %2596 = vmatmul.mubr.f32.gmra.mrb[0].mxu0 %v2530
    %v2597 = vpop.f32.mrb[0].mxu0
    %v2598 = vadd.f32 0.0, %v2597
    %v2599 = vpop.f32.mrb[0].mxu0
    %v2600 = vadd.f32 0.0, %v2599
    %2601 = vdwg.mxu0
    %2602 = vmatprep.subr.mxu0 %v1280
    %2603 = vmatpush1.msra.mxu0 %v1279
    %2604 = vmatprep.subr.mxu0 %v1284
    %2605 = vmatpush1.msra.mxu0 %v1283
    %2606 = vmatprep.subr.mxu0 %v1288
    %2607 = vmatpush1.msra.mxu0 %v1287
    %2608 = vmatprep.subr.mxu0 %v1292
    %2609 = vmatpush1.msra.mxu0 %v1291
    %2610 = vmatprep.subr.mxu0 %v1296
    %2611 = vmatpush1.msra.mxu0 %v1295
    %2612 = vmatprep.subr.mxu0 %v1300
    %2613 = vmatpush1.msra.mxu0 %v1299
    %2614 = vmatprep.subr.mxu0 %v1304
    %2615 = vmatpush1.msra.mxu0 %v1303
    %2616 = vmatprep.subr.mxu0 %v1308
    %2617 = vmatpush1.msra.mxu0 %v1307
    %2618 = vmatprep.subr.mxu0 %v1312
    %2619 = vmatpush1.msra.mxu0 %v1311
    %2620 = vmatprep.subr.mxu0 %v1316
    %2621 = vmatpush1.msra.mxu0 %v1315
    %2622 = vmatprep.subr.mxu0 %v1320
    %2623 = vmatpush1.msra.mxu0 %v1319
    %2624 = vmatprep.subr.mxu0 %v1324
    %2625 = vmatpush1.msra.mxu0 %v1323
    %2626 = vmatprep.subr.mxu0 %v1328
    %2627 = vmatpush1.msra.mxu0 %v1327
    %2628 = vmatprep.subr.mxu0 %v1332
    %2629 = vmatpush1.msra.mxu0 %v1331
    %2630 = vmatprep.subr.mxu0 %v1336
    %2631 = vmatpush1.msra.mxu0 %v1335
    %2632 = vmatprep.subr.mxu0 %v1340
    %2633 = vmatpush1.msra.mxu0 %v1339
    %2634 = vmatprep.subr.mxu0 0.0
    %2635 = vmatpush1.msra.mxu0 0.0
    %2636 = vmatprep.subr.mxu0 0.0
    %2637 = vmatpush1.msra.mxu0 0.0
    %2638 = vmatprep.subr.mxu0 0.0
    %2639 = vmatpush1.msra.mxu0 0.0
    %2640 = vmatprep.subr.mxu0 0.0
    %2641 = vmatpush1.msra.mxu0 0.0
    %2642 = vmatprep.subr.mxu0 0.0
    %2643 = vmatpush1.msra.mxu0 0.0
    %2644 = vmatprep.subr.mxu0 0.0
    %2645 = vmatpush1.msra.mxu0 0.0
    %2646 = vmatprep.subr.mxu0 0.0
    %2647 = vmatpush1.msra.mxu0 0.0
    %2648 = vmatprep.subr.mxu0 0.0
    %2649 = vmatpush1.msra.mxu0 0.0
    %2650 = vmatprep.subr.mxu0 0.0
    %2651 = vmatpush1.msra.mxu0 0.0
    %2652 = vmatprep.subr.mxu0 0.0
    %2653 = vmatpush1.msra.mxu0 0.0
    %2654 = vmatprep.subr.mxu0 0.0
    %2655 = vmatpush1.msra.mxu0 0.0
    %2656 = vmatprep.subr.mxu0 0.0
    %2657 = vmatpush1.msra.mxu0 0.0
    %2658 = vmatprep.subr.mxu0 0.0
    %2659 = vmatpush1.msra.mxu0 0.0
    %2660 = vmatprep.subr.mxu0 0.0
    %2661 = vmatpush1.msra.mxu0 0.0
    %2662 = vmatprep.subr.mxu0 0.0
    %2663 = vmatpush1.msra.mxu0 0.0
    %2664 = vmatprep.subr.mxu0 0.0
    %2665 = vmatpush1.msra.mxu0 0.0
    %2666 = vmatprep.mubr.f32.mxu0 0.0
    %2667 = vmatmul.mubr.f32.gmra.mrb[0].mxu0 %v2530
    %v2668 = vpop.f32.mrb[0].mxu0
    %v2669 = vadd.f32 0.0, %v2668
    %v2670 = vpop.f32.mrb[0].mxu0
    %v2671 = vadd.f32 0.0, %v2670
    %2672 = vdwg.mxu0
    %v2673 = vadd.f32 %v1202, %v2598
    %v2674 = vadd.f32 %v1204, %v2600
    %v2675 = vadd.f32 %v1273, %v2669
    %v2676 = vadd.f32 %v1275, %v2671
    %v2677 = vxor.u32 %v2673, 2147483648
    %v2678 = vmul.f32 %v2677, 1.442695
    %v2679 = vpow.pop %v2678
    %v2680 = vadd.f32 %v2679, 1.0
    %v2681 = vrcp.pop %v2680
    %v2682 = vmul.f32 1.0, %v2681
    %v2683 = vxor.u32 %v2674, 2147483648
    %v2684 = vmul.f32 %v2683, 1.442695
    %v2685 = vpow.pop %v2684
    %v2686 = vadd.f32 %v2685, 1.0
    %v2687 = vrcp.pop %v2686
    %v2688 = vmul.f32 1.0, %v2687
    %v2689 = vtanh.pop %v2675
    %v2690 = vxor.u32 %v2676, 2147483648
    %v2691 = vmul.f32 %v2690, 1.442695
    %v2692 = vpow.pop %v2691
    %v2693 = vadd.f32 %v2692, 1.0
    %v2694 = vrcp.pop %v2693
    %v2695 = vmul.f32 1.0, %v2694
    %v2696 = vmul.f32 %v2688, %v2528
    %v2697 = vmul.f32 %v2682, %v2689
    %v2698 = vadd.f32 %v2696, %v2697
    %v2699 = vtanh.pop %v2698
    %v2700 = vmul.f32 %v2695, %v2699
    %v2701 = vld [vmem:[#allocation5] sm:$0xff]
    %v2702 = vld [vmem:[#allocation5 + $0x8] sm:$0xff]
    %v2703 = vld [vmem:[#allocation5 + $0x10] sm:$0xff]
    %v2704 = vld [vmem:[#allocation5 + $0x18] sm:$0xff]
    %v2705 = vld [vmem:[#allocation5 + $0x20] sm:$0xff]
    %v2706 = vld [vmem:[#allocation5 + $0x28] sm:$0xff]
    %v2707 = vld [vmem:[#allocation5 + $0x30] sm:$0xff]
    %v2708 = vld [vmem:[#allocation5 + $0x38] sm:$0xff]
    %v2709 = vld [vmem:[#allocation5 + $0x40] sm:$0xff]
    %v2710 = vld [vmem:[#allocation5 + $0x48] sm:$0xff]
    %v2711 = vld [vmem:[#allocation5 + $0x50] sm:$0xff]
    %v2712 = vld [vmem:[#allocation5 + $0x58] sm:$0xff]
    %v2713 = vld [vmem:[#allocation5 + $0x60] sm:$0xff]
    %v2714 = vld [vmem:[#allocation5 + $0x68] sm:$0xff]
    %v2715 = vld [vmem:[#allocation5 + $0x70] sm:$0xff]
    %v2716 = vld [vmem:[#allocation5 + $0x78] sm:$0xff]
    %v2717 = vld [vmem:[#allocation5 + $0x80] sm:$0xff]
    %v2718 = vld [vmem:[#allocation5 + $0x88] sm:$0xff]
    %v2719 = vld [vmem:[#allocation5 + $0x90] sm:$0xff]
    %v2720 = vld [vmem:[#allocation5 + $0x98] sm:$0xff]
    %v2721 = vld [vmem:[#allocation5 + $0xa0] sm:$0xff]
    %v2722 = vld [vmem:[#allocation5 + $0xa8] sm:$0xff]
    %v2723 = vld [vmem:[#allocation5 + $0xb0] sm:$0xff]
    %v2724 = vld [vmem:[#allocation5 + $0xb8] sm:$0xff]
    %v2725 = vld [vmem:[#allocation5 + $0xc0] sm:$0xff]
    %v2726 = vld [vmem:[#allocation5 + $0xc8] sm:$0xff]
    %v2727 = vld [vmem:[#allocation5 + $0xd0] sm:$0xff]
    %v2728 = vld [vmem:[#allocation5 + $0xd8] sm:$0xff]
    %v2729 = vld [vmem:[#allocation5 + $0xe0] sm:$0xff]
    %v2730 = vld [vmem:[#allocation5 + $0xe8] sm:$0xff]
    %v2731 = vld [vmem:[#allocation5 + $0xf0] sm:$0xff]
    %v2732 = vld [vmem:[#allocation5 + $0xf8] sm:$0xff]
    %v2733 = vld [vmem:[#allocation5 + $0x100] sm:$0xff]
    %v2734 = vld [vmem:[#allocation5 + $0x108] sm:$0xff]
    %v2735 = vld [vmem:[#allocation5 + $0x110] sm:$0xff]
    %v2736 = vld [vmem:[#allocation5 + $0x118] sm:$0xff]
    %v2737 = vld [vmem:[#allocation5 + $0x120] sm:$0xff]
    %v2738 = vld [vmem:[#allocation5 + $0x128] sm:$0xff]
    %v2739 = vld [vmem:[#allocation5 + $0x130] sm:$0xff]
    %v2740 = vld [vmem:[#allocation5 + $0x138] sm:$0xff]
    %v2741 = vld [vmem:[#allocation5 + $0x140] sm:$0xff]
    %v2742 = vld [vmem:[#allocation5 + $0x148] sm:$0xff]
    %v2743 = vld [vmem:[#allocation5 + $0x150] sm:$0xff]
    %v2744 = vld [vmem:[#allocation5 + $0x158] sm:$0xff]
    %v2745 = vld [vmem:[#allocation5 + $0x160] sm:$0xff]
    %v2746 = vld [vmem:[#allocation5 + $0x168] sm:$0xff]
    %v2747 = vld [vmem:[#allocation5 + $0x170] sm:$0xff]
    %v2748 = vld [vmem:[#allocation5 + $0x178] sm:$0xff]
    %v2749 = vld [vmem:[#allocation5 + $0x180] sm:$0xff]
    %v2750 = vld [vmem:[#allocation5 + $0x188] sm:$0xff]
    %v2751 = vld [vmem:[#allocation5 + $0x190] sm:$0xff]
    %v2752 = vld [vmem:[#allocation5 + $0x198] sm:$0xff]
    %v2753 = vld [vmem:[#allocation5 + $0x1a0] sm:$0xff]
    %v2754 = vld [vmem:[#allocation5 + $0x1a8] sm:$0xff]
    %v2755 = vld [vmem:[#allocation5 + $0x1b0] sm:$0xff]
    %v2756 = vld [vmem:[#allocation5 + $0x1b8] sm:$0xff]
    %v2757 = vld [vmem:[#allocation5 + $0x1c0] sm:$0xff]
    %v2758 = vld [vmem:[#allocation5 + $0x1c8] sm:$0xff]
    %v2759 = vld [vmem:[#allocation5 + $0x1d0] sm:$0xff]
    %v2760 = vld [vmem:[#allocation5 + $0x1d8] sm:$0xff]
    %v2761 = vld [vmem:[#allocation5 + $0x1e0] sm:$0xff]
    %v2762 = vld [vmem:[#allocation5 + $0x1e8] sm:$0xff]
    %v2763 = vld [vmem:[#allocation5 + $0x1f0] sm:$0xff]
    %v2764 = vld [vmem:[#allocation5 + $0x1f8] sm:$0xff]
    %v2765 = vld [vmem:[%s6] sm:$0xf]
    %v2767 = vlaneseq
    %v2768 = vshrl.u32 %v2767, 7
    %v2769 = vsub.s32 0, %v2768
    %v2770 = vrot.slane %v2765, %v2769
    %v2771 = vlaneseq
    %v2772 = vshrl.u32 %v2771, 7
    %v2773 = vsub.s32 1, %v2772
    %v2774 = vrot.slane %v2765, %v2773
    %v2775 = vlaneseq
    %v2776 = vshrl.u32 %v2775, 7
    %v2777 = vsub.s32 2, %v2776
    %v2778 = vrot.slane %v2765, %v2777
    %v2779 = vlaneseq
    %v2780 = vshrl.u32 %v2779, 7
    %v2781 = vsub.s32 3, %v2780
    %v2782 = vrot.slane %v2765, %v2781
    %2787 = vmatprep.subr.mxu0 %v2702
    %2788 = vmatpush1.msra.mxu0 %v2701
    %2789 = vmatprep.subr.mxu0 %v2706
    %2790 = vmatpush1.msra.mxu0 %v2705
    %2791 = vmatprep.subr.mxu0 %v2710
    %2792 = vmatpush1.msra.mxu0 %v2709
    %2793 = vmatprep.subr.mxu0 %v2714
    %2794 = vmatpush1.msra.mxu0 %v2713
    %2795 = vmatprep.subr.mxu0 %v2718
    %2796 = vmatpush1.msra.mxu0 %v2717
    %2797 = vmatprep.subr.mxu0 %v2722
    %2798 = vmatpush1.msra.mxu0 %v2721
    %2799 = vmatprep.subr.mxu0 %v2726
    %2800 = vmatpush1.msra.mxu0 %v2725
    %2801 = vmatprep.subr.mxu0 %v2730
    %2802 = vmatpush1.msra.mxu0 %v2729
    %2803 = vmatprep.subr.mxu0 %v2734
    %2804 = vmatpush1.msra.mxu0 %v2733
    %2805 = vmatprep.subr.mxu0 %v2738
    %2806 = vmatpush1.msra.mxu0 %v2737
    %2807 = vmatprep.subr.mxu0 %v2742
    %2808 = vmatpush1.msra.mxu0 %v2741
    %2809 = vmatprep.subr.mxu0 %v2746
    %2810 = vmatpush1.msra.mxu0 %v2745
    %2811 = vmatprep.subr.mxu0 %v2750
    %2812 = vmatpush1.msra.mxu0 %v2749
    %2813 = vmatprep.subr.mxu0 %v2754
    %2814 = vmatpush1.msra.mxu0 %v2753
    %2815 = vmatprep.subr.mxu0 %v2758
    %2816 = vmatpush1.msra.mxu0 %v2757
    %2817 = vmatprep.subr.mxu0 %v2762
    %2818 = vmatpush1.msra.mxu0 %v2761
    %2819 = vmatprep.subr.mxu0 0.0
    %2820 = vmatpush1.msra.mxu0 0.0
    %2821 = vmatprep.subr.mxu0 0.0
    %2822 = vmatpush1.msra.mxu0 0.0
    %2823 = vmatprep.subr.mxu0 0.0
    %2824 = vmatpush1.msra.mxu0 0.0
    %2825 = vmatprep.subr.mxu0 0.0
    %2826 = vmatpush1.msra.mxu0 0.0
    %2827 = vmatprep.subr.mxu0 0.0
    %2828 = vmatpush1.msra.mxu0 0.0
    %2829 = vmatprep.subr.mxu0 0.0
    %2830 = vmatpush1.msra.mxu0 0.0
    %2831 = vmatprep.subr.mxu0 0.0
    %2832 = vmatpush1.msra.mxu0 0.0
    %2833 = vmatprep.subr.mxu0 0.0
    %2834 = vmatpush1.msra.mxu0 0.0
    %2835 = vmatprep.subr.mxu0 0.0
    %2836 = vmatpush1.msra.mxu0 0.0
    %2837 = vmatprep.subr.mxu0 0.0
    %2838 = vmatpush1.msra.mxu0 0.0
    %2839 = vmatprep.subr.mxu0 0.0
    %2840 = vmatpush1.msra.mxu0 0.0
    %2841 = vmatprep.subr.mxu0 0.0
    %2842 = vmatpush1.msra.mxu0 0.0
    %2843 = vmatprep.subr.mxu0 0.0
    %2844 = vmatpush1.msra.mxu0 0.0
    %2845 = vmatprep.subr.mxu0 0.0
    %2846 = vmatpush1.msra.mxu0 0.0
    %2847 = vmatprep.subr.mxu0 0.0
    %2848 = vmatpush1.msra.mxu0 0.0
    %2849 = vmatprep.subr.mxu0 0.0
    %2850 = vmatpush1.msra.mxu0 0.0
    %2851 = vmatprep.mubr.f32.mxu0 0.0
    %2852 = vmatmul.mubr.f32.gmra.mrb[0].mxu0 %v1510
    %v2853 = vpop.f32.mrb[0].mxu0
    %v2854 = vadd.f32 %v2770, %v2853
    %v2855 = vpop.f32.mrb[0].mxu0
    %v2856 = vadd.f32 %v2774, %v2855
    %2857 = vdwg.mxu0
    %2858 = vmatprep.subr.mxu0 %v2704
    %2859 = vmatpush1.msra.mxu0 %v2703
    %2860 = vmatprep.subr.mxu0 %v2708
    %2861 = vmatpush1.msra.mxu0 %v2707
    %2862 = vmatprep.subr.mxu0 %v2712
    %2863 = vmatpush1.msra.mxu0 %v2711
    %2864 = vmatprep.subr.mxu0 %v2716
    %2865 = vmatpush1.msra.mxu0 %v2715
    %2866 = vmatprep.subr.mxu0 %v2720
    %2867 = vmatpush1.msra.mxu0 %v2719
    %2868 = vmatprep.subr.mxu0 %v2724
    %2869 = vmatpush1.msra.mxu0 %v2723
    %2870 = vmatprep.subr.mxu0 %v2728
    %2871 = vmatpush1.msra.mxu0 %v2727
    %2872 = vmatprep.subr.mxu0 %v2732
    %2873 = vmatpush1.msra.mxu0 %v2731
    %2874 = vmatprep.subr.mxu0 %v2736
    %2875 = vmatpush1.msra.mxu0 %v2735
    %2876 = vmatprep.subr.mxu0 %v2740
    %2877 = vmatpush1.msra.mxu0 %v2739
    %2878 = vmatprep.subr.mxu0 %v2744
    %2879 = vmatpush1.msra.mxu0 %v2743
    %2880 = vmatprep.subr.mxu0 %v2748
    %2881 = vmatpush1.msra.mxu0 %v2747
    %2882 = vmatprep.subr.mxu0 %v2752
    %2883 = vmatpush1.msra.mxu0 %v2751
    %2884 = vmatprep.subr.mxu0 %v2756
    %2885 = vmatpush1.msra.mxu0 %v2755
    %2886 = vmatprep.subr.mxu0 %v2760
    %2887 = vmatpush1.msra.mxu0 %v2759
    %2888 = vmatprep.subr.mxu0 %v2764
    %2889 = vmatpush1.msra.mxu0 %v2763
    %2890 = vmatprep.subr.mxu0 0.0
    %2891 = vmatpush1.msra.mxu0 0.0
    %2892 = vmatprep.subr.mxu0 0.0
    %2893 = vmatpush1.msra.mxu0 0.0
    %2894 = vmatprep.subr.mxu0 0.0
    %2895 = vmatpush1.msra.mxu0 0.0
    %2896 = vmatprep.subr.mxu0 0.0
    %2897 = vmatpush1.msra.mxu0 0.0
    %2898 = vmatprep.subr.mxu0 0.0
    %2899 = vmatpush1.msra.mxu0 0.0
    %2900 = vmatprep.subr.mxu0 0.0
    %2901 = vmatpush1.msra.mxu0 0.0
    %2902 = vmatprep.subr.mxu0 0.0
    %2903 = vmatpush1.msra.mxu0 0.0
    %2904 = vmatprep.subr.mxu0 0.0
    %2905 = vmatpush1.msra.mxu0 0.0
    %2906 = vmatprep.subr.mxu0 0.0
    %2907 = vmatpush1.msra.mxu0 0.0
    %2908 = vmatprep.subr.mxu0 0.0
    %2909 = vmatpush1.msra.mxu0 0.0
    %2910 = vmatprep.subr.mxu0 0.0
    %2911 = vmatpush1.msra.mxu0 0.0
    %2912 = vmatprep.subr.mxu0 0.0
    %2913 = vmatpush1.msra.mxu0 0.0
    %2914 = vmatprep.subr.mxu0 0.0
    %2915 = vmatpush1.msra.mxu0 0.0
    %2916 = vmatprep.subr.mxu0 0.0
    %2917 = vmatpush1.msra.mxu0 0.0
    %2918 = vmatprep.subr.mxu0 0.0
    %2919 = vmatpush1.msra.mxu0 0.0
    %2920 = vmatprep.subr.mxu0 0.0
    %2921 = vmatpush1.msra.mxu0 0.0
    %2922 = vmatprep.mubr.f32.mxu0 0.0
    %2923 = vmatmul.mubr.f32.gmra.mrb[0].mxu0 %v1510
    %v2924 = vpop.f32.mrb[0].mxu0
    %v2925 = vadd.f32 %v2778, %v2924
    %v2926 = vpop.f32.mrb[0].mxu0
    %v2927 = vadd.f32 %v2782, %v2926
    %2928 = vdwg.mxu0
    %2929 = vmatprep.subr.mxu0 %v2702
    %2930 = vmatpush1.msra.mxu0 %v2701
    %2931 = vmatprep.subr.mxu0 %v2706
    %2932 = vmatpush1.msra.mxu0 %v2705
    %2933 = vmatprep.subr.mxu0 %v2710
    %2934 = vmatpush1.msra.mxu0 %v2709
    %2935 = vmatprep.subr.mxu0 %v2714
    %2936 = vmatpush1.msra.mxu0 %v2713
    %2937 = vmatprep.subr.mxu0 %v2718
    %2938 = vmatpush1.msra.mxu0 %v2717
    %2939 = vmatprep.subr.mxu0 %v2722
    %2940 = vmatpush1.msra.mxu0 %v2721
    %2941 = vmatprep.subr.mxu0 %v2726
    %2942 = vmatpush1.msra.mxu0 %v2725
    %2943 = vmatprep.subr.mxu0 %v2730
    %2944 = vmatpush1.msra.mxu0 %v2729
    %2945 = vmatprep.subr.mxu0 %v2734
    %2946 = vmatpush1.msra.mxu0 %v2733
    %2947 = vmatprep.subr.mxu0 %v2738
    %2948 = vmatpush1.msra.mxu0 %v2737
    %2949 = vmatprep.subr.mxu0 %v2742
    %2950 = vmatpush1.msra.mxu0 %v2741
    %2951 = vmatprep.subr.mxu0 %v2746
    %2952 = vmatpush1.msra.mxu0 %v2745
    %2953 = vmatprep.subr.mxu0 %v2750
    %2954 = vmatpush1.msra.mxu0 %v2749
    %2955 = vmatprep.subr.mxu0 %v2754
    %2956 = vmatpush1.msra.mxu0 %v2753
    %2957 = vmatprep.subr.mxu0 %v2758
    %2958 = vmatpush1.msra.mxu0 %v2757
    %2959 = vmatprep.subr.mxu0 %v2762
    %2960 = vmatpush1.msra.mxu0 %v2761
    %2961 = vmatprep.subr.mxu0 0.0
    %2962 = vmatpush1.msra.mxu0 0.0
    %2963 = vmatprep.subr.mxu0 0.0
    %2964 = vmatpush1.msra.mxu0 0.0
    %2965 = vmatprep.subr.mxu0 0.0
    %2966 = vmatpush1.msra.mxu0 0.0
    %2967 = vmatprep.subr.mxu0 0.0
    %2968 = vmatpush1.msra.mxu0 0.0
    %2969 = vmatprep.subr.mxu0 0.0
    %2970 = vmatpush1.msra.mxu0 0.0
    %2971 = vmatprep.subr.mxu0 0.0
    %2972 = vmatpush1.msra.mxu0 0.0
    %2973 = vmatprep.subr.mxu0 0.0
    %2974 = vmatpush1.msra.mxu0 0.0
    %2975 = vmatprep.subr.mxu0 0.0
    %2976 = vmatpush1.msra.mxu0 0.0
    %2977 = vmatprep.subr.mxu0 0.0
    %2978 = vmatpush1.msra.mxu0 0.0
    %2979 = vmatprep.subr.mxu0 0.0
    %2980 = vmatpush1.msra.mxu0 0.0
    %2981 = vmatprep.subr.mxu0 0.0
    %2982 = vmatpush1.msra.mxu0 0.0
    %2983 = vmatprep.subr.mxu0 0.0
    %2984 = vmatpush1.msra.mxu0 0.0
    %2985 = vmatprep.subr.mxu0 0.0
    %2986 = vmatpush1.msra.mxu0 0.0
    %2987 = vmatprep.subr.mxu0 0.0
    %2988 = vmatpush1.msra.mxu0 0.0
    %2989 = vmatprep.subr.mxu0 0.0
    %2990 = vmatpush1.msra.mxu0 0.0
    %2991 = vmatprep.subr.mxu0 0.0
    %2992 = vmatpush1.msra.mxu0 0.0
    %2993 = vmatprep.mubr.f32.mxu0 0.0
    %2994 = vmatmul.mubr.f32.gmra.mrb[0].mxu0 %v1680
    %v2995 = vpop.f32.mrb[0].mxu0
    %v2996 = vadd.f32 %v2770, %v2995
    %v2997 = vpop.f32.mrb[0].mxu0
    %v2998 = vadd.f32 %v2774, %v2997
    %2999 = vdwg.mxu0
    %3000 = vmatprep.subr.mxu0 %v2704
    %3001 = vmatpush1.msra.mxu0 %v2703
    %3002 = vmatprep.subr.mxu0 %v2708
    %3003 = vmatpush1.msra.mxu0 %v2707
    %3004 = vmatprep.subr.mxu0 %v2712
    %3005 = vmatpush1.msra.mxu0 %v2711
    %3006 = vmatprep.subr.mxu0 %v2716
    %3007 = vmatpush1.msra.mxu0 %v2715
    %3008 = vmatprep.subr.mxu0 %v2720
    %3009 = vmatpush1.msra.mxu0 %v2719
    %3010 = vmatprep.subr.mxu0 %v2724
    %3011 = vmatpush1.msra.mxu0 %v2723
    %3012 = vmatprep.subr.mxu0 %v2728
    %3013 = vmatpush1.msra.mxu0 %v2727
    %3014 = vmatprep.subr.mxu0 %v2732
    %3015 = vmatpush1.msra.mxu0 %v2731
    %3016 = vmatprep.subr.mxu0 %v2736
    %3017 = vmatpush1.msra.mxu0 %v2735
    %3018 = vmatprep.subr.mxu0 %v2740
    %3019 = vmatpush1.msra.mxu0 %v2739
    %3020 = vmatprep.subr.mxu0 %v2744
    %3021 = vmatpush1.msra.mxu0 %v2743
    %3022 = vmatprep.subr.mxu0 %v2748
    %3023 = vmatpush1.msra.mxu0 %v2747
    %3024 = vmatprep.subr.mxu0 %v2752
    %3025 = vmatpush1.msra.mxu0 %v2751
    %3026 = vmatprep.subr.mxu0 %v2756
    %3027 = vmatpush1.msra.mxu0 %v2755
    %3028 = vmatprep.subr.mxu0 %v2760
    %3029 = vmatpush1.msra.mxu0 %v2759
    %3030 = vmatprep.subr.mxu0 %v2764
    %3031 = vmatpush1.msra.mxu0 %v2763
    %3032 = vmatprep.subr.mxu0 0.0
    %3033 = vmatpush1.msra.mxu0 0.0
    %3034 = vmatprep.subr.mxu0 0.0
    %3035 = vmatpush1.msra.mxu0 0.0
    %3036 = vmatprep.subr.mxu0 0.0
    %3037 = vmatpush1.msra.mxu0 0.0
    %3038 = vmatprep.subr.mxu0 0.0
    %3039 = vmatpush1.msra.mxu0 0.0
    %3040 = vmatprep.subr.mxu0 0.0
    %3041 = vmatpush1.msra.mxu0 0.0
    %3042 = vmatprep.subr.mxu0 0.0
    %3043 = vmatpush1.msra.mxu0 0.0
    %3044 = vmatprep.subr.mxu0 0.0
    %3045 = vmatpush1.msra.mxu0 0.0
    %3046 = vmatprep.subr.mxu0 0.0
    %3047 = vmatpush1.msra.mxu0 0.0
    %3048 = vmatprep.subr.mxu0 0.0
    %3049 = vmatpush1.msra.mxu0 0.0
    %3050 = vmatprep.subr.mxu0 0.0
    %3051 = vmatpush1.msra.mxu0 0.0
    %3052 = vmatprep.subr.mxu0 0.0
    %3053 = vmatpush1.msra.mxu0 0.0
    %3054 = vmatprep.subr.mxu0 0.0
    %3055 = vmatpush1.msra.mxu0 0.0
    %3056 = vmatprep.subr.mxu0 0.0
    %3057 = vmatpush1.msra.mxu0 0.0
    %3058 = vmatprep.subr.mxu0 0.0
    %3059 = vmatpush1.msra.mxu0 0.0
    %3060 = vmatprep.subr.mxu0 0.0
    %3061 = vmatpush1.msra.mxu0 0.0
    %3062 = vmatprep.subr.mxu0 0.0
    %3063 = vmatpush1.msra.mxu0 0.0
    %3064 = vmatprep.mubr.f32.mxu0 0.0
    %3065 = vmatmul.mubr.f32.gmra.mrb[0].mxu0 %v1680
    %v3066 = vpop.f32.mrb[0].mxu0
    %v3067 = vadd.f32 %v2778, %v3066
    %v3068 = vpop.f32.mrb[0].mxu0
    %v3069 = vadd.f32 %v2782, %v3068
    %3070 = vdwg.mxu0
    %3071 = vmatprep.subr.mxu0 %v2702
    %3072 = vmatpush1.msra.mxu0 %v2701
    %3073 = vmatprep.subr.mxu0 %v2706
    %3074 = vmatpush1.msra.mxu0 %v2705
    %3075 = vmatprep.subr.mxu0 %v2710
    %3076 = vmatpush1.msra.mxu0 %v2709
    %3077 = vmatprep.subr.mxu0 %v2714
    %3078 = vmatpush1.msra.mxu0 %v2713
    %3079 = vmatprep.subr.mxu0 %v2718
    %3080 = vmatpush1.msra.mxu0 %v2717
    %3081 = vmatprep.subr.mxu0 %v2722
    %3082 = vmatpush1.msra.mxu0 %v2721
    %3083 = vmatprep.subr.mxu0 %v2726
    %3084 = vmatpush1.msra.mxu0 %v2725
    %3085 = vmatprep.subr.mxu0 %v2730
    %3086 = vmatpush1.msra.mxu0 %v2729
    %3087 = vmatprep.subr.mxu0 %v2734
    %3088 = vmatpush1.msra.mxu0 %v2733
    %3089 = vmatprep.subr.mxu0 %v2738
    %3090 = vmatpush1.msra.mxu0 %v2737
    %3091 = vmatprep.subr.mxu0 %v2742
    %3092 = vmatpush1.msra.mxu0 %v2741
    %3093 = vmatprep.subr.mxu0 %v2746
    %3094 = vmatpush1.msra.mxu0 %v2745
    %3095 = vmatprep.subr.mxu0 %v2750
    %3096 = vmatpush1.msra.mxu0 %v2749
    %3097 = vmatprep.subr.mxu0 %v2754
    %3098 = vmatpush1.msra.mxu0 %v2753
    %3099 = vmatprep.subr.mxu0 %v2758
    %3100 = vmatpush1.msra.mxu0 %v2757
    %3101 = vmatprep.subr.mxu0 %v2762
    %3102 = vmatpush1.msra.mxu0 %v2761
    %3103 = vmatprep.subr.mxu0 0.0
    %3104 = vmatpush1.msra.mxu0 0.0
    %3105 = vmatprep.subr.mxu0 0.0
    %3106 = vmatpush1.msra.mxu0 0.0
    %3107 = vmatprep.subr.mxu0 0.0
    %3108 = vmatpush1.msra.mxu0 0.0
    %3109 = vmatprep.subr.mxu0 0.0
    %3110 = vmatpush1.msra.mxu0 0.0
    %3111 = vmatprep.subr.mxu0 0.0
    %3112 = vmatpush1.msra.mxu0 0.0
    %3113 = vmatprep.subr.mxu0 0.0
    %3114 = vmatpush1.msra.mxu0 0.0
    %3115 = vmatprep.subr.mxu0 0.0
    %3116 = vmatpush1.msra.mxu0 0.0
    %3117 = vmatprep.subr.mxu0 0.0
    %3118 = vmatpush1.msra.mxu0 0.0
    %3119 = vmatprep.subr.mxu0 0.0
    %3120 = vmatpush1.msra.mxu0 0.0
    %3121 = vmatprep.subr.mxu0 0.0
    %3122 = vmatpush1.msra.mxu0 0.0
    %3123 = vmatprep.subr.mxu0 0.0
    %3124 = vmatpush1.msra.mxu0 0.0
    %3125 = vmatprep.subr.mxu0 0.0
    %3126 = vmatpush1.msra.mxu0 0.0
    %3127 = vmatprep.subr.mxu0 0.0
    %3128 = vmatpush1.msra.mxu0 0.0
    %3129 = vmatprep.subr.mxu0 0.0
    %3130 = vmatpush1.msra.mxu0 0.0
    %3131 = vmatprep.subr.mxu0 0.0
    %3132 = vmatpush1.msra.mxu0 0.0
    %3133 = vmatprep.subr.mxu0 0.0
    %3134 = vmatpush1.msra.mxu0 0.0
    %3135 = vmatprep.mubr.f32.mxu0 0.0
    %3136 = vmatmul.mubr.f32.gmra.mrb[0].mxu0 %v1850
    %v3137 = vpop.f32.mrb[0].mxu0
    %v3138 = vadd.f32 %v2770, %v3137
    %v3139 = vpop.f32.mrb[0].mxu0
    %v3140 = vadd.f32 %v2774, %v3139
    %3141 = vdwg.mxu0
    %3142 = vmatprep.subr.mxu0 %v2704
    %3143 = vmatpush1.msra.mxu0 %v2703
    %3144 = vmatprep.subr.mxu0 %v2708
    %3145 = vmatpush1.msra.mxu0 %v2707
    %3146 = vmatprep.subr.mxu0 %v2712
    %3147 = vmatpush1.msra.mxu0 %v2711
    %3148 = vmatprep.subr.mxu0 %v2716
    %3149 = vmatpush1.msra.mxu0 %v2715
    %3150 = vmatprep.subr.mxu0 %v2720
    %3151 = vmatpush1.msra.mxu0 %v2719
    %3152 = vmatprep.subr.mxu0 %v2724
    %3153 = vmatpush1.msra.mxu0 %v2723
    %3154 = vmatprep.subr.mxu0 %v2728
    %3155 = vmatpush1.msra.mxu0 %v2727
    %3156 = vmatprep.subr.mxu0 %v2732
    %3157 = vmatpush1.msra.mxu0 %v2731
    %3158 = vmatprep.subr.mxu0 %v2736
    %3159 = vmatpush1.msra.mxu0 %v2735
    %3160 = vmatprep.subr.mxu0 %v2740
    %3161 = vmatpush1.msra.mxu0 %v2739
    %3162 = vmatprep.subr.mxu0 %v2744
    %3163 = vmatpush1.msra.mxu0 %v2743
    %3164 = vmatprep.subr.mxu0 %v2748
    %3165 = vmatpush1.msra.mxu0 %v2747
    %3166 = vmatprep.subr.mxu0 %v2752
    %3167 = vmatpush1.msra.mxu0 %v2751
    %3168 = vmatprep.subr.mxu0 %v2756
    %3169 = vmatpush1.msra.mxu0 %v2755
    %3170 = vmatprep.subr.mxu0 %v2760
    %3171 = vmatpush1.msra.mxu0 %v2759
    %3172 = vmatprep.subr.mxu0 %v2764
    %3173 = vmatpush1.msra.mxu0 %v2763
    %3174 = vmatprep.subr.mxu0 0.0
    %3175 = vmatpush1.msra.mxu0 0.0
    %3176 = vmatprep.subr.mxu0 0.0
    %3177 = vmatpush1.msra.mxu0 0.0
    %3178 = vmatprep.subr.mxu0 0.0
    %3179 = vmatpush1.msra.mxu0 0.0
    %3180 = vmatprep.subr.mxu0 0.0
    %3181 = vmatpush1.msra.mxu0 0.0
    %3182 = vmatprep.subr.mxu0 0.0
    %3183 = vmatpush1.msra.mxu0 0.0
    %3184 = vmatprep.subr.mxu0 0.0
    %3185 = vmatpush1.msra.mxu0 0.0
    %3186 = vmatprep.subr.mxu0 0.0
    %3187 = vmatpush1.msra.mxu0 0.0
    %3188 = vmatprep.subr.mxu0 0.0
    %3189 = vmatpush1.msra.mxu0 0.0
    %3190 = vmatprep.subr.mxu0 0.0
    %3191 = vmatpush1.msra.mxu0 0.0
    %3192 = vmatprep.subr.mxu0 0.0
    %3193 = vmatpush1.msra.mxu0 0.0
    %3194 = vmatprep.subr.mxu0 0.0
    %3195 = vmatpush1.msra.mxu0 0.0
    %3196 = vmatprep.subr.mxu0 0.0
    %3197 = vmatpush1.msra.mxu0 0.0
    %3198 = vmatprep.subr.mxu0 0.0
    %3199 = vmatpush1.msra.mxu0 0.0
    %3200 = vmatprep.subr.mxu0 0.0
    %3201 = vmatpush1.msra.mxu0 0.0
    %3202 = vmatprep.subr.mxu0 0.0
    %3203 = vmatpush1.msra.mxu0 0.0
    %3204 = vmatprep.subr.mxu0 0.0
    %3205 = vmatpush1.msra.mxu0 0.0
    %3206 = vmatprep.mubr.f32.mxu0 0.0
    %3207 = vmatmul.mubr.f32.gmra.mrb[0].mxu0 %v1850
    %v3208 = vpop.f32.mrb[0].mxu0
    %v3209 = vadd.f32 %v2778, %v3208
    %v3210 = vpop.f32.mrb[0].mxu0
    %v3211 = vadd.f32 %v2782, %v3210
    %3212 = vdwg.mxu0
    %3213 = vmatprep.subr.mxu0 %v2702
    %3214 = vmatpush1.msra.mxu0 %v2701
    %3215 = vmatprep.subr.mxu0 %v2706
    %3216 = vmatpush1.msra.mxu0 %v2705
    %3217 = vmatprep.subr.mxu0 %v2710
    %3218 = vmatpush1.msra.mxu0 %v2709
    %3219 = vmatprep.subr.mxu0 %v2714
    %3220 = vmatpush1.msra.mxu0 %v2713
    %3221 = vmatprep.subr.mxu0 %v2718
    %3222 = vmatpush1.msra.mxu0 %v2717
    %3223 = vmatprep.subr.mxu0 %v2722
    %3224 = vmatpush1.msra.mxu0 %v2721
    %3225 = vmatprep.subr.mxu0 %v2726
    %3226 = vmatpush1.msra.mxu0 %v2725
    %3227 = vmatprep.subr.mxu0 %v2730
    %3228 = vmatpush1.msra.mxu0 %v2729
    %3229 = vmatprep.subr.mxu0 %v2734
    %3230 = vmatpush1.msra.mxu0 %v2733
    %3231 = vmatprep.subr.mxu0 %v2738
    %3232 = vmatpush1.msra.mxu0 %v2737
    %3233 = vmatprep.subr.mxu0 %v2742
    %3234 = vmatpush1.msra.mxu0 %v2741
    %3235 = vmatprep.subr.mxu0 %v2746
    %3236 = vmatpush1.msra.mxu0 %v2745
    %3237 = vmatprep.subr.mxu0 %v2750
    %3238 = vmatpush1.msra.mxu0 %v2749
    %3239 = vmatprep.subr.mxu0 %v2754
    %3240 = vmatpush1.msra.mxu0 %v2753
    %3241 = vmatprep.subr.mxu0 %v2758
    %3242 = vmatpush1.msra.mxu0 %v2757
    %3243 = vmatprep.subr.mxu0 %v2762
    %3244 = vmatpush1.msra.mxu0 %v2761
    %3245 = vmatprep.subr.mxu0 0.0
    %3246 = vmatpush1.msra.mxu0 0.0
    %3247 = vmatprep.subr.mxu0 0.0
    %3248 = vmatpush1.msra.mxu0 0.0
    %3249 = vmatprep.subr.mxu0 0.0
    %3250 = vmatpush1.msra.mxu0 0.0
    %3251 = vmatprep.subr.mxu0 0.0
    %3252 = vmatpush1.msra.mxu0 0.0
    %3253 = vmatprep.subr.mxu0 0.0
    %3254 = vmatpush1.msra.mxu0 0.0
    %3255 = vmatprep.subr.mxu0 0.0
    %3256 = vmatpush1.msra.mxu0 0.0
    %3257 = vmatprep.subr.mxu0 0.0
    %3258 = vmatpush1.msra.mxu0 0.0
    %3259 = vmatprep.subr.mxu0 0.0
    %3260 = vmatpush1.msra.mxu0 0.0
    %3261 = vmatprep.subr.mxu0 0.0
    %3262 = vmatpush1.msra.mxu0 0.0
    %3263 = vmatprep.subr.mxu0 0.0
    %3264 = vmatpush1.msra.mxu0 0.0
    %3265 = vmatprep.subr.mxu0 0.0
    %3266 = vmatpush1.msra.mxu0 0.0
    %3267 = vmatprep.subr.mxu0 0.0
    %3268 = vmatpush1.msra.mxu0 0.0
    %3269 = vmatprep.subr.mxu0 0.0
    %3270 = vmatpush1.msra.mxu0 0.0
    %3271 = vmatprep.subr.mxu0 0.0
    %3272 = vmatpush1.msra.mxu0 0.0
    %3273 = vmatprep.subr.mxu0 0.0
    %3274 = vmatpush1.msra.mxu0 0.0
    %3275 = vmatprep.subr.mxu0 0.0
    %3276 = vmatpush1.msra.mxu0 0.0
    %3277 = vmatprep.mubr.f32.mxu0 0.0
    %3278 = vmatmul.mubr.f32.gmra.mrb[0].mxu0 %v2020
    %v3279 = vpop.f32.mrb[0].mxu0
    %v3280 = vadd.f32 %v2770, %v3279
    %v3281 = vpop.f32.mrb[0].mxu0
    %v3282 = vadd.f32 %v2774, %v3281
    %3283 = vdwg.mxu0
    %3284 = vmatprep.subr.mxu0 %v2704
    %3285 = vmatpush1.msra.mxu0 %v2703
    %3286 = vmatprep.subr.mxu0 %v2708
    %3287 = vmatpush1.msra.mxu0 %v2707
    %3288 = vmatprep.subr.mxu0 %v2712
    %3289 = vmatpush1.msra.mxu0 %v2711
    %3290 = vmatprep.subr.mxu0 %v2716
    %3291 = vmatpush1.msra.mxu0 %v2715
    %3292 = vmatprep.subr.mxu0 %v2720
    %3293 = vmatpush1.msra.mxu0 %v2719
    %3294 = vmatprep.subr.mxu0 %v2724
    %3295 = vmatpush1.msra.mxu0 %v2723
    %3296 = vmatprep.subr.mxu0 %v2728
    %3297 = vmatpush1.msra.mxu0 %v2727
    %3298 = vmatprep.subr.mxu0 %v2732
    %3299 = vmatpush1.msra.mxu0 %v2731
    %3300 = vmatprep.subr.mxu0 %v2736
    %3301 = vmatpush1.msra.mxu0 %v2735
    %3302 = vmatprep.subr.mxu0 %v2740
    %3303 = vmatpush1.msra.mxu0 %v2739
    %3304 = vmatprep.subr.mxu0 %v2744
    %3305 = vmatpush1.msra.mxu0 %v2743
    %3306 = vmatprep.subr.mxu0 %v2748
    %3307 = vmatpush1.msra.mxu0 %v2747
    %3308 = vmatprep.subr.mxu0 %v2752
    %3309 = vmatpush1.msra.mxu0 %v2751
    %3310 = vmatprep.subr.mxu0 %v2756
    %3311 = vmatpush1.msra.mxu0 %v2755
    %3312 = vmatprep.subr.mxu0 %v2760
    %3313 = vmatpush1.msra.mxu0 %v2759
    %3314 = vmatprep.subr.mxu0 %v2764
    %3315 = vmatpush1.msra.mxu0 %v2763
    %3316 = vmatprep.subr.mxu0 0.0
    %3317 = vmatpush1.msra.mxu0 0.0
    %3318 = vmatprep.subr.mxu0 0.0
    %3319 = vmatpush1.msra.mxu0 0.0
    %3320 = vmatprep.subr.mxu0 0.0
    %3321 = vmatpush1.msra.mxu0 0.0
    %3322 = vmatprep.subr.mxu0 0.0
    %3323 = vmatpush1.msra.mxu0 0.0
    %3324 = vmatprep.subr.mxu0 0.0
    %3325 = vmatpush1.msra.mxu0 0.0
    %3326 = vmatprep.subr.mxu0 0.0
    %3327 = vmatpush1.msra.mxu0 0.0
    %3328 = vmatprep.subr.mxu0 0.0
    %3329 = vmatpush1.msra.mxu0 0.0
    %3330 = vmatprep.subr.mxu0 0.0
    %3331 = vmatpush1.msra.mxu0 0.0
    %3332 = vmatprep.subr.mxu0 0.0
    %3333 = vmatpush1.msra.mxu0 0.0
    %3334 = vmatprep.subr.mxu0 0.0
    %3335 = vmatpush1.msra.mxu0 0.0
    %3336 = vmatprep.subr.mxu0 0.0
    %3337 = vmatpush1.msra.mxu0 0.0
    %3338 = vmatprep.subr.mxu0 0.0
    %3339 = vmatpush1.msra.mxu0 0.0
    %3340 = vmatprep.subr.mxu0 0.0
    %3341 = vmatpush1.msra.mxu0 0.0
    %3342 = vmatprep.subr.mxu0 0.0
    %3343 = vmatpush1.msra.mxu0 0.0
    %3344 = vmatprep.subr.mxu0 0.0
    %3345 = vmatpush1.msra.mxu0 0.0
    %3346 = vmatprep.subr.mxu0 0.0
    %3347 = vmatpush1.msra.mxu0 0.0
    %3348 = vmatprep.mubr.f32.mxu0 0.0
    %3349 = vmatmul.mubr.f32.gmra.mrb[0].mxu0 %v2020
    %v3350 = vpop.f32.mrb[0].mxu0
    %v3351 = vadd.f32 %v2778, %v3350
    %v3352 = vpop.f32.mrb[0].mxu0
    %v3353 = vadd.f32 %v2782, %v3352
    %3354 = vdwg.mxu0
    %3355 = vmatprep.subr.mxu0 %v2702
    %3356 = vmatpush1.msra.mxu0 %v2701
    %3357 = vmatprep.subr.mxu0 %v2706
    %3358 = vmatpush1.msra.mxu0 %v2705
    %3359 = vmatprep.subr.mxu0 %v2710
    %3360 = vmatpush1.msra.mxu0 %v2709
    %3361 = vmatprep.subr.mxu0 %v2714
    %3362 = vmatpush1.msra.mxu0 %v2713
    %3363 = vmatprep.subr.mxu0 %v2718
    %3364 = vmatpush1.msra.mxu0 %v2717
    %3365 = vmatprep.subr.mxu0 %v2722
    %3366 = vmatpush1.msra.mxu0 %v2721
    %3367 = vmatprep.subr.mxu0 %v2726
    %3368 = vmatpush1.msra.mxu0 %v2725
    %3369 = vmatprep.subr.mxu0 %v2730
    %3370 = vmatpush1.msra.mxu0 %v2729
    %3371 = vmatprep.subr.mxu0 %v2734
    %3372 = vmatpush1.msra.mxu0 %v2733
    %3373 = vmatprep.subr.mxu0 %v2738
    %3374 = vmatpush1.msra.mxu0 %v2737
    %3375 = vmatprep.subr.mxu0 %v2742
    %3376 = vmatpush1.msra.mxu0 %v2741
    %3377 = vmatprep.subr.mxu0 %v2746
    %3378 = vmatpush1.msra.mxu0 %v2745
    %3379 = vmatprep.subr.mxu0 %v2750
    %3380 = vmatpush1.msra.mxu0 %v2749
    %3381 = vmatprep.subr.mxu0 %v2754
    %3382 = vmatpush1.msra.mxu0 %v2753
    %3383 = vmatprep.subr.mxu0 %v2758
    %3384 = vmatpush1.msra.mxu0 %v2757
    %3385 = vmatprep.subr.mxu0 %v2762
    %3386 = vmatpush1.msra.mxu0 %v2761
    %3387 = vmatprep.subr.mxu0 0.0
    %3388 = vmatpush1.msra.mxu0 0.0
    %3389 = vmatprep.subr.mxu0 0.0
    %3390 = vmatpush1.msra.mxu0 0.0
    %3391 = vmatprep.subr.mxu0 0.0
    %3392 = vmatpush1.msra.mxu0 0.0
    %3393 = vmatprep.subr.mxu0 0.0
    %3394 = vmatpush1.msra.mxu0 0.0
    %3395 = vmatprep.subr.mxu0 0.0
    %3396 = vmatpush1.msra.mxu0 0.0
    %3397 = vmatprep.subr.mxu0 0.0
    %3398 = vmatpush1.msra.mxu0 0.0
    %3399 = vmatprep.subr.mxu0 0.0
    %3400 = vmatpush1.msra.mxu0 0.0
    %3401 = vmatprep.subr.mxu0 0.0
    %3402 = vmatpush1.msra.mxu0 0.0
    %3403 = vmatprep.subr.mxu0 0.0
    %3404 = vmatpush1.msra.mxu0 0.0
    %3405 = vmatprep.subr.mxu0 0.0
    %3406 = vmatpush1.msra.mxu0 0.0
    %3407 = vmatprep.subr.mxu0 0.0
    %3408 = vmatpush1.msra.mxu0 0.0
    %3409 = vmatprep.subr.mxu0 0.0
    %3410 = vmatpush1.msra.mxu0 0.0
    %3411 = vmatprep.subr.mxu0 0.0
    %3412 = vmatpush1.msra.mxu0 0.0
    %3413 = vmatprep.subr.mxu0 0.0
    %3414 = vmatpush1.msra.mxu0 0.0
    %3415 = vmatprep.subr.mxu0 0.0
    %3416 = vmatpush1.msra.mxu0 0.0
    %3417 = vmatprep.subr.mxu0 0.0
    %3418 = vmatpush1.msra.mxu0 0.0
    %3419 = vmatprep.mubr.f32.mxu0 0.0
    %3420 = vmatmul.mubr.f32.gmra.mrb[0].mxu0 %v2190
    %v3421 = vpop.f32.mrb[0].mxu0
    %v3422 = vadd.f32 %v2770, %v3421
    %v3423 = vpop.f32.mrb[0].mxu0
    %v3424 = vadd.f32 %v2774, %v3423
    %3425 = vdwg.mxu0
    %3426 = vmatprep.subr.mxu0 %v2704
    %3427 = vmatpush1.msra.mxu0 %v2703
    %3428 = vmatprep.subr.mxu0 %v2708
    %3429 = vmatpush1.msra.mxu0 %v2707
    %3430 = vmatprep.subr.mxu0 %v2712
    %3431 = vmatpush1.msra.mxu0 %v2711
    %3432 = vmatprep.subr.mxu0 %v2716
    %3433 = vmatpush1.msra.mxu0 %v2715
    %3434 = vmatprep.subr.mxu0 %v2720
    %3435 = vmatpush1.msra.mxu0 %v2719
    %3436 = vmatprep.subr.mxu0 %v2724
    %3437 = vmatpush1.msra.mxu0 %v2723
    %3438 = vmatprep.subr.mxu0 %v2728
    %3439 = vmatpush1.msra.mxu0 %v2727
    %3440 = vmatprep.subr.mxu0 %v2732
    %3441 = vmatpush1.msra.mxu0 %v2731
    %3442 = vmatprep.subr.mxu0 %v2736
    %3443 = vmatpush1.msra.mxu0 %v2735
    %3444 = vmatprep.subr.mxu0 %v2740
    %3445 = vmatpush1.msra.mxu0 %v2739
    %3446 = vmatprep.subr.mxu0 %v2744
    %3447 = vmatpush1.msra.mxu0 %v2743
    %3448 = vmatprep.subr.mxu0 %v2748
    %3449 = vmatpush1.msra.mxu0 %v2747
    %3450 = vmatprep.subr.mxu0 %v2752
    %3451 = vmatpush1.msra.mxu0 %v2751
    %3452 = vmatprep.subr.mxu0 %v2756
    %3453 = vmatpush1.msra.mxu0 %v2755
    %3454 = vmatprep.subr.mxu0 %v2760
    %3455 = vmatpush1.msra.mxu0 %v2759
    %3456 = vmatprep.subr.mxu0 %v2764
    %3457 = vmatpush1.msra.mxu0 %v2763
    %3458 = vmatprep.subr.mxu0 0.0
    %3459 = vmatpush1.msra.mxu0 0.0
    %3460 = vmatprep.subr.mxu0 0.0
    %3461 = vmatpush1.msra.mxu0 0.0
    %3462 = vmatprep.subr.mxu0 0.0
    %3463 = vmatpush1.msra.mxu0 0.0
    %3464 = vmatprep.subr.mxu0 0.0
    %3465 = vmatpush1.msra.mxu0 0.0
    %3466 = vmatprep.subr.mxu0 0.0
    %3467 = vmatpush1.msra.mxu0 0.0
    %3468 = vmatprep.subr.mxu0 0.0
    %3469 = vmatpush1.msra.mxu0 0.0
    %3470 = vmatprep.subr.mxu0 0.0
    %3471 = vmatpush1.msra.mxu0 0.0
    %3472 = vmatprep.subr.mxu0 0.0
    %3473 = vmatpush1.msra.mxu0 0.0
    %3474 = vmatprep.subr.mxu0 0.0
    %3475 = vmatpush1.msra.mxu0 0.0
    %3476 = vmatprep.subr.mxu0 0.0
    %3477 = vmatpush1.msra.mxu0 0.0
    %3478 = vmatprep.subr.mxu0 0.0
    %3479 = vmatpush1.msra.mxu0 0.0
    %3480 = vmatprep.subr.mxu0 0.0
    %3481 = vmatpush1.msra.mxu0 0.0
    %3482 = vmatprep.subr.mxu0 0.0
    %3483 = vmatpush1.msra.mxu0 0.0
    %3484 = vmatprep.subr.mxu0 0.0
    %3485 = vmatpush1.msra.mxu0 0.0
    %3486 = vmatprep.subr.mxu0 0.0
    %3487 = vmatpush1.msra.mxu0 0.0
    %3488 = vmatprep.subr.mxu0 0.0
    %3489 = vmatpush1.msra.mxu0 0.0
    %3490 = vmatprep.mubr.f32.mxu0 0.0
    %3491 = vmatmul.mubr.f32.gmra.mrb[0].mxu0 %v2190
    %v3492 = vpop.f32.mrb[0].mxu0
    %v3493 = vadd.f32 %v2778, %v3492
    %v3494 = vpop.f32.mrb[0].mxu0
    %v3495 = vadd.f32 %v2782, %v3494
    %3496 = vdwg.mxu0
    %3497 = vmatprep.subr.mxu0 %v2702
    %3498 = vmatpush1.msra.mxu0 %v2701
    %3499 = vmatprep.subr.mxu0 %v2706
    %3500 = vmatpush1.msra.mxu0 %v2705
    %3501 = vmatprep.subr.mxu0 %v2710
    %3502 = vmatpush1.msra.mxu0 %v2709
    %3503 = vmatprep.subr.mxu0 %v2714
    %3504 = vmatpush1.msra.mxu0 %v2713
    %3505 = vmatprep.subr.mxu0 %v2718
    %3506 = vmatpush1.msra.mxu0 %v2717
    %3507 = vmatprep.subr.mxu0 %v2722
    %3508 = vmatpush1.msra.mxu0 %v2721
    %3509 = vmatprep.subr.mxu0 %v2726
    %3510 = vmatpush1.msra.mxu0 %v2725
    %3511 = vmatprep.subr.mxu0 %v2730
    %3512 = vmatpush1.msra.mxu0 %v2729
    %3513 = vmatprep.subr.mxu0 %v2734
    %3514 = vmatpush1.msra.mxu0 %v2733
    %3515 = vmatprep.subr.mxu0 %v2738
    %3516 = vmatpush1.msra.mxu0 %v2737
    %3517 = vmatprep.subr.mxu0 %v2742
    %3518 = vmatpush1.msra.mxu0 %v2741
    %3519 = vmatprep.subr.mxu0 %v2746
    %3520 = vmatpush1.msra.mxu0 %v2745
    %3521 = vmatprep.subr.mxu0 %v2750
    %3522 = vmatpush1.msra.mxu0 %v2749
    %3523 = vmatprep.subr.mxu0 %v2754
    %3524 = vmatpush1.msra.mxu0 %v2753
    %3525 = vmatprep.subr.mxu0 %v2758
    %3526 = vmatpush1.msra.mxu0 %v2757
    %3527 = vmatprep.subr.mxu0 %v2762
    %3528 = vmatpush1.msra.mxu0 %v2761
    %3529 = vmatprep.subr.mxu0 0.0
    %3530 = vmatpush1.msra.mxu0 0.0
    %3531 = vmatprep.subr.mxu0 0.0
    %3532 = vmatpush1.msra.mxu0 0.0
    %3533 = vmatprep.subr.mxu0 0.0
    %3534 = vmatpush1.msra.mxu0 0.0
    %3535 = vmatprep.subr.mxu0 0.0
    %3536 = vmatpush1.msra.mxu0 0.0
    %3537 = vmatprep.subr.mxu0 0.0
    %3538 = vmatpush1.msra.mxu0 0.0
    %3539 = vmatprep.subr.mxu0 0.0
    %3540 = vmatpush1.msra.mxu0 0.0
    %3541 = vmatprep.subr.mxu0 0.0
    %3542 = vmatpush1.msra.mxu0 0.0
    %3543 = vmatprep.subr.mxu0 0.0
    %3544 = vmatpush1.msra.mxu0 0.0
    %3545 = vmatprep.subr.mxu0 0.0
    %3546 = vmatpush1.msra.mxu0 0.0
    %3547 = vmatprep.subr.mxu0 0.0
    %3548 = vmatpush1.msra.mxu0 0.0
    %3549 = vmatprep.subr.mxu0 0.0
    %3550 = vmatpush1.msra.mxu0 0.0
    %3551 = vmatprep.subr.mxu0 0.0
    %3552 = vmatpush1.msra.mxu0 0.0
    %3553 = vmatprep.subr.mxu0 0.0
    %3554 = vmatpush1.msra.mxu0 0.0
    %3555 = vmatprep.subr.mxu0 0.0
    %3556 = vmatpush1.msra.mxu0 0.0
    %3557 = vmatprep.subr.mxu0 0.0
    %3558 = vmatpush1.msra.mxu0 0.0
    %3559 = vmatprep.subr.mxu0 0.0
    %3560 = vmatpush1.msra.mxu0 0.0
    %3561 = vmatprep.mubr.f32.mxu0 0.0
    %3562 = vmatmul.mubr.f32.gmra.mrb[0].mxu0 %v2360
    %v3563 = vpop.f32.mrb[0].mxu0
    %v3564 = vadd.f32 %v2770, %v3563
    %v3565 = vpop.f32.mrb[0].mxu0
    %v3566 = vadd.f32 %v2774, %v3565
    %3567 = vdwg.mxu0
    %3568 = vmatprep.subr.mxu0 %v2704
    %3569 = vmatpush1.msra.mxu0 %v2703
    %3570 = vmatprep.subr.mxu0 %v2708
    %3571 = vmatpush1.msra.mxu0 %v2707
    %3572 = vmatprep.subr.mxu0 %v2712
    %3573 = vmatpush1.msra.mxu0 %v2711
    %3574 = vmatprep.subr.mxu0 %v2716
    %3575 = vmatpush1.msra.mxu0 %v2715
    %3576 = vmatprep.subr.mxu0 %v2720
    %3577 = vmatpush1.msra.mxu0 %v2719
    %3578 = vmatprep.subr.mxu0 %v2724
    %3579 = vmatpush1.msra.mxu0 %v2723
    %3580 = vmatprep.subr.mxu0 %v2728
    %3581 = vmatpush1.msra.mxu0 %v2727
    %3582 = vmatprep.subr.mxu0 %v2732
    %3583 = vmatpush1.msra.mxu0 %v2731
    %3584 = vmatprep.subr.mxu0 %v2736
    %3585 = vmatpush1.msra.mxu0 %v2735
    %3586 = vmatprep.subr.mxu0 %v2740
    %3587 = vmatpush1.msra.mxu0 %v2739
    %3588 = vmatprep.subr.mxu0 %v2744
    %3589 = vmatpush1.msra.mxu0 %v2743
    %3590 = vmatprep.subr.mxu0 %v2748
    %3591 = vmatpush1.msra.mxu0 %v2747
    %3592 = vmatprep.subr.mxu0 %v2752
    %3593 = vmatpush1.msra.mxu0 %v2751
    %3594 = vmatprep.subr.mxu0 %v2756
    %3595 = vmatpush1.msra.mxu0 %v2755
    %3596 = vmatprep.subr.mxu0 %v2760
    %3597 = vmatpush1.msra.mxu0 %v2759
    %3598 = vmatprep.subr.mxu0 %v2764
    %3599 = vmatpush1.msra.mxu0 %v2763
    %3600 = vmatprep.subr.mxu0 0.0
    %3601 = vmatpush1.msra.mxu0 0.0
    %3602 = vmatprep.subr.mxu0 0.0
    %3603 = vmatpush1.msra.mxu0 0.0
    %3604 = vmatprep.subr.mxu0 0.0
    %3605 = vmatpush1.msra.mxu0 0.0
    %3606 = vmatprep.subr.mxu0 0.0
    %3607 = vmatpush1.msra.mxu0 0.0
    %3608 = vmatprep.subr.mxu0 0.0
    %3609 = vmatpush1.msra.mxu0 0.0
    %3610 = vmatprep.subr.mxu0 0.0
    %3611 = vmatpush1.msra.mxu0 0.0
    %3612 = vmatprep.subr.mxu0 0.0
    %3613 = vmatpush1.msra.mxu0 0.0
    %3614 = vmatprep.subr.mxu0 0.0
    %3615 = vmatpush1.msra.mxu0 0.0
    %3616 = vmatprep.subr.mxu0 0.0
    %3617 = vmatpush1.msra.mxu0 0.0
    %3618 = vmatprep.subr.mxu0 0.0
    %3619 = vmatpush1.msra.mxu0 0.0
    %3620 = vmatprep.subr.mxu0 0.0
    %3621 = vmatpush1.msra.mxu0 0.0
    %3622 = vmatprep.subr.mxu0 0.0
    %3623 = vmatpush1.msra.mxu0 0.0
    %3624 = vmatprep.subr.mxu0 0.0
    %3625 = vmatpush1.msra.mxu0 0.0
    %3626 = vmatprep.subr.mxu0 0.0
    %3627 = vmatpush1.msra.mxu0 0.0
    %3628 = vmatprep.subr.mxu0 0.0
    %3629 = vmatpush1.msra.mxu0 0.0
    %3630 = vmatprep.subr.mxu0 0.0
    %3631 = vmatpush1.msra.mxu0 0.0
    %3632 = vmatprep.mubr.f32.mxu0 0.0
    %3633 = vmatmul.mubr.f32.gmra.mrb[0].mxu0 %v2360
    %v3634 = vpop.f32.mrb[0].mxu0
    %v3635 = vadd.f32 %v2778, %v3634
    %v3636 = vpop.f32.mrb[0].mxu0
    %v3637 = vadd.f32 %v2782, %v3636
    %3638 = vdwg.mxu0
    %3639 = vmatprep.subr.mxu0 %v2702
    %3640 = vmatpush1.msra.mxu0 %v2701
    %3641 = vmatprep.subr.mxu0 %v2706
    %3642 = vmatpush1.msra.mxu0 %v2705
    %3643 = vmatprep.subr.mxu0 %v2710
    %3644 = vmatpush1.msra.mxu0 %v2709
    %3645 = vmatprep.subr.mxu0 %v2714
    %3646 = vmatpush1.msra.mxu0 %v2713
    %3647 = vmatprep.subr.mxu0 %v2718
    %3648 = vmatpush1.msra.mxu0 %v2717
    %3649 = vmatprep.subr.mxu0 %v2722
    %3650 = vmatpush1.msra.mxu0 %v2721
    %3651 = vmatprep.subr.mxu0 %v2726
    %3652 = vmatpush1.msra.mxu0 %v2725
    %3653 = vmatprep.subr.mxu0 %v2730
    %3654 = vmatpush1.msra.mxu0 %v2729
    %3655 = vmatprep.subr.mxu0 %v2734
    %3656 = vmatpush1.msra.mxu0 %v2733
    %3657 = vmatprep.subr.mxu0 %v2738
    %3658 = vmatpush1.msra.mxu0 %v2737
    %3659 = vmatprep.subr.mxu0 %v2742
    %3660 = vmatpush1.msra.mxu0 %v2741
    %3661 = vmatprep.subr.mxu0 %v2746
    %3662 = vmatpush1.msra.mxu0 %v2745
    %3663 = vmatprep.subr.mxu0 %v2750
    %3664 = vmatpush1.msra.mxu0 %v2749
    %3665 = vmatprep.subr.mxu0 %v2754
    %3666 = vmatpush1.msra.mxu0 %v2753
    %3667 = vmatprep.subr.mxu0 %v2758
    %3668 = vmatpush1.msra.mxu0 %v2757
    %3669 = vmatprep.subr.mxu0 %v2762
    %3670 = vmatpush1.msra.mxu0 %v2761
    %3671 = vmatprep.subr.mxu0 0.0
    %3672 = vmatpush1.msra.mxu0 0.0
    %3673 = vmatprep.subr.mxu0 0.0
    %3674 = vmatpush1.msra.mxu0 0.0
    %3675 = vmatprep.subr.mxu0 0.0
    %3676 = vmatpush1.msra.mxu0 0.0
    %3677 = vmatprep.subr.mxu0 0.0
    %3678 = vmatpush1.msra.mxu0 0.0
    %3679 = vmatprep.subr.mxu0 0.0
    %3680 = vmatpush1.msra.mxu0 0.0
    %3681 = vmatprep.subr.mxu0 0.0
    %3682 = vmatpush1.msra.mxu0 0.0
    %3683 = vmatprep.subr.mxu0 0.0
    %3684 = vmatpush1.msra.mxu0 0.0
    %3685 = vmatprep.subr.mxu0 0.0
    %3686 = vmatpush1.msra.mxu0 0.0
    %3687 = vmatprep.subr.mxu0 0.0
    %3688 = vmatpush1.msra.mxu0 0.0
    %3689 = vmatprep.subr.mxu0 0.0
    %3690 = vmatpush1.msra.mxu0 0.0
    %3691 = vmatprep.subr.mxu0 0.0
    %3692 = vmatpush1.msra.mxu0 0.0
    %3693 = vmatprep.subr.mxu0 0.0
    %3694 = vmatpush1.msra.mxu0 0.0
    %3695 = vmatprep.subr.mxu0 0.0
    %3696 = vmatpush1.msra.mxu0 0.0
    %3697 = vmatprep.subr.mxu0 0.0
    %3698 = vmatpush1.msra.mxu0 0.0
    %3699 = vmatprep.subr.mxu0 0.0
    %3700 = vmatpush1.msra.mxu0 0.0
    %3701 = vmatprep.subr.mxu0 0.0
    %3702 = vmatpush1.msra.mxu0 0.0
    %3703 = vmatprep.mubr.f32.mxu0 0.0
    %3704 = vmatmul.mubr.f32.gmra.mrb[0].mxu0 %v2530
    %v3705 = vpop.f32.mrb[0].mxu0
    %v3706 = vadd.f32 %v2770, %v3705
    %v3707 = vpop.f32.mrb[0].mxu0
    %v3708 = vadd.f32 %v2774, %v3707
    %3709 = vdwg.mxu0
    %3710 = vmatprep.subr.mxu0 %v2704
    %3711 = vmatpush1.msra.mxu0 %v2703
    %3712 = vmatprep.subr.mxu0 %v2708
    %3713 = vmatpush1.msra.mxu0 %v2707
    %3714 = vmatprep.subr.mxu0 %v2712
    %3715 = vmatpush1.msra.mxu0 %v2711
    %3716 = vmatprep.subr.mxu0 %v2716
    %3717 = vmatpush1.msra.mxu0 %v2715
    %3718 = vmatprep.subr.mxu0 %v2720
    %3719 = vmatpush1.msra.mxu0 %v2719
    %3720 = vmatprep.subr.mxu0 %v2724
    %3721 = vmatpush1.msra.mxu0 %v2723
    %3722 = vmatprep.subr.mxu0 %v2728
    %3723 = vmatpush1.msra.mxu0 %v2727
    %3724 = vmatprep.subr.mxu0 %v2732
    %3725 = vmatpush1.msra.mxu0 %v2731
    %3726 = vmatprep.subr.mxu0 %v2736
    %3727 = vmatpush1.msra.mxu0 %v2735
    %3728 = vmatprep.subr.mxu0 %v2740
    %3729 = vmatpush1.msra.mxu0 %v2739
    %3730 = vmatprep.subr.mxu0 %v2744
    %3731 = vmatpush1.msra.mxu0 %v2743
    %3732 = vmatprep.subr.mxu0 %v2748
    %3733 = vmatpush1.msra.mxu0 %v2747
    %3734 = vmatprep.subr.mxu0 %v2752
    %3735 = vmatpush1.msra.mxu0 %v2751
    %3736 = vmatprep.subr.mxu0 %v2756
    %3737 = vmatpush1.msra.mxu0 %v2755
    %3738 = vmatprep.subr.mxu0 %v2760
    %3739 = vmatpush1.msra.mxu0 %v2759
    %3740 = vmatprep.subr.mxu0 %v2764
    %3741 = vmatpush1.msra.mxu0 %v2763
    %3742 = vmatprep.subr.mxu0 0.0
    %3743 = vmatpush1.msra.mxu0 0.0
    %3744 = vmatprep.subr.mxu0 0.0
    %3745 = vmatpush1.msra.mxu0 0.0
    %3746 = vmatprep.subr.mxu0 0.0
    %3747 = vmatpush1.msra.mxu0 0.0
    %3748 = vmatprep.subr.mxu0 0.0
    %3749 = vmatpush1.msra.mxu0 0.0
    %3750 = vmatprep.subr.mxu0 0.0
    %3751 = vmatpush1.msra.mxu0 0.0
    %3752 = vmatprep.subr.mxu0 0.0
    %3753 = vmatpush1.msra.mxu0 0.0
    %3754 = vmatprep.subr.mxu0 0.0
    %3755 = vmatpush1.msra.mxu0 0.0
    %3756 = vmatprep.subr.mxu0 0.0
    %3757 = vmatpush1.msra.mxu0 0.0
    %3758 = vmatprep.subr.mxu0 0.0
    %3759 = vmatpush1.msra.mxu0 0.0
    %3760 = vmatprep.subr.mxu0 0.0
    %3761 = vmatpush1.msra.mxu0 0.0
    %3762 = vmatprep.subr.mxu0 0.0
    %3763 = vmatpush1.msra.mxu0 0.0
    %3764 = vmatprep.subr.mxu0 0.0
    %3765 = vmatpush1.msra.mxu0 0.0
    %3766 = vmatprep.subr.mxu0 0.0
    %3767 = vmatpush1.msra.mxu0 0.0
    %3768 = vmatprep.subr.mxu0 0.0
    %3769 = vmatpush1.msra.mxu0 0.0
    %3770 = vmatprep.subr.mxu0 0.0
    %3771 = vmatpush1.msra.mxu0 0.0
    %3772 = vmatprep.subr.mxu0 0.0
    %3773 = vmatpush1.msra.mxu0 0.0
    %3774 = vmatprep.mubr.f32.mxu0 0.0
    %3775 = vmatmul.mubr.f32.gmra.mrb[0].mxu0 %v2530
    %v3776 = vpop.f32.mrb[0].mxu0
    %v3777 = vadd.f32 %v2778, %v3776
    %v3778 = vpop.f32.mrb[0].mxu0
    %v3779 = vadd.f32 %v2782, %v3778
    %3780 = vdwg.mxu0
    %3781 = vmatprep.subr.mxu0 %v2702
    %3782 = vmatpush1.msra.mxu0 %v2701
    %3783 = vmatprep.subr.mxu0 %v2706
    %3784 = vmatpush1.msra.mxu0 %v2705
    %3785 = vmatprep.subr.mxu0 %v2710
    %3786 = vmatpush1.msra.mxu0 %v2709
    %3787 = vmatprep.subr.mxu0 %v2714
    %3788 = vmatpush1.msra.mxu0 %v2713
    %3789 = vmatprep.subr.mxu0 %v2718
    %3790 = vmatpush1.msra.mxu0 %v2717
    %3791 = vmatprep.subr.mxu0 %v2722
    %3792 = vmatpush1.msra.mxu0 %v2721
    %3793 = vmatprep.subr.mxu0 %v2726
    %3794 = vmatpush1.msra.mxu0 %v2725
    %3795 = vmatprep.subr.mxu0 %v2730
    %3796 = vmatpush1.msra.mxu0 %v2729
    %3797 = vmatprep.subr.mxu0 %v2734
    %3798 = vmatpush1.msra.mxu0 %v2733
    %3799 = vmatprep.subr.mxu0 %v2738
    %3800 = vmatpush1.msra.mxu0 %v2737
    %3801 = vmatprep.subr.mxu0 %v2742
    %3802 = vmatpush1.msra.mxu0 %v2741
    %3803 = vmatprep.subr.mxu0 %v2746
    %3804 = vmatpush1.msra.mxu0 %v2745
    %3805 = vmatprep.subr.mxu0 %v2750
    %3806 = vmatpush1.msra.mxu0 %v2749
    %3807 = vmatprep.subr.mxu0 %v2754
    %3808 = vmatpush1.msra.mxu0 %v2753
    %3809 = vmatprep.subr.mxu0 %v2758
    %3810 = vmatpush1.msra.mxu0 %v2757
    %3811 = vmatprep.subr.mxu0 %v2762
    %3812 = vmatpush1.msra.mxu0 %v2761
    %3813 = vmatprep.subr.mxu0 0.0
    %3814 = vmatpush1.msra.mxu0 0.0
    %3815 = vmatprep.subr.mxu0 0.0
    %3816 = vmatpush1.msra.mxu0 0.0
    %3817 = vmatprep.subr.mxu0 0.0
    %3818 = vmatpush1.msra.mxu0 0.0
    %3819 = vmatprep.subr.mxu0 0.0
    %3820 = vmatpush1.msra.mxu0 0.0
    %3821 = vmatprep.subr.mxu0 0.0
    %3822 = vmatpush1.msra.mxu0 0.0
    %3823 = vmatprep.subr.mxu0 0.0
    %3824 = vmatpush1.msra.mxu0 0.0
    %3825 = vmatprep.subr.mxu0 0.0
    %3826 = vmatpush1.msra.mxu0 0.0
    %3827 = vmatprep.subr.mxu0 0.0
    %3828 = vmatpush1.msra.mxu0 0.0
    %3829 = vmatprep.subr.mxu0 0.0
    %3830 = vmatpush1.msra.mxu0 0.0
    %3831 = vmatprep.subr.mxu0 0.0
    %3832 = vmatpush1.msra.mxu0 0.0
    %3833 = vmatprep.subr.mxu0 0.0
    %3834 = vmatpush1.msra.mxu0 0.0
    %3835 = vmatprep.subr.mxu0 0.0
    %3836 = vmatpush1.msra.mxu0 0.0
    %3837 = vmatprep.subr.mxu0 0.0
    %3838 = vmatpush1.msra.mxu0 0.0
    %3839 = vmatprep.subr.mxu0 0.0
    %3840 = vmatpush1.msra.mxu0 0.0
    %3841 = vmatprep.subr.mxu0 0.0
    %3842 = vmatpush1.msra.mxu0 0.0
    %3843 = vmatprep.subr.mxu0 0.0
    %3844 = vmatpush1.msra.mxu0 0.0
    %3845 = vmatprep.mubr.f32.mxu0 0.0
    %3846 = vmatmul.mubr.f32.gmra.mrb[0].mxu0 %v2700
    %v3847 = vpop.f32.mrb[0].mxu0
    %v3848 = vadd.f32 %v2770, %v3847
    %v3849 = vpop.f32.mrb[0].mxu0
    %v3850 = vadd.f32 %v2774, %v3849
    %3851 = vdwg.mxu0
    %3852 = vmatprep.subr.mxu0 %v2704
    %3853 = vmatpush1.msra.mxu0 %v2703
    %3854 = vmatprep.subr.mxu0 %v2708
    %3855 = vmatpush1.msra.mxu0 %v2707
    %3856 = vmatprep.subr.mxu0 %v2712
    %3857 = vmatpush1.msra.mxu0 %v2711
    %3858 = vmatprep.subr.mxu0 %v2716
    %3859 = vmatpush1.msra.mxu0 %v2715
    %3860 = vmatprep.subr.mxu0 %v2720
    %3861 = vmatpush1.msra.mxu0 %v2719
    %3862 = vmatprep.subr.mxu0 %v2724
    %3863 = vmatpush1.msra.mxu0 %v2723
    %3864 = vmatprep.subr.mxu0 %v2728
    %3865 = vmatpush1.msra.mxu0 %v2727
    %3866 = vmatprep.subr.mxu0 %v2732
    %3867 = vmatpush1.msra.mxu0 %v2731
    %3868 = vmatprep.subr.mxu0 %v2736
    %3869 = vmatpush1.msra.mxu0 %v2735
    %3870 = vmatprep.subr.mxu0 %v2740
    %3871 = vmatpush1.msra.mxu0 %v2739
    %3872 = vmatprep.subr.mxu0 %v2744
    %3873 = vmatpush1.msra.mxu0 %v2743
    %3874 = vmatprep.subr.mxu0 %v2748
    %3875 = vmatpush1.msra.mxu0 %v2747
    %3876 = vmatprep.subr.mxu0 %v2752
    %3877 = vmatpush1.msra.mxu0 %v2751
    %3878 = vmatprep.subr.mxu0 %v2756
    %3879 = vmatpush1.msra.mxu0 %v2755
    %3880 = vmatprep.subr.mxu0 %v2760
    %3881 = vmatpush1.msra.mxu0 %v2759
    %3882 = vmatprep.subr.mxu0 %v2764
    %3883 = vmatpush1.msra.mxu0 %v2763
    %3884 = vmatprep.subr.mxu0 0.0
    %3885 = vmatpush1.msra.mxu0 0.0
    %3886 = vmatprep.subr.mxu0 0.0
    %3887 = vmatpush1.msra.mxu0 0.0
    %3888 = vmatprep.subr.mxu0 0.0
    %3889 = vmatpush1.msra.mxu0 0.0
    %3890 = vmatprep.subr.mxu0 0.0
    %3891 = vmatpush1.msra.mxu0 0.0
    %3892 = vmatprep.subr.mxu0 0.0
    %3893 = vmatpush1.msra.mxu0 0.0
    %3894 = vmatprep.subr.mxu0 0.0
    %3895 = vmatpush1.msra.mxu0 0.0
    %3896 = vmatprep.subr.mxu0 0.0
    %3897 = vmatpush1.msra.mxu0 0.0
    %3898 = vmatprep.subr.mxu0 0.0
    %3899 = vmatpush1.msra.mxu0 0.0
    %3900 = vmatprep.subr.mxu0 0.0
    %3901 = vmatpush1.msra.mxu0 0.0
    %3902 = vmatprep.subr.mxu0 0.0
    %3903 = vmatpush1.msra.mxu0 0.0
    %3904 = vmatprep.subr.mxu0 0.0
    %3905 = vmatpush1.msra.mxu0 0.0
    %3906 = vmatprep.subr.mxu0 0.0
    %3907 = vmatpush1.msra.mxu0 0.0
    %3908 = vmatprep.subr.mxu0 0.0
    %3909 = vmatpush1.msra.mxu0 0.0
    %3910 = vmatprep.subr.mxu0 0.0
    %3911 = vmatpush1.msra.mxu0 0.0
    %3912 = vmatprep.subr.mxu0 0.0
    %3913 = vmatpush1.msra.mxu0 0.0
    %3914 = vmatprep.subr.mxu0 0.0
    %3915 = vmatpush1.msra.mxu0 0.0
    %3916 = vmatprep.mubr.f32.mxu0 0.0
    %3917 = vmatmul.mubr.f32.gmra.mrb[0].mxu0 %v2700
    %v3918 = vpop.f32.mrb[0].mxu0
    %v3919 = vadd.f32 %v2778, %v3918
    %v3920 = vpop.f32.mrb[0].mxu0
    %v3921 = vadd.f32 %v2782, %v3920
    %3922 = vdwg.mxu0
    %v3923 = vld [vmem:[#allocation7] sm:$0xff]
    %v3924 = vld [vmem:[#allocation7 + $0x8] sm:$0xff]
    %v3925 = vld [vmem:[#allocation7 + $0x10] sm:$0xff]
    %v3926 = vld [vmem:[#allocation7 + $0x18] sm:$0xff]
    %v3927 = vld [vmem:[#allocation7 + $0x20] sm:$0xff]
    %v3928 = vld [vmem:[#allocation7 + $0x28] sm:$0xff]
    %v3929 = vld [vmem:[#allocation7 + $0x30] sm:$0xff]
    %v3930 = vld [vmem:[#allocation7 + $0x38] sm:$0xff]
    %v3931 = vld [vmem:[#allocation7 + $0x40] sm:$0xff]
    %v3932 = vld [vmem:[#allocation7 + $0x48] sm:$0xff]
    %v3933 = vld [vmem:[#allocation7 + $0x50] sm:$0xff]
    %v3934 = vld [vmem:[#allocation7 + $0x58] sm:$0xff]
    %v3935 = vld [vmem:[#allocation7 + $0x60] sm:$0xff]
    %v3936 = vld [vmem:[#allocation7 + $0x68] sm:$0xff]
    %v3937 = vld [vmem:[#allocation7 + $0x70] sm:$0xff]
    %v3938 = vld [vmem:[#allocation7 + $0x78] sm:$0xff]
    %v3939 = vld [vmem:[#allocation7 + $0x80] sm:$0xff]
    %v3940 = vld [vmem:[#allocation7 + $0x88] sm:$0xff]
    %v3941 = vld [vmem:[#allocation7 + $0x90] sm:$0xff]
    %v3942 = vld [vmem:[#allocation7 + $0x98] sm:$0xff]
    %v3943 = vld [vmem:[#allocation7 + $0xa0] sm:$0xff]
    %v3944 = vld [vmem:[#allocation7 + $0xa8] sm:$0xff]
    %v3945 = vld [vmem:[#allocation7 + $0xb0] sm:$0xff]
    %v3946 = vld [vmem:[#allocation7 + $0xb8] sm:$0xff]
    %v3947 = vld [vmem:[#allocation7 + $0xc0] sm:$0xff]
    %v3948 = vld [vmem:[#allocation7 + $0xc8] sm:$0xff]
    %v3949 = vld [vmem:[#allocation7 + $0xd0] sm:$0xff]
    %v3950 = vld [vmem:[#allocation7 + $0xd8] sm:$0xff]
    %v3951 = vld [vmem:[#allocation7 + $0xe0] sm:$0xff]
    %v3952 = vld [vmem:[#allocation7 + $0xe8] sm:$0xff]
    %v3953 = vld [vmem:[#allocation7 + $0xf0] sm:$0xff]
    %v3954 = vld [vmem:[#allocation7 + $0xf8] sm:$0xff]
    %v3955 = vld [vmem:[#allocation7 + $0x100] sm:$0xff]
    %v3956 = vld [vmem:[#allocation7 + $0x108] sm:$0xff]
    %v3957 = vld [vmem:[#allocation7 + $0x110] sm:$0xff]
    %v3958 = vld [vmem:[#allocation7 + $0x118] sm:$0xff]
    %v3959 = vld [vmem:[#allocation7 + $0x120] sm:$0xff]
    %v3960 = vld [vmem:[#allocation7 + $0x128] sm:$0xff]
    %v3961 = vld [vmem:[#allocation7 + $0x130] sm:$0xff]
    %v3962 = vld [vmem:[#allocation7 + $0x138] sm:$0xff]
    %v3963 = vld [vmem:[#allocation7 + $0x140] sm:$0xff]
    %v3964 = vld [vmem:[#allocation7 + $0x148] sm:$0xff]
    %v3965 = vld [vmem:[#allocation7 + $0x150] sm:$0xff]
    %v3966 = vld [vmem:[#allocation7 + $0x158] sm:$0xff]
    %v3967 = vld [vmem:[#allocation7 + $0x160] sm:$0xff]
    %v3968 = vld [vmem:[#allocation7 + $0x168] sm:$0xff]
    %v3969 = vld [vmem:[#allocation7 + $0x170] sm:$0xff]
    %v3970 = vld [vmem:[#allocation7 + $0x178] sm:$0xff]
    %v3971 = vld [vmem:[#allocation7 + $0x180] sm:$0xff]
    %v3972 = vld [vmem:[#allocation7 + $0x188] sm:$0xff]
    %v3973 = vld [vmem:[#allocation7 + $0x190] sm:$0xff]
    %v3974 = vld [vmem:[#allocation7 + $0x198] sm:$0xff]
    %v3975 = vld [vmem:[#allocation7 + $0x1a0] sm:$0xff]
    %v3976 = vld [vmem:[#allocation7 + $0x1a8] sm:$0xff]
    %v3977 = vld [vmem:[#allocation7 + $0x1b0] sm:$0xff]
    %v3978 = vld [vmem:[#allocation7 + $0x1b8] sm:$0xff]
    %v3979 = vld [vmem:[#allocation7 + $0x1c0] sm:$0xff]
    %v3980 = vld [vmem:[#allocation7 + $0x1c8] sm:$0xff]
    %v3981 = vld [vmem:[#allocation7 + $0x1d0] sm:$0xff]
    %v3982 = vld [vmem:[#allocation7 + $0x1d8] sm:$0xff]
    %v3983 = vld [vmem:[#allocation7 + $0x1e0] sm:$0xff]
    %v3984 = vld [vmem:[#allocation7 + $0x1e8] sm:$0xff]
    %v3985 = vld [vmem:[#allocation7 + $0x1f0] sm:$0xff]
    %v3986 = vld [vmem:[#allocation7 + $0x1f8] sm:$0xff]
    %3987 = vmatprep.subr.mxu0 %v3924
    %3988 = vmatpush1.msra.mxu0 %v3923
    %3989 = vmatprep.subr.mxu0 %v3928
    %3990 = vmatpush1.msra.mxu0 %v3927
    %3991 = vmatprep.subr.mxu0 %v3932
    %3992 = vmatpush1.msra.mxu0 %v3931
    %3993 = vmatprep.subr.mxu0 %v3936
    %3994 = vmatpush1.msra.mxu0 %v3935
    %3995 = vmatprep.subr.mxu0 %v3940
    %3996 = vmatpush1.msra.mxu0 %v3939
    %3997 = vmatprep.subr.mxu0 %v3944
    %3998 = vmatpush1.msra.mxu0 %v3943
    %3999 = vmatprep.subr.mxu0 %v3948
    %4000 = vmatpush1.msra.mxu0 %v3947
    %4001 = vmatprep.subr.mxu0 %v3952
    %4002 = vmatpush1.msra.mxu0 %v3951
    %4003 = vmatprep.subr.mxu0 %v3956
    %4004 = vmatpush1.msra.mxu0 %v3955
    %4005 = vmatprep.subr.mxu0 %v3960
    %4006 = vmatpush1.msra.mxu0 %v3959
    %4007 = vmatprep.subr.mxu0 %v3964
    %4008 = vmatpush1.msra.mxu0 %v3963
    %4009 = vmatprep.subr.mxu0 %v3968
    %4010 = vmatpush1.msra.mxu0 %v3967
    %4011 = vmatprep.subr.mxu0 %v3972
    %4012 = vmatpush1.msra.mxu0 %v3971
    %4013 = vmatprep.subr.mxu0 %v3976
    %4014 = vmatpush1.msra.mxu0 %v3975
    %4015 = vmatprep.subr.mxu0 %v3980
    %4016 = vmatpush1.msra.mxu0 %v3979
    %4017 = vmatprep.subr.mxu0 %v3984
    %4018 = vmatpush1.msra.mxu0 %v3983
    %4019 = vmatprep.subr.mxu0 0.0
    %4020 = vmatpush1.msra.mxu0 0.0
    %4021 = vmatprep.subr.mxu0 0.0
    %4022 = vmatpush1.msra.mxu0 0.0
    %4023 = vmatprep.subr.mxu0 0.0
    %4024 = vmatpush1.msra.mxu0 0.0
    %4025 = vmatprep.subr.mxu0 0.0
    %4026 = vmatpush1.msra.mxu0 0.0
    %4027 = vmatprep.subr.mxu0 0.0
    %4028 = vmatpush1.msra.mxu0 0.0
    %4029 = vmatprep.subr.mxu0 0.0
    %4030 = vmatpush1.msra.mxu0 0.0
    %4031 = vmatprep.subr.mxu0 0.0
    %4032 = vmatpush1.msra.mxu0 0.0
    %4033 = vmatprep.subr.mxu0 0.0
    %4034 = vmatpush1.msra.mxu0 0.0
    %4035 = vmatprep.subr.mxu0 0.0
    %4036 = vmatpush1.msra.mxu0 0.0
    %4037 = vmatprep.subr.mxu0 0.0
    %4038 = vmatpush1.msra.mxu0 0.0
    %4039 = vmatprep.subr.mxu0 0.0
    %4040 = vmatpush1.msra.mxu0 0.0
    %4041 = vmatprep.subr.mxu0 0.0
    %4042 = vmatpush1.msra.mxu0 0.0
    %4043 = vmatprep.subr.mxu0 0.0
    %4044 = vmatpush1.msra.mxu0 0.0
    %4045 = vmatprep.subr.mxu0 0.0
    %4046 = vmatpush1.msra.mxu0 0.0
    %4047 = vmatprep.subr.mxu0 0.0
    %4048 = vmatpush1.msra.mxu0 0.0
    %4049 = vmatprep.subr.mxu0 0.0
    %4050 = vmatpush1.msra.mxu0 0.0
    %4051 = vmatprep.mubr.f32.mxu0 0.0
    %4052 = vmatmul.mubr.f32.gmra.mrb[0].mxu0 0.0
    %v4053 = vpop.f32.mrb[0].mxu0
    %v4054 = vadd.f32 0.0, %v4053
    %v4055 = vpop.f32.mrb[0].mxu0
    %v4056 = vadd.f32 0.0, %v4055
    %4057 = vdwg.mxu0
    %4058 = vmatprep.subr.mxu0 %v3926
    %4059 = vmatpush1.msra.mxu0 %v3925
    %4060 = vmatprep.subr.mxu0 %v3930
    %4061 = vmatpush1.msra.mxu0 %v3929
    %4062 = vmatprep.subr.mxu0 %v3934
    %4063 = vmatpush1.msra.mxu0 %v3933
    %4064 = vmatprep.subr.mxu0 %v3938
    %4065 = vmatpush1.msra.mxu0 %v3937
    %4066 = vmatprep.subr.mxu0 %v3942
    %4067 = vmatpush1.msra.mxu0 %v3941
    %4068 = vmatprep.subr.mxu0 %v3946
    %4069 = vmatpush1.msra.mxu0 %v3945
    %4070 = vmatprep.subr.mxu0 %v3950
    %4071 = vmatpush1.msra.mxu0 %v3949
    %4072 = vmatprep.subr.mxu0 %v3954
    %4073 = vmatpush1.msra.mxu0 %v3953
    %4074 = vmatprep.subr.mxu0 %v3958
    %4075 = vmatpush1.msra.mxu0 %v3957
    %4076 = vmatprep.subr.mxu0 %v3962
    %4077 = vmatpush1.msra.mxu0 %v3961
    %4078 = vmatprep.subr.mxu0 %v3966
    %4079 = vmatpush1.msra.mxu0 %v3965
    %4080 = vmatprep.subr.mxu0 %v3970
    %4081 = vmatpush1.msra.mxu0 %v3969
    %4082 = vmatprep.subr.mxu0 %v3974
    %4083 = vmatpush1.msra.mxu0 %v3973
    %4084 = vmatprep.subr.mxu0 %v3978
    %4085 = vmatpush1.msra.mxu0 %v3977
    %4086 = vmatprep.subr.mxu0 %v3982
    %4087 = vmatpush1.msra.mxu0 %v3981
    %4088 = vmatprep.subr.mxu0 %v3986
    %4089 = vmatpush1.msra.mxu0 %v3985
    %4090 = vmatprep.subr.mxu0 0.0
    %4091 = vmatpush1.msra.mxu0 0.0
    %4092 = vmatprep.subr.mxu0 0.0
    %4093 = vmatpush1.msra.mxu0 0.0
    %4094 = vmatprep.subr.mxu0 0.0
    %4095 = vmatpush1.msra.mxu0 0.0
    %4096 = vmatprep.subr.mxu0 0.0
    %4097 = vmatpush1.msra.mxu0 0.0
    %4098 = vmatprep.subr.mxu0 0.0
    %4099 = vmatpush1.msra.mxu0 0.0
    %4100 = vmatprep.subr.mxu0 0.0
    %4101 = vmatpush1.msra.mxu0 0.0
    %4102 = vmatprep.subr.mxu0 0.0
    %4103 = vmatpush1.msra.mxu0 0.0
    %4104 = vmatprep.subr.mxu0 0.0
    %4105 = vmatpush1.msra.mxu0 0.0
    %4106 = vmatprep.subr.mxu0 0.0
    %4107 = vmatpush1.msra.mxu0 0.0
    %4108 = vmatprep.subr.mxu0 0.0
    %4109 = vmatpush1.msra.mxu0 0.0
    %4110 = vmatprep.subr.mxu0 0.0
    %4111 = vmatpush1.msra.mxu0 0.0
    %4112 = vmatprep.subr.mxu0 0.0
    %4113 = vmatpush1.msra.mxu0 0.0
    %4114 = vmatprep.subr.mxu0 0.0
    %4115 = vmatpush1.msra.mxu0 0.0
    %4116 = vmatprep.subr.mxu0 0.0
    %4117 = vmatpush1.msra.mxu0 0.0
    %4118 = vmatprep.subr.mxu0 0.0
    %4119 = vmatpush1.msra.mxu0 0.0
    %4120 = vmatprep.subr.mxu0 0.0
    %4121 = vmatpush1.msra.mxu0 0.0
    %4122 = vmatprep.mubr.f32.mxu0 0.0
    %4123 = vmatmul.mubr.f32.gmra.mrb[0].mxu0 0.0
    %v4124 = vpop.f32.mrb[0].mxu0
    %v4125 = vadd.f32 0.0, %v4124
    %v4126 = vpop.f32.mrb[0].mxu0
    %v4127 = vadd.f32 0.0, %v4126
    %4128 = vdwg.mxu0
    %v4129 = vadd.f32 %v2854, %v4054
    %v4130 = vadd.f32 %v2856, %v4056
    %v4131 = vadd.f32 %v2925, %v4125
    %v4132 = vadd.f32 %v2927, %v4127
    %v4133 = vxor.u32 %v4129, 2147483648
    %v4134 = vmul.f32 %v4133, 1.442695
    %v4135 = vpow.pop %v4134
    %v4136 = vadd.f32 %v4135, 1.0
    %v4137 = vrcp.pop %v4136
    %v4138 = vmul.f32 1.0, %v4137
    %v4139 = vxor.u32 %v4130, 2147483648
    %v4140 = vmul.f32 %v4139, 1.442695
    %v4141 = vpow.pop %v4140
    %v4142 = vadd.f32 %v4141, 1.0
    %v4143 = vrcp.pop %v4142
    %v4144 = vmul.f32 1.0, %v4143
    %v4145 = vtanh.pop %v4131
    %v4146 = vxor.u32 %v4132, 2147483648
    %v4147 = vmul.f32 %v4146, 1.442695
    %v4148 = vpow.pop %v4147
    %v4149 = vadd.f32 %v4148, 1.0
    %v4150 = vrcp.pop %v4149
    %v4151 = vmul.f32 1.0, %v4150
    %v4152 = vmul.f32 %v4144, 0.0
    %v4153 = vmul.f32 %v4138, %v4145
    %v4154 = vadd.f32 %v4152, %v4153
    %v4155 = vtanh.pop %v4154
    %v4156 = vmul.f32 %v4151, %v4155
    %4157 = vmatprep.subr.mxu0 %v3924
    %4158 = vmatpush1.msra.mxu0 %v3923
    %4159 = vmatprep.subr.mxu0 %v3928
    %4160 = vmatpush1.msra.mxu0 %v3927
    %4161 = vmatprep.subr.mxu0 %v3932
    %4162 = vmatpush1.msra.mxu0 %v3931
    %4163 = vmatprep.subr.mxu0 %v3936
    %4164 = vmatpush1.msra.mxu0 %v3935
    %4165 = vmatprep.subr.mxu0 %v3940
    %4166 = vmatpush1.msra.mxu0 %v3939
    %4167 = vmatprep.subr.mxu0 %v3944
    %4168 = vmatpush1.msra.mxu0 %v3943
    %4169 = vmatprep.subr.mxu0 %v3948
    %4170 = vmatpush1.msra.mxu0 %v3947
    %4171 = vmatprep.subr.mxu0 %v3952
    %4172 = vmatpush1.msra.mxu0 %v3951
    %4173 = vmatprep.subr.mxu0 %v3956
    %4174 = vmatpush1.msra.mxu0 %v3955
    %4175 = vmatprep.subr.mxu0 %v3960
    %4176 = vmatpush1.msra.mxu0 %v3959
    %4177 = vmatprep.subr.mxu0 %v3964
    %4178 = vmatpush1.msra.mxu0 %v3963
    %4179 = vmatprep.subr.mxu0 %v3968
    %4180 = vmatpush1.msra.mxu0 %v3967
    %4181 = vmatprep.subr.mxu0 %v3972
    %4182 = vmatpush1.msra.mxu0 %v3971
    %4183 = vmatprep.subr.mxu0 %v3976
    %4184 = vmatpush1.msra.mxu0 %v3975
    %4185 = vmatprep.subr.mxu0 %v3980
    %4186 = vmatpush1.msra.mxu0 %v3979
    %4187 = vmatprep.subr.mxu0 %v3984
    %4188 = vmatpush1.msra.mxu0 %v3983
    %4189 = vmatprep.subr.mxu0 0.0
    %4190 = vmatpush1.msra.mxu0 0.0
    %4191 = vmatprep.subr.mxu0 0.0
    %4192 = vmatpush1.msra.mxu0 0.0
    %4193 = vmatprep.subr.mxu0 0.0
    %4194 = vmatpush1.msra.mxu0 0.0
    %4195 = vmatprep.subr.mxu0 0.0
    %4196 = vmatpush1.msra.mxu0 0.0
    %4197 = vmatprep.subr.mxu0 0.0
    %4198 = vmatpush1.msra.mxu0 0.0
    %4199 = vmatprep.subr.mxu0 0.0
    %4200 = vmatpush1.msra.mxu0 0.0
    %4201 = vmatprep.subr.mxu0 0.0
    %4202 = vmatpush1.msra.mxu0 0.0
    %4203 = vmatprep.subr.mxu0 0.0
    %4204 = vmatpush1.msra.mxu0 0.0
    %4205 = vmatprep.subr.mxu0 0.0
    %4206 = vmatpush1.msra.mxu0 0.0
    %4207 = vmatprep.subr.mxu0 0.0
    %4208 = vmatpush1.msra.mxu0 0.0
    %4209 = vmatprep.subr.mxu0 0.0
    %4210 = vmatpush1.msra.mxu0 0.0
    %4211 = vmatprep.subr.mxu0 0.0
    %4212 = vmatpush1.msra.mxu0 0.0
    %4213 = vmatprep.subr.mxu0 0.0
    %4214 = vmatpush1.msra.mxu0 0.0
    %4215 = vmatprep.subr.mxu0 0.0
    %4216 = vmatpush1.msra.mxu0 0.0
    %4217 = vmatprep.subr.mxu0 0.0
    %4218 = vmatpush1.msra.mxu0 0.0
    %4219 = vmatprep.subr.mxu0 0.0
    %4220 = vmatpush1.msra.mxu0 0.0
    %4221 = vmatprep.mubr.f32.mxu0 0.0
    %4222 = vmatmul.mubr.f32.gmra.mrb[0].mxu0 %v4156
    %v4223 = vpop.f32.mrb[0].mxu0
    %v4224 = vadd.f32 0.0, %v4223
    %v4225 = vpop.f32.mrb[0].mxu0
    %v4226 = vadd.f32 0.0, %v4225
    %4227 = vdwg.mxu0
    %4228 = vmatprep.subr.mxu0 %v3926
    %4229 = vmatpush1.msra.mxu0 %v3925
    %4230 = vmatprep.subr.mxu0 %v3930
    %4231 = vmatpush1.msra.mxu0 %v3929
    %4232 = vmatprep.subr.mxu0 %v3934
    %4233 = vmatpush1.msra.mxu0 %v3933
    %4234 = vmatprep.subr.mxu0 %v3938
    %4235 = vmatpush1.msra.mxu0 %v3937
    %4236 = vmatprep.subr.mxu0 %v3942
    %4237 = vmatpush1.msra.mxu0 %v3941
    %4238 = vmatprep.subr.mxu0 %v3946
    %4239 = vmatpush1.msra.mxu0 %v3945
    %4240 = vmatprep.subr.mxu0 %v3950
    %4241 = vmatpush1.msra.mxu0 %v3949
    %4242 = vmatprep.subr.mxu0 %v3954
    %4243 = vmatpush1.msra.mxu0 %v3953
    %4244 = vmatprep.subr.mxu0 %v3958
    %4245 = vmatpush1.msra.mxu0 %v3957
    %4246 = vmatprep.subr.mxu0 %v3962
    %4247 = vmatpush1.msra.mxu0 %v3961
    %4248 = vmatprep.subr.mxu0 %v3966
    %4249 = vmatpush1.msra.mxu0 %v3965
    %4250 = vmatprep.subr.mxu0 %v3970
    %4251 = vmatpush1.msra.mxu0 %v3969
    %4252 = vmatprep.subr.mxu0 %v3974
    %4253 = vmatpush1.msra.mxu0 %v3973
    %4254 = vmatprep.subr.mxu0 %v3978
    %4255 = vmatpush1.msra.mxu0 %v3977
    %4256 = vmatprep.subr.mxu0 %v3982
    %4257 = vmatpush1.msra.mxu0 %v3981
    %4258 = vmatprep.subr.mxu0 %v3986
    %4259 = vmatpush1.msra.mxu0 %v3985
    %4260 = vmatprep.subr.mxu0 0.0
    %4261 = vmatpush1.msra.mxu0 0.0
    %4262 = vmatprep.subr.mxu0 0.0
    %4263 = vmatpush1.msra.mxu0 0.0
    %4264 = vmatprep.subr.mxu0 0.0
    %4265 = vmatpush1.msra.mxu0 0.0
    %4266 = vmatprep.subr.mxu0 0.0
    %4267 = vmatpush1.msra.mxu0 0.0
    %4268 = vmatprep.subr.mxu0 0.0
    %4269 = vmatpush1.msra.mxu0 0.0
    %4270 = vmatprep.subr.mxu0 0.0
    %4271 = vmatpush1.msra.mxu0 0.0
    %4272 = vmatprep.subr.mxu0 0.0
    %4273 = vmatpush1.msra.mxu0 0.0
    %4274 = vmatprep.subr.mxu0 0.0
    %4275 = vmatpush1.msra.mxu0 0.0
    %4276 = vmatprep.subr.mxu0 0.0
    %4277 = vmatpush1.msra.mxu0 0.0
    %4278 = vmatprep.subr.mxu0 0.0
    %4279 = vmatpush1.msra.mxu0 0.0
    %4280 = vmatprep.subr.mxu0 0.0
    %4281 = vmatpush1.msra.mxu0 0.0
    %4282 = vmatprep.subr.mxu0 0.0
    %4283 = vmatpush1.msra.mxu0 0.0
    %4284 = vmatprep.subr.mxu0 0.0
    %4285 = vmatpush1.msra.mxu0 0.0
    %4286 = vmatprep.subr.mxu0 0.0
    %4287 = vmatpush1.msra.mxu0 0.0
    %4288 = vmatprep.subr.mxu0 0.0
    %4289 = vmatpush1.msra.mxu0 0.0
    %4290 = vmatprep.subr.mxu0 0.0
    %4291 = vmatpush1.msra.mxu0 0.0
    %4292 = vmatprep.mubr.f32.mxu0 0.0
    %4293 = vmatmul.mubr.f32.gmra.mrb[0].mxu0 %v4156
    %v4294 = vpop.f32.mrb[0].mxu0
    %v4295 = vadd.f32 0.0, %v4294
    %v4296 = vpop.f32.mrb[0].mxu0
    %v4297 = vadd.f32 0.0, %v4296
    %4298 = vdwg.mxu0
    %v4299 = vadd.f32 %v2996, %v4224
    %v4300 = vadd.f32 %v2998, %v4226
    %v4301 = vadd.f32 %v3067, %v4295
    %v4302 = vadd.f32 %v3069, %v4297
    %v4303 = vxor.u32 %v4299, 2147483648
    %v4304 = vmul.f32 %v4303, 1.442695
    %v4305 = vpow.pop %v4304
    %v4306 = vadd.f32 %v4305, 1.0
    %v4307 = vrcp.pop %v4306
    %v4308 = vmul.f32 1.0, %v4307
    %v4309 = vxor.u32 %v4300, 2147483648
    %v4310 = vmul.f32 %v4309, 1.442695
    %v4311 = vpow.pop %v4310
    %v4312 = vadd.f32 %v4311, 1.0
    %v4313 = vrcp.pop %v4312
    %v4314 = vmul.f32 1.0, %v4313
    %v4315 = vtanh.pop %v4301
    %v4316 = vxor.u32 %v4302, 2147483648
    %v4317 = vmul.f32 %v4316, 1.442695
    %v4318 = vpow.pop %v4317
    %v4319 = vadd.f32 %v4318, 1.0
    %v4320 = vrcp.pop %v4319
    %v4321 = vmul.f32 1.0, %v4320
    %v4322 = vmul.f32 %v4314, %v4154
    %v4323 = vmul.f32 %v4308, %v4315
    %v4324 = vadd.f32 %v4322, %v4323
    %v4325 = vtanh.pop %v4324
    %v4326 = vmul.f32 %v4321, %v4325
    %4327 = vmatprep.subr.mxu0 %v3924
    %4328 = vmatpush1.msra.mxu0 %v3923
    %4329 = vmatprep.subr.mxu0 %v3928
    %4330 = vmatpush1.msra.mxu0 %v3927
    %4331 = vmatprep.subr.mxu0 %v3932
    %4332 = vmatpush1.msra.mxu0 %v3931
    %4333 = vmatprep.subr.mxu0 %v3936
    %4334 = vmatpush1.msra.mxu0 %v3935
    %4335 = vmatprep.subr.mxu0 %v3940
    %4336 = vmatpush1.msra.mxu0 %v3939
    %4337 = vmatprep.subr.mxu0 %v3944
    %4338 = vmatpush1.msra.mxu0 %v3943
    %4339 = vmatprep.subr.mxu0 %v3948
    %4340 = vmatpush1.msra.mxu0 %v3947
    %4341 = vmatprep.subr.mxu0 %v3952
    %4342 = vmatpush1.msra.mxu0 %v3951
    %4343 = vmatprep.subr.mxu0 %v3956
    %4344 = vmatpush1.msra.mxu0 %v3955
    %4345 = vmatprep.subr.mxu0 %v3960
    %4346 = vmatpush1.msra.mxu0 %v3959
    %4347 = vmatprep.subr.mxu0 %v3964
    %4348 = vmatpush1.msra.mxu0 %v3963
    %4349 = vmatprep.subr.mxu0 %v3968
    %4350 = vmatpush1.msra.mxu0 %v3967
    %4351 = vmatprep.subr.mxu0 %v3972
    %4352 = vmatpush1.msra.mxu0 %v3971
    %4353 = vmatprep.subr.mxu0 %v3976
    %4354 = vmatpush1.msra.mxu0 %v3975
    %4355 = vmatprep.subr.mxu0 %v3980
    %4356 = vmatpush1.msra.mxu0 %v3979
    %4357 = vmatprep.subr.mxu0 %v3984
    %4358 = vmatpush1.msra.mxu0 %v3983
    %4359 = vmatprep.subr.mxu0 0.0
    %4360 = vmatpush1.msra.mxu0 0.0
    %4361 = vmatprep.subr.mxu0 0.0
    %4362 = vmatpush1.msra.mxu0 0.0
    %4363 = vmatprep.subr.mxu0 0.0
    %4364 = vmatpush1.msra.mxu0 0.0
    %4365 = vmatprep.subr.mxu0 0.0
    %4366 = vmatpush1.msra.mxu0 0.0
    %4367 = vmatprep.subr.mxu0 0.0
    %4368 = vmatpush1.msra.mxu0 0.0
    %4369 = vmatprep.subr.mxu0 0.0
    %4370 = vmatpush1.msra.mxu0 0.0
    %4371 = vmatprep.subr.mxu0 0.0
    %4372 = vmatpush1.msra.mxu0 0.0
    %4373 = vmatprep.subr.mxu0 0.0
    %4374 = vmatpush1.msra.mxu0 0.0
    %4375 = vmatprep.subr.mxu0 0.0
    %4376 = vmatpush1.msra.mxu0 0.0
    %4377 = vmatprep.subr.mxu0 0.0
    %4378 = vmatpush1.msra.mxu0 0.0
    %4379 = vmatprep.subr.mxu0 0.0
    %4380 = vmatpush1.msra.mxu0 0.0
    %4381 = vmatprep.subr.mxu0 0.0
    %4382 = vmatpush1.msra.mxu0 0.0
    %4383 = vmatprep.subr.mxu0 0.0
    %4384 = vmatpush1.msra.mxu0 0.0
    %4385 = vmatprep.subr.mxu0 0.0
    %4386 = vmatpush1.msra.mxu0 0.0
    %4387 = vmatprep.subr.mxu0 0.0
    %4388 = vmatpush1.msra.mxu0 0.0
    %4389 = vmatprep.subr.mxu0 0.0
    %4390 = vmatpush1.msra.mxu0 0.0
    %4391 = vmatprep.mubr.f32.mxu0 0.0
    %4392 = vmatmul.mubr.f32.gmra.mrb[0].mxu0 %v4326
    %v4393 = vpop.f32.mrb[0].mxu0
    %v4394 = vadd.f32 0.0, %v4393
    %v4395 = vpop.f32.mrb[0].mxu0
    %v4396 = vadd.f32 0.0, %v4395
    %4397 = vdwg.mxu0
    %4398 = vmatprep.subr.mxu0 %v3926
    %4399 = vmatpush1.msra.mxu0 %v3925
    %4400 = vmatprep.subr.mxu0 %v3930
    %4401 = vmatpush1.msra.mxu0 %v3929
    %4402 = vmatprep.subr.mxu0 %v3934
    %4403 = vmatpush1.msra.mxu0 %v3933
    %4404 = vmatprep.subr.mxu0 %v3938
    %4405 = vmatpush1.msra.mxu0 %v3937
    %4406 = vmatprep.subr.mxu0 %v3942
    %4407 = vmatpush1.msra.mxu0 %v3941
    %4408 = vmatprep.subr.mxu0 %v3946
    %4409 = vmatpush1.msra.mxu0 %v3945
    %4410 = vmatprep.subr.mxu0 %v3950
    %4411 = vmatpush1.msra.mxu0 %v3949
    %4412 = vmatprep.subr.mxu0 %v3954
    %4413 = vmatpush1.msra.mxu0 %v3953
    %4414 = vmatprep.subr.mxu0 %v3958
    %4415 = vmatpush1.msra.mxu0 %v3957
    %4416 = vmatprep.subr.mxu0 %v3962
    %4417 = vmatpush1.msra.mxu0 %v3961
    %4418 = vmatprep.subr.mxu0 %v3966
    %4419 = vmatpush1.msra.mxu0 %v3965
    %4420 = vmatprep.subr.mxu0 %v3970
    %4421 = vmatpush1.msra.mxu0 %v3969
    %4422 = vmatprep.subr.mxu0 %v3974
    %4423 = vmatpush1.msra.mxu0 %v3973
    %4424 = vmatprep.subr.mxu0 %v3978
    %4425 = vmatpush1.msra.mxu0 %v3977
    %4426 = vmatprep.subr.mxu0 %v3982
    %4427 = vmatpush1.msra.mxu0 %v3981
    %4428 = vmatprep.subr.mxu0 %v3986
    %4429 = vmatpush1.msra.mxu0 %v3985
    %4430 = vmatprep.subr.mxu0 0.0
    %4431 = vmatpush1.msra.mxu0 0.0
    %4432 = vmatprep.subr.mxu0 0.0
    %4433 = vmatpush1.msra.mxu0 0.0
    %4434 = vmatprep.subr.mxu0 0.0
    %4435 = vmatpush1.msra.mxu0 0.0
    %4436 = vmatprep.subr.mxu0 0.0
    %4437 = vmatpush1.msra.mxu0 0.0
    %4438 = vmatprep.subr.mxu0 0.0
    %4439 = vmatpush1.msra.mxu0 0.0
    %4440 = vmatprep.subr.mxu0 0.0
    %4441 = vmatpush1.msra.mxu0 0.0
    %4442 = vmatprep.subr.mxu0 0.0
    %4443 = vmatpush1.msra.mxu0 0.0
    %4444 = vmatprep.subr.mxu0 0.0
    %4445 = vmatpush1.msra.mxu0 0.0
    %4446 = vmatprep.subr.mxu0 0.0
    %4447 = vmatpush1.msra.mxu0 0.0
    %4448 = vmatprep.subr.mxu0 0.0
    %4449 = vmatpush1.msra.mxu0 0.0
    %4450 = vmatprep.subr.mxu0 0.0
    %4451 = vmatpush1.msra.mxu0 0.0
    %4452 = vmatprep.subr.mxu0 0.0
    %4453 = vmatpush1.msra.mxu0 0.0
    %4454 = vmatprep.subr.mxu0 0.0
    %4455 = vmatpush1.msra.mxu0 0.0
    %4456 = vmatprep.subr.mxu0 0.0
    %4457 = vmatpush1.msra.mxu0 0.0
    %4458 = vmatprep.subr.mxu0 0.0
    %4459 = vmatpush1.msra.mxu0 0.0
    %4460 = vmatprep.subr.mxu0 0.0
    %4461 = vmatpush1.msra.mxu0 0.0
    %4462 = vmatprep.mubr.f32.mxu0 0.0
    %4463 = vmatmul.mubr.f32.gmra.mrb[0].mxu0 %v4326
    %v4464 = vpop.f32.mrb[0].mxu0
    %v4465 = vadd.f32 0.0, %v4464
    %v4466 = vpop.f32.mrb[0].mxu0
    %v4467 = vadd.f32 0.0, %v4466
    %4468 = vdwg.mxu0
    %v4469 = vadd.f32 %v3138, %v4394
    %v4470 = vadd.f32 %v3140, %v4396
    %v4471 = vadd.f32 %v3209, %v4465
    %v4472 = vadd.f32 %v3211, %v4467
    %v4473 = vxor.u32 %v4469, 2147483648
    %v4474 = vmul.f32 %v4473, 1.442695
    %v4475 = vpow.pop %v4474
    %v4476 = vadd.f32 %v4475, 1.0
    %v4477 = vrcp.pop %v4476
    %v4478 = vmul.f32 1.0, %v4477
    %v4479 = vxor.u32 %v4470, 2147483648
    %v4480 = vmul.f32 %v4479, 1.442695
    %v4481 = vpow.pop %v4480
    %v4482 = vadd.f32 %v4481, 1.0
    %v4483 = vrcp.pop %v4482
    %v4484 = vmul.f32 1.0, %v4483
    %v4485 = vtanh.pop %v4471
    %v4486 = vxor.u32 %v4472, 2147483648
    %v4487 = vmul.f32 %v4486, 1.442695
    %v4488 = vpow.pop %v4487
    %v4489 = vadd.f32 %v4488, 1.0
    %v4490 = vrcp.pop %v4489
    %v4491 = vmul.f32 1.0, %v4490
    %v4492 = vmul.f32 %v4484, %v4324
    %v4493 = vmul.f32 %v4478, %v4485
    %v4494 = vadd.f32 %v4492, %v4493
    %v4495 = vtanh.pop %v4494
    %v4496 = vmul.f32 %v4491, %v4495
    %4497 = vmatprep.subr.mxu0 %v3924
    %4498 = vmatpush1.msra.mxu0 %v3923
    %4499 = vmatprep.subr.mxu0 %v3928
    %4500 = vmatpush1.msra.mxu0 %v3927
    %4501 = vmatprep.subr.mxu0 %v3932
    %4502 = vmatpush1.msra.mxu0 %v3931
    %4503 = vmatprep.subr.mxu0 %v3936
    %4504 = vmatpush1.msra.mxu0 %v3935
    %4505 = vmatprep.subr.mxu0 %v3940
    %4506 = vmatpush1.msra.mxu0 %v3939
    %4507 = vmatprep.subr.mxu0 %v3944
    %4508 = vmatpush1.msra.mxu0 %v3943
    %4509 = vmatprep.subr.mxu0 %v3948
    %4510 = vmatpush1.msra.mxu0 %v3947
    %4511 = vmatprep.subr.mxu0 %v3952
    %4512 = vmatpush1.msra.mxu0 %v3951
    %4513 = vmatprep.subr.mxu0 %v3956
    %4514 = vmatpush1.msra.mxu0 %v3955
    %4515 = vmatprep.subr.mxu0 %v3960
    %4516 = vmatpush1.msra.mxu0 %v3959
    %4517 = vmatprep.subr.mxu0 %v3964
    %4518 = vmatpush1.msra.mxu0 %v3963
    %4519 = vmatprep.subr.mxu0 %v3968
    %4520 = vmatpush1.msra.mxu0 %v3967
    %4521 = vmatprep.subr.mxu0 %v3972
    %4522 = vmatpush1.msra.mxu0 %v3971
    %4523 = vmatprep.subr.mxu0 %v3976
    %4524 = vmatpush1.msra.mxu0 %v3975
    %4525 = vmatprep.subr.mxu0 %v3980
    %4526 = vmatpush1.msra.mxu0 %v3979
    %4527 = vmatprep.subr.mxu0 %v3984
    %4528 = vmatpush1.msra.mxu0 %v3983
    %4529 = vmatprep.subr.mxu0 0.0
    %4530 = vmatpush1.msra.mxu0 0.0
    %4531 = vmatprep.subr.mxu0 0.0
    %4532 = vmatpush1.msra.mxu0 0.0
    %4533 = vmatprep.subr.mxu0 0.0
    %4534 = vmatpush1.msra.mxu0 0.0
    %4535 = vmatprep.subr.mxu0 0.0
    %4536 = vmatpush1.msra.mxu0 0.0
    %4537 = vmatprep.subr.mxu0 0.0
    %4538 = vmatpush1.msra.mxu0 0.0
    %4539 = vmatprep.subr.mxu0 0.0
    %4540 = vmatpush1.msra.mxu0 0.0
    %4541 = vmatprep.subr.mxu0 0.0
    %4542 = vmatpush1.msra.mxu0 0.0
    %4543 = vmatprep.subr.mxu0 0.0
    %4544 = vmatpush1.msra.mxu0 0.0
    %4545 = vmatprep.subr.mxu0 0.0
    %4546 = vmatpush1.msra.mxu0 0.0
    %4547 = vmatprep.subr.mxu0 0.0
    %4548 = vmatpush1.msra.mxu0 0.0
    %4549 = vmatprep.subr.mxu0 0.0
    %4550 = vmatpush1.msra.mxu0 0.0
    %4551 = vmatprep.subr.mxu0 0.0
    %4552 = vmatpush1.msra.mxu0 0.0
    %4553 = vmatprep.subr.mxu0 0.0
    %4554 = vmatpush1.msra.mxu0 0.0
    %4555 = vmatprep.subr.mxu0 0.0
    %4556 = vmatpush1.msra.mxu0 0.0
    %4557 = vmatprep.subr.mxu0 0.0
    %4558 = vmatpush1.msra.mxu0 0.0
    %4559 = vmatprep.subr.mxu0 0.0
    %4560 = vmatpush1.msra.mxu0 0.0
    %4561 = vmatprep.mubr.f32.mxu0 0.0
    %4562 = vmatmul.mubr.f32.gmra.mrb[0].mxu0 %v4496
    %v4563 = vpop.f32.mrb[0].mxu0
    %v4564 = vadd.f32 0.0, %v4563
    %v4565 = vpop.f32.mrb[0].mxu0
    %v4566 = vadd.f32 0.0, %v4565
    %4567 = vdwg.mxu0
    %4568 = vmatprep.subr.mxu0 %v3926
    %4569 = vmatpush1.msra.mxu0 %v3925
    %4570 = vmatprep.subr.mxu0 %v3930
    %4571 = vmatpush1.msra.mxu0 %v3929
    %4572 = vmatprep.subr.mxu0 %v3934
    %4573 = vmatpush1.msra.mxu0 %v3933
    %4574 = vmatprep.subr.mxu0 %v3938
    %4575 = vmatpush1.msra.mxu0 %v3937
    %4576 = vmatprep.subr.mxu0 %v3942
    %4577 = vmatpush1.msra.mxu0 %v3941
    %4578 = vmatprep.subr.mxu0 %v3946
    %4579 = vmatpush1.msra.mxu0 %v3945
    %4580 = vmatprep.subr.mxu0 %v3950
    %4581 = vmatpush1.msra.mxu0 %v3949
    %4582 = vmatprep.subr.mxu0 %v3954
    %4583 = vmatpush1.msra.mxu0 %v3953
    %4584 = vmatprep.subr.mxu0 %v3958
    %4585 = vmatpush1.msra.mxu0 %v3957
    %4586 = vmatprep.subr.mxu0 %v3962
    %4587 = vmatpush1.msra.mxu0 %v3961
    %4588 = vmatprep.subr.mxu0 %v3966
    %4589 = vmatpush1.msra.mxu0 %v3965
    %4590 = vmatprep.subr.mxu0 %v3970
    %4591 = vmatpush1.msra.mxu0 %v3969
    %4592 = vmatprep.subr.mxu0 %v3974
    %4593 = vmatpush1.msra.mxu0 %v3973
    %4594 = vmatprep.subr.mxu0 %v3978
    %4595 = vmatpush1.msra.mxu0 %v3977
    %4596 = vmatprep.subr.mxu0 %v3982
    %4597 = vmatpush1.msra.mxu0 %v3981
    %4598 = vmatprep.subr.mxu0 %v3986
    %4599 = vmatpush1.msra.mxu0 %v3985
    %4600 = vmatprep.subr.mxu0 0.0
    %4601 = vmatpush1.msra.mxu0 0.0
    %4602 = vmatprep.subr.mxu0 0.0
    %4603 = vmatpush1.msra.mxu0 0.0
    %4604 = vmatprep.subr.mxu0 0.0
    %4605 = vmatpush1.msra.mxu0 0.0
    %4606 = vmatprep.subr.mxu0 0.0
    %4607 = vmatpush1.msra.mxu0 0.0
    %4608 = vmatprep.subr.mxu0 0.0
    %4609 = vmatpush1.msra.mxu0 0.0
    %4610 = vmatprep.subr.mxu0 0.0
    %4611 = vmatpush1.msra.mxu0 0.0
    %4612 = vmatprep.subr.mxu0 0.0
    %4613 = vmatpush1.msra.mxu0 0.0
    %4614 = vmatprep.subr.mxu0 0.0
    %4615 = vmatpush1.msra.mxu0 0.0
    %4616 = vmatprep.subr.mxu0 0.0
    %4617 = vmatpush1.msra.mxu0 0.0
    %4618 = vmatprep.subr.mxu0 0.0
    %4619 = vmatpush1.msra.mxu0 0.0
    %4620 = vmatprep.subr.mxu0 0.0
    %4621 = vmatpush1.msra.mxu0 0.0
    %4622 = vmatprep.subr.mxu0 0.0
    %4623 = vmatpush1.msra.mxu0 0.0
    %4624 = vmatprep.subr.mxu0 0.0
    %4625 = vmatpush1.msra.mxu0 0.0
    %4626 = vmatprep.subr.mxu0 0.0
    %4627 = vmatpush1.msra.mxu0 0.0
    %4628 = vmatprep.subr.mxu0 0.0
    %4629 = vmatpush1.msra.mxu0 0.0
    %4630 = vmatprep.subr.mxu0 0.0
    %4631 = vmatpush1.msra.mxu0 0.0
    %4632 = vmatprep.mubr.f32.mxu0 0.0
    %4633 = vmatmul.mubr.f32.gmra.mrb[0].mxu0 %v4496
    %v4634 = vpop.f32.mrb[0].mxu0
    %v4635 = vadd.f32 0.0, %v4634
    %v4636 = vpop.f32.mrb[0].mxu0
    %v4637 = vadd.f32 0.0, %v4636
    %4638 = vdwg.mxu0
    %v4639 = vadd.f32 %v3280, %v4564
    %v4640 = vadd.f32 %v3282, %v4566
    %v4641 = vadd.f32 %v3351, %v4635
    %v4642 = vadd.f32 %v3353, %v4637
    %v4643 = vxor.u32 %v4639, 2147483648
    %v4644 = vmul.f32 %v4643, 1.442695
    %v4645 = vpow.pop %v4644
    %v4646 = vadd.f32 %v4645, 1.0
    %v4647 = vrcp.pop %v4646
    %v4648 = vmul.f32 1.0, %v4647
    %v4649 = vxor.u32 %v4640, 2147483648
    %v4650 = vmul.f32 %v4649, 1.442695
    %v4651 = vpow.pop %v4650
    %v4652 = vadd.f32 %v4651, 1.0
    %v4653 = vrcp.pop %v4652
    %v4654 = vmul.f32 1.0, %v4653
    %v4655 = vtanh.pop %v4641
    %v4656 = vxor.u32 %v4642, 2147483648
    %v4657 = vmul.f32 %v4656, 1.442695
    %v4658 = vpow.pop %v4657
    %v4659 = vadd.f32 %v4658, 1.0
    %v4660 = vrcp.pop %v4659
    %v4661 = vmul.f32 1.0, %v4660
    %v4662 = vmul.f32 %v4654, %v4494
    %v4663 = vmul.f32 %v4648, %v4655
    %v4664 = vadd.f32 %v4662, %v4663
    %v4665 = vtanh.pop %v4664
    %v4666 = vmul.f32 %v4661, %v4665
    %4667 = vmatprep.subr.mxu0 %v3924
    %4668 = vmatpush1.msra.mxu0 %v3923
    %4669 = vmatprep.subr.mxu0 %v3928
    %4670 = vmatpush1.msra.mxu0 %v3927
    %4671 = vmatprep.subr.mxu0 %v3932
    %4672 = vmatpush1.msra.mxu0 %v3931
    %4673 = vmatprep.subr.mxu0 %v3936
    %4674 = vmatpush1.msra.mxu0 %v3935
    %4675 = vmatprep.subr.mxu0 %v3940
    %4676 = vmatpush1.msra.mxu0 %v3939
    %4677 = vmatprep.subr.mxu0 %v3944
    %4678 = vmatpush1.msra.mxu0 %v3943
    %4679 = vmatprep.subr.mxu0 %v3948
    %4680 = vmatpush1.msra.mxu0 %v3947
    %4681 = vmatprep.subr.mxu0 %v3952
    %4682 = vmatpush1.msra.mxu0 %v3951
    %4683 = vmatprep.subr.mxu0 %v3956
    %4684 = vmatpush1.msra.mxu0 %v3955
    %4685 = vmatprep.subr.mxu0 %v3960
    %4686 = vmatpush1.msra.mxu0 %v3959
    %4687 = vmatprep.subr.mxu0 %v3964
    %4688 = vmatpush1.msra.mxu0 %v3963
    %4689 = vmatprep.subr.mxu0 %v3968
    %4690 = vmatpush1.msra.mxu0 %v3967
    %4691 = vmatprep.subr.mxu0 %v3972
    %4692 = vmatpush1.msra.mxu0 %v3971
    %4693 = vmatprep.subr.mxu0 %v3976
    %4694 = vmatpush1.msra.mxu0 %v3975
    %4695 = vmatprep.subr.mxu0 %v3980
    %4696 = vmatpush1.msra.mxu0 %v3979
    %4697 = vmatprep.subr.mxu0 %v3984
    %4698 = vmatpush1.msra.mxu0 %v3983
    %4699 = vmatprep.subr.mxu0 0.0
    %4700 = vmatpush1.msra.mxu0 0.0
    %4701 = vmatprep.subr.mxu0 0.0
    %4702 = vmatpush1.msra.mxu0 0.0
    %4703 = vmatprep.subr.mxu0 0.0
    %4704 = vmatpush1.msra.mxu0 0.0
    %4705 = vmatprep.subr.mxu0 0.0
    %4706 = vmatpush1.msra.mxu0 0.0
    %4707 = vmatprep.subr.mxu0 0.0
    %4708 = vmatpush1.msra.mxu0 0.0
    %4709 = vmatprep.subr.mxu0 0.0
    %4710 = vmatpush1.msra.mxu0 0.0
    %4711 = vmatprep.subr.mxu0 0.0
    %4712 = vmatpush1.msra.mxu0 0.0
    %4713 = vmatprep.subr.mxu0 0.0
    %4714 = vmatpush1.msra.mxu0 0.0
    %4715 = vmatprep.subr.mxu0 0.0
    %4716 = vmatpush1.msra.mxu0 0.0
    %4717 = vmatprep.subr.mxu0 0.0
    %4718 = vmatpush1.msra.mxu0 0.0
    %4719 = vmatprep.subr.mxu0 0.0
    %4720 = vmatpush1.msra.mxu0 0.0
    %4721 = vmatprep.subr.mxu0 0.0
    %4722 = vmatpush1.msra.mxu0 0.0
    %4723 = vmatprep.subr.mxu0 0.0
    %4724 = vmatpush1.msra.mxu0 0.0
    %4725 = vmatprep.subr.mxu0 0.0
    %4726 = vmatpush1.msra.mxu0 0.0
    %4727 = vmatprep.subr.mxu0 0.0
    %4728 = vmatpush1.msra.mxu0 0.0
    %4729 = vmatprep.subr.mxu0 0.0
    %4730 = vmatpush1.msra.mxu0 0.0
    %4731 = vmatprep.mubr.f32.mxu0 0.0
    %4732 = vmatmul.mubr.f32.gmra.mrb[0].mxu0 %v4666
    %v4733 = vpop.f32.mrb[0].mxu0
    %v4734 = vadd.f32 0.0, %v4733
    %v4735 = vpop.f32.mrb[0].mxu0
    %v4736 = vadd.f32 0.0, %v4735
    %4737 = vdwg.mxu0
    %4738 = vmatprep.subr.mxu0 %v3926
    %4739 = vmatpush1.msra.mxu0 %v3925
    %4740 = vmatprep.subr.mxu0 %v3930
    %4741 = vmatpush1.msra.mxu0 %v3929
    %4742 = vmatprep.subr.mxu0 %v3934
    %4743 = vmatpush1.msra.mxu0 %v3933
    %4744 = vmatprep.subr.mxu0 %v3938
    %4745 = vmatpush1.msra.mxu0 %v3937
    %4746 = vmatprep.subr.mxu0 %v3942
    %4747 = vmatpush1.msra.mxu0 %v3941
    %4748 = vmatprep.subr.mxu0 %v3946
    %4749 = vmatpush1.msra.mxu0 %v3945
    %4750 = vmatprep.subr.mxu0 %v3950
    %4751 = vmatpush1.msra.mxu0 %v3949
    %4752 = vmatprep.subr.mxu0 %v3954
    %4753 = vmatpush1.msra.mxu0 %v3953
    %4754 = vmatprep.subr.mxu0 %v3958
    %4755 = vmatpush1.msra.mxu0 %v3957
    %4756 = vmatprep.subr.mxu0 %v3962
    %4757 = vmatpush1.msra.mxu0 %v3961
    %4758 = vmatprep.subr.mxu0 %v3966
    %4759 = vmatpush1.msra.mxu0 %v3965
    %4760 = vmatprep.subr.mxu0 %v3970
    %4761 = vmatpush1.msra.mxu0 %v3969
    %4762 = vmatprep.subr.mxu0 %v3974
    %4763 = vmatpush1.msra.mxu0 %v3973
    %4764 = vmatprep.subr.mxu0 %v3978
    %4765 = vmatpush1.msra.mxu0 %v3977
    %4766 = vmatprep.subr.mxu0 %v3982
    %4767 = vmatpush1.msra.mxu0 %v3981
    %4768 = vmatprep.subr.mxu0 %v3986
    %4769 = vmatpush1.msra.mxu0 %v3985
    %4770 = vmatprep.subr.mxu0 0.0
    %4771 = vmatpush1.msra.mxu0 0.0
    %4772 = vmatprep.subr.mxu0 0.0
    %4773 = vmatpush1.msra.mxu0 0.0
    %4774 = vmatprep.subr.mxu0 0.0
    %4775 = vmatpush1.msra.mxu0 0.0
    %4776 = vmatprep.subr.mxu0 0.0
    %4777 = vmatpush1.msra.mxu0 0.0
    %4778 = vmatprep.subr.mxu0 0.0
    %4779 = vmatpush1.msra.mxu0 0.0
    %4780 = vmatprep.subr.mxu0 0.0
    %4781 = vmatpush1.msra.mxu0 0.0
    %4782 = vmatprep.subr.mxu0 0.0
    %4783 = vmatpush1.msra.mxu0 0.0
    %4784 = vmatprep.subr.mxu0 0.0
    %4785 = vmatpush1.msra.mxu0 0.0
    %4786 = vmatprep.subr.mxu0 0.0
    %4787 = vmatpush1.msra.mxu0 0.0
    %4788 = vmatprep.subr.mxu0 0.0
    %4789 = vmatpush1.msra.mxu0 0.0
    %4790 = vmatprep.subr.mxu0 0.0
    %4791 = vmatpush1.msra.mxu0 0.0
    %4792 = vmatprep.subr.mxu0 0.0
    %4793 = vmatpush1.msra.mxu0 0.0
    %4794 = vmatprep.subr.mxu0 0.0
    %4795 = vmatpush1.msra.mxu0 0.0
    %4796 = vmatprep.subr.mxu0 0.0
    %4797 = vmatpush1.msra.mxu0 0.0
    %4798 = vmatprep.subr.mxu0 0.0
    %4799 = vmatpush1.msra.mxu0 0.0
    %4800 = vmatprep.subr.mxu0 0.0
    %4801 = vmatpush1.msra.mxu0 0.0
    %4802 = vmatprep.mubr.f32.mxu0 0.0
    %4803 = vmatmul.mubr.f32.gmra.mrb[0].mxu0 %v4666
    %v4804 = vpop.f32.mrb[0].mxu0
    %v4805 = vadd.f32 0.0, %v4804
    %v4806 = vpop.f32.mrb[0].mxu0
    %v4807 = vadd.f32 0.0, %v4806
    %4808 = vdwg.mxu0
    %v4809 = vadd.f32 %v3422, %v4734
    %v4810 = vadd.f32 %v3424, %v4736
    %v4811 = vadd.f32 %v3493, %v4805
    %v4812 = vadd.f32 %v3495, %v4807
    %v4813 = vxor.u32 %v4809, 2147483648
    %v4814 = vmul.f32 %v4813, 1.442695
    %v4815 = vpow.pop %v4814
    %v4816 = vadd.f32 %v4815, 1.0
    %v4817 = vrcp.pop %v4816
    %v4818 = vmul.f32 1.0, %v4817
    %v4819 = vxor.u32 %v4810, 2147483648
    %v4820 = vmul.f32 %v4819, 1.442695
    %v4821 = vpow.pop %v4820
    %v4822 = vadd.f32 %v4821, 1.0
    %v4823 = vrcp.pop %v4822
    %v4824 = vmul.f32 1.0, %v4823
    %v4825 = vtanh.pop %v4811
    %v4826 = vxor.u32 %v4812, 2147483648
    %v4827 = vmul.f32 %v4826, 1.442695
    %v4828 = vpow.pop %v4827
    %v4829 = vadd.f32 %v4828, 1.0
    %v4830 = vrcp.pop %v4829
    %v4831 = vmul.f32 1.0, %v4830
    %v4832 = vmul.f32 %v4824, %v4664
    %v4833 = vmul.f32 %v4818, %v4825
    %v4834 = vadd.f32 %v4832, %v4833
    %v4835 = vtanh.pop %v4834
    %v4836 = vmul.f32 %v4831, %v4835
    %4837 = vmatprep.subr.mxu0 %v3924
    %4838 = vmatpush1.msra.mxu0 %v3923
    %4839 = vmatprep.subr.mxu0 %v3928
    %4840 = vmatpush1.msra.mxu0 %v3927
    %4841 = vmatprep.subr.mxu0 %v3932
    %4842 = vmatpush1.msra.mxu0 %v3931
    %4843 = vmatprep.subr.mxu0 %v3936
    %4844 = vmatpush1.msra.mxu0 %v3935
    %4845 = vmatprep.subr.mxu0 %v3940
    %4846 = vmatpush1.msra.mxu0 %v3939
    %4847 = vmatprep.subr.mxu0 %v3944
    %4848 = vmatpush1.msra.mxu0 %v3943
    %4849 = vmatprep.subr.mxu0 %v3948
    %4850 = vmatpush1.msra.mxu0 %v3947
    %4851 = vmatprep.subr.mxu0 %v3952
    %4852 = vmatpush1.msra.mxu0 %v3951
    %4853 = vmatprep.subr.mxu0 %v3956
    %4854 = vmatpush1.msra.mxu0 %v3955
    %4855 = vmatprep.subr.mxu0 %v3960
    %4856 = vmatpush1.msra.mxu0 %v3959
    %4857 = vmatprep.subr.mxu0 %v3964
    %4858 = vmatpush1.msra.mxu0 %v3963
    %4859 = vmatprep.subr.mxu0 %v3968
    %4860 = vmatpush1.msra.mxu0 %v3967
    %4861 = vmatprep.subr.mxu0 %v3972
    %4862 = vmatpush1.msra.mxu0 %v3971
    %4863 = vmatprep.subr.mxu0 %v3976
    %4864 = vmatpush1.msra.mxu0 %v3975
    %4865 = vmatprep.subr.mxu0 %v3980
    %4866 = vmatpush1.msra.mxu0 %v3979
    %4867 = vmatprep.subr.mxu0 %v3984
    %4868 = vmatpush1.msra.mxu0 %v3983
    %4869 = vmatprep.subr.mxu0 0.0
    %4870 = vmatpush1.msra.mxu0 0.0
    %4871 = vmatprep.subr.mxu0 0.0
    %4872 = vmatpush1.msra.mxu0 0.0
    %4873 = vmatprep.subr.mxu0 0.0
    %4874 = vmatpush1.msra.mxu0 0.0
    %4875 = vmatprep.subr.mxu0 0.0
    %4876 = vmatpush1.msra.mxu0 0.0
    %4877 = vmatprep.subr.mxu0 0.0
    %4878 = vmatpush1.msra.mxu0 0.0
    %4879 = vmatprep.subr.mxu0 0.0
    %4880 = vmatpush1.msra.mxu0 0.0
    %4881 = vmatprep.subr.mxu0 0.0
    %4882 = vmatpush1.msra.mxu0 0.0
    %4883 = vmatprep.subr.mxu0 0.0
    %4884 = vmatpush1.msra.mxu0 0.0
    %4885 = vmatprep.subr.mxu0 0.0
    %4886 = vmatpush1.msra.mxu0 0.0
    %4887 = vmatprep.subr.mxu0 0.0
    %4888 = vmatpush1.msra.mxu0 0.0
    %4889 = vmatprep.subr.mxu0 0.0
    %4890 = vmatpush1.msra.mxu0 0.0
    %4891 = vmatprep.subr.mxu0 0.0
    %4892 = vmatpush1.msra.mxu0 0.0
    %4893 = vmatprep.subr.mxu0 0.0
    %4894 = vmatpush1.msra.mxu0 0.0
    %4895 = vmatprep.subr.mxu0 0.0
    %4896 = vmatpush1.msra.mxu0 0.0
    %4897 = vmatprep.subr.mxu0 0.0
    %4898 = vmatpush1.msra.mxu0 0.0
    %4899 = vmatprep.subr.mxu0 0.0
    %4900 = vmatpush1.msra.mxu0 0.0
    %4901 = vmatprep.mubr.f32.mxu0 0.0
    %4902 = vmatmul.mubr.f32.gmra.mrb[0].mxu0 %v4836
    %v4903 = vpop.f32.mrb[0].mxu0
    %v4904 = vadd.f32 0.0, %v4903
    %v4905 = vpop.f32.mrb[0].mxu0
    %v4906 = vadd.f32 0.0, %v4905
    %4907 = vdwg.mxu0
    %4908 = vmatprep.subr.mxu0 %v3926
    %4909 = vmatpush1.msra.mxu0 %v3925
    %4910 = vmatprep.subr.mxu0 %v3930
    %4911 = vmatpush1.msra.mxu0 %v3929
    %4912 = vmatprep.subr.mxu0 %v3934
    %4913 = vmatpush1.msra.mxu0 %v3933
    %4914 = vmatprep.subr.mxu0 %v3938
    %4915 = vmatpush1.msra.mxu0 %v3937
    %4916 = vmatprep.subr.mxu0 %v3942
    %4917 = vmatpush1.msra.mxu0 %v3941
    %4918 = vmatprep.subr.mxu0 %v3946
    %4919 = vmatpush1.msra.mxu0 %v3945
    %4920 = vmatprep.subr.mxu0 %v3950
    %4921 = vmatpush1.msra.mxu0 %v3949
    %4922 = vmatprep.subr.mxu0 %v3954
    %4923 = vmatpush1.msra.mxu0 %v3953
    %4924 = vmatprep.subr.mxu0 %v3958
    %4925 = vmatpush1.msra.mxu0 %v3957
    %4926 = vmatprep.subr.mxu0 %v3962
    %4927 = vmatpush1.msra.mxu0 %v3961
    %4928 = vmatprep.subr.mxu0 %v3966
    %4929 = vmatpush1.msra.mxu0 %v3965
    %4930 = vmatprep.subr.mxu0 %v3970
    %4931 = vmatpush1.msra.mxu0 %v3969
    %4932 = vmatprep.subr.mxu0 %v3974
    %4933 = vmatpush1.msra.mxu0 %v3973
    %4934 = vmatprep.subr.mxu0 %v3978
    %4935 = vmatpush1.msra.mxu0 %v3977
    %4936 = vmatprep.subr.mxu0 %v3982
    %4937 = vmatpush1.msra.mxu0 %v3981
    %4938 = vmatprep.subr.mxu0 %v3986
    %4939 = vmatpush1.msra.mxu0 %v3985
    %4940 = vmatprep.subr.mxu0 0.0
    %4941 = vmatpush1.msra.mxu0 0.0
    %4942 = vmatprep.subr.mxu0 0.0
    %4943 = vmatpush1.msra.mxu0 0.0
    %4944 = vmatprep.subr.mxu0 0.0
    %4945 = vmatpush1.msra.mxu0 0.0
    %4946 = vmatprep.subr.mxu0 0.0
    %4947 = vmatpush1.msra.mxu0 0.0
    %4948 = vmatprep.subr.mxu0 0.0
    %4949 = vmatpush1.msra.mxu0 0.0
    %4950 = vmatprep.subr.mxu0 0.0
    %4951 = vmatpush1.msra.mxu0 0.0
    %4952 = vmatprep.subr.mxu0 0.0
    %4953 = vmatpush1.msra.mxu0 0.0
    %4954 = vmatprep.subr.mxu0 0.0
    %4955 = vmatpush1.msra.mxu0 0.0
    %4956 = vmatprep.subr.mxu0 0.0
    %4957 = vmatpush1.msra.mxu0 0.0
    %4958 = vmatprep.subr.mxu0 0.0
    %4959 = vmatpush1.msra.mxu0 0.0
    %4960 = vmatprep.subr.mxu0 0.0
    %4961 = vmatpush1.msra.mxu0 0.0
    %4962 = vmatprep.subr.mxu0 0.0
    %4963 = vmatpush1.msra.mxu0 0.0
    %4964 = vmatprep.subr.mxu0 0.0
    %4965 = vmatpush1.msra.mxu0 0.0
    %4966 = vmatprep.subr.mxu0 0.0
    %4967 = vmatpush1.msra.mxu0 0.0
    %4968 = vmatprep.subr.mxu0 0.0
    %4969 = vmatpush1.msra.mxu0 0.0
    %4970 = vmatprep.subr.mxu0 0.0
    %4971 = vmatpush1.msra.mxu0 0.0
    %4972 = vmatprep.mubr.f32.mxu0 0.0
    %4973 = vmatmul.mubr.f32.gmra.mrb[0].mxu0 %v4836
    %v4974 = vpop.f32.mrb[0].mxu0
    %v4975 = vadd.f32 0.0, %v4974
    %v4976 = vpop.f32.mrb[0].mxu0
    %v4977 = vadd.f32 0.0, %v4976
    %4978 = vdwg.mxu0
    %v4979 = vadd.f32 %v3564, %v4904
    %v4980 = vadd.f32 %v3566, %v4906
    %v4981 = vadd.f32 %v3635, %v4975
    %v4982 = vadd.f32 %v3637, %v4977
    %v4983 = vxor.u32 %v4979, 2147483648
    %v4984 = vmul.f32 %v4983, 1.442695
    %v4985 = vpow.pop %v4984
    %v4986 = vadd.f32 %v4985, 1.0
    %v4987 = vrcp.pop %v4986
    %v4988 = vmul.f32 1.0, %v4987
    %v4989 = vxor.u32 %v4980, 2147483648
    %v4990 = vmul.f32 %v4989, 1.442695
    %v4991 = vpow.pop %v4990
    %v4992 = vadd.f32 %v4991, 1.0
    %v4993 = vrcp.pop %v4992
    %v4994 = vmul.f32 1.0, %v4993
    %v4995 = vtanh.pop %v4981
    %v4996 = vxor.u32 %v4982, 2147483648
    %v4997 = vmul.f32 %v4996, 1.442695
    %v4998 = vpow.pop %v4997
    %v4999 = vadd.f32 %v4998, 1.0
    %v5000 = vrcp.pop %v4999
    %v5001 = vmul.f32 1.0, %v5000
    %v5002 = vmul.f32 %v4994, %v4834
    %v5003 = vmul.f32 %v4988, %v4995
    %v5004 = vadd.f32 %v5002, %v5003
    %v5005 = vtanh.pop %v5004
    %v5006 = vmul.f32 %v5001, %v5005
    %5007 = vmatprep.subr.mxu0 %v3924
    %5008 = vmatpush1.msra.mxu0 %v3923
    %5009 = vmatprep.subr.mxu0 %v3928
    %5010 = vmatpush1.msra.mxu0 %v3927
    %5011 = vmatprep.subr.mxu0 %v3932
    %5012 = vmatpush1.msra.mxu0 %v3931
    %5013 = vmatprep.subr.mxu0 %v3936
    %5014 = vmatpush1.msra.mxu0 %v3935
    %5015 = vmatprep.subr.mxu0 %v3940
    %5016 = vmatpush1.msra.mxu0 %v3939
    %5017 = vmatprep.subr.mxu0 %v3944
    %5018 = vmatpush1.msra.mxu0 %v3943
    %5019 = vmatprep.subr.mxu0 %v3948
    %5020 = vmatpush1.msra.mxu0 %v3947
    %5021 = vmatprep.subr.mxu0 %v3952
    %5022 = vmatpush1.msra.mxu0 %v3951
    %5023 = vmatprep.subr.mxu0 %v3956
    %5024 = vmatpush1.msra.mxu0 %v3955
    %5025 = vmatprep.subr.mxu0 %v3960
    %5026 = vmatpush1.msra.mxu0 %v3959
    %5027 = vmatprep.subr.mxu0 %v3964
    %5028 = vmatpush1.msra.mxu0 %v3963
    %5029 = vmatprep.subr.mxu0 %v3968
    %5030 = vmatpush1.msra.mxu0 %v3967
    %5031 = vmatprep.subr.mxu0 %v3972
    %5032 = vmatpush1.msra.mxu0 %v3971
    %5033 = vmatprep.subr.mxu0 %v3976
    %5034 = vmatpush1.msra.mxu0 %v3975
    %5035 = vmatprep.subr.mxu0 %v3980
    %5036 = vmatpush1.msra.mxu0 %v3979
    %5037 = vmatprep.subr.mxu0 %v3984
    %5038 = vmatpush1.msra.mxu0 %v3983
    %5039 = vmatprep.subr.mxu0 0.0
    %5040 = vmatpush1.msra.mxu0 0.0
    %5041 = vmatprep.subr.mxu0 0.0
    %5042 = vmatpush1.msra.mxu0 0.0
    %5043 = vmatprep.subr.mxu0 0.0
    %5044 = vmatpush1.msra.mxu0 0.0
    %5045 = vmatprep.subr.mxu0 0.0
    %5046 = vmatpush1.msra.mxu0 0.0
    %5047 = vmatprep.subr.mxu0 0.0
    %5048 = vmatpush1.msra.mxu0 0.0
    %5049 = vmatprep.subr.mxu0 0.0
    %5050 = vmatpush1.msra.mxu0 0.0
    %5051 = vmatprep.subr.mxu0 0.0
    %5052 = vmatpush1.msra.mxu0 0.0
    %5053 = vmatprep.subr.mxu0 0.0
    %5054 = vmatpush1.msra.mxu0 0.0
    %5055 = vmatprep.subr.mxu0 0.0
    %5056 = vmatpush1.msra.mxu0 0.0
    %5057 = vmatprep.subr.mxu0 0.0
    %5058 = vmatpush1.msra.mxu0 0.0
    %5059 = vmatprep.subr.mxu0 0.0
    %5060 = vmatpush1.msra.mxu0 0.0
    %5061 = vmatprep.subr.mxu0 0.0
    %5062 = vmatpush1.msra.mxu0 0.0
    %5063 = vmatprep.subr.mxu0 0.0
    %5064 = vmatpush1.msra.mxu0 0.0
    %5065 = vmatprep.subr.mxu0 0.0
    %5066 = vmatpush1.msra.mxu0 0.0
    %5067 = vmatprep.subr.mxu0 0.0
    %5068 = vmatpush1.msra.mxu0 0.0
    %5069 = vmatprep.subr.mxu0 0.0
    %5070 = vmatpush1.msra.mxu0 0.0
    %5071 = vmatprep.mubr.f32.mxu0 0.0
    %5072 = vmatmul.mubr.f32.gmra.mrb[0].mxu0 %v5006
    %v5073 = vpop.f32.mrb[0].mxu0
    %v5074 = vadd.f32 0.0, %v5073
    %v5075 = vpop.f32.mrb[0].mxu0
    %v5076 = vadd.f32 0.0, %v5075
    %5077 = vdwg.mxu0
    %5078 = vmatprep.subr.mxu0 %v3926
    %5079 = vmatpush1.msra.mxu0 %v3925
    %5080 = vmatprep.subr.mxu0 %v3930
    %5081 = vmatpush1.msra.mxu0 %v3929
    %5082 = vmatprep.subr.mxu0 %v3934
    %5083 = vmatpush1.msra.mxu0 %v3933
    %5084 = vmatprep.subr.mxu0 %v3938
    %5085 = vmatpush1.msra.mxu0 %v3937
    %5086 = vmatprep.subr.mxu0 %v3942
    %5087 = vmatpush1.msra.mxu0 %v3941
    %5088 = vmatprep.subr.mxu0 %v3946
    %5089 = vmatpush1.msra.mxu0 %v3945
    %5090 = vmatprep.subr.mxu0 %v3950
    %5091 = vmatpush1.msra.mxu0 %v3949
    %5092 = vmatprep.subr.mxu0 %v3954
    %5093 = vmatpush1.msra.mxu0 %v3953
    %5094 = vmatprep.subr.mxu0 %v3958
    %5095 = vmatpush1.msra.mxu0 %v3957
    %5096 = vmatprep.subr.mxu0 %v3962
    %5097 = vmatpush1.msra.mxu0 %v3961
    %5098 = vmatprep.subr.mxu0 %v3966
    %5099 = vmatpush1.msra.mxu0 %v3965
    %5100 = vmatprep.subr.mxu0 %v3970
    %5101 = vmatpush1.msra.mxu0 %v3969
    %5102 = vmatprep.subr.mxu0 %v3974
    %5103 = vmatpush1.msra.mxu0 %v3973
    %5104 = vmatprep.subr.mxu0 %v3978
    %5105 = vmatpush1.msra.mxu0 %v3977
    %5106 = vmatprep.subr.mxu0 %v3982
    %5107 = vmatpush1.msra.mxu0 %v3981
    %5108 = vmatprep.subr.mxu0 %v3986
    %5109 = vmatpush1.msra.mxu0 %v3985
    %5110 = vmatprep.subr.mxu0 0.0
    %5111 = vmatpush1.msra.mxu0 0.0
    %5112 = vmatprep.subr.mxu0 0.0
    %5113 = vmatpush1.msra.mxu0 0.0
    %5114 = vmatprep.subr.mxu0 0.0
    %5115 = vmatpush1.msra.mxu0 0.0
    %5116 = vmatprep.subr.mxu0 0.0
    %5117 = vmatpush1.msra.mxu0 0.0
    %5118 = vmatprep.subr.mxu0 0.0
    %5119 = vmatpush1.msra.mxu0 0.0
    %5120 = vmatprep.subr.mxu0 0.0
    %5121 = vmatpush1.msra.mxu0 0.0
    %5122 = vmatprep.subr.mxu0 0.0
    %5123 = vmatpush1.msra.mxu0 0.0
    %5124 = vmatprep.subr.mxu0 0.0
    %5125 = vmatpush1.msra.mxu0 0.0
    %5126 = vmatprep.subr.mxu0 0.0
    %5127 = vmatpush1.msra.mxu0 0.0
    %5128 = vmatprep.subr.mxu0 0.0
    %5129 = vmatpush1.msra.mxu0 0.0
    %5130 = vmatprep.subr.mxu0 0.0
    %5131 = vmatpush1.msra.mxu0 0.0
    %5132 = vmatprep.subr.mxu0 0.0
    %5133 = vmatpush1.msra.mxu0 0.0
    %5134 = vmatprep.subr.mxu0 0.0
    %5135 = vmatpush1.msra.mxu0 0.0
    %5136 = vmatprep.subr.mxu0 0.0
    %5137 = vmatpush1.msra.mxu0 0.0
    %5138 = vmatprep.subr.mxu0 0.0
    %5139 = vmatpush1.msra.mxu0 0.0
    %5140 = vmatprep.subr.mxu0 0.0
    %5141 = vmatpush1.msra.mxu0 0.0
    %5142 = vmatprep.mubr.f32.mxu0 0.0
    %5143 = vmatmul.mubr.f32.gmra.mrb[0].mxu0 %v5006
    %v5144 = vpop.f32.mrb[0].mxu0
    %v5145 = vadd.f32 0.0, %v5144
    %v5146 = vpop.f32.mrb[0].mxu0
    %v5147 = vadd.f32 0.0, %v5146
    %5148 = vdwg.mxu0
    %v5149 = vadd.f32 %v3706, %v5074
    %v5150 = vadd.f32 %v3708, %v5076
    %v5151 = vadd.f32 %v3777, %v5145
    %v5152 = vadd.f32 %v3779, %v5147
    %v5153 = vxor.u32 %v5149, 2147483648
    %v5154 = vmul.f32 %v5153, 1.442695
    %v5155 = vpow.pop %v5154
    %v5156 = vadd.f32 %v5155, 1.0
    %v5157 = vrcp.pop %v5156
    %v5158 = vmul.f32 1.0, %v5157
    %v5159 = vxor.u32 %v5150, 2147483648
    %v5160 = vmul.f32 %v5159, 1.442695
    %v5161 = vpow.pop %v5160
    %v5162 = vadd.f32 %v5161, 1.0
    %v5163 = vrcp.pop %v5162
    %v5164 = vmul.f32 1.0, %v5163
    %v5165 = vtanh.pop %v5151
    %v5166 = vxor.u32 %v5152, 2147483648
    %v5167 = vmul.f32 %v5166, 1.442695
    %v5168 = vpow.pop %v5167
    %v5169 = vadd.f32 %v5168, 1.0
    %v5170 = vrcp.pop %v5169
    %v5171 = vmul.f32 1.0, %v5170
    %v5172 = vmul.f32 %v5164, %v5004
    %v5173 = vmul.f32 %v5158, %v5165
    %v5174 = vadd.f32 %v5172, %v5173
    %v5175 = vtanh.pop %v5174
    %v5176 = vmul.f32 %v5171, %v5175
    %5177 = vmatprep.subr.mxu0 %v3924
    %5178 = vmatpush1.msra.mxu0 %v3923
    %5179 = vmatprep.subr.mxu0 %v3928
    %5180 = vmatpush1.msra.mxu0 %v3927
    %5181 = vmatprep.subr.mxu0 %v3932
    %5182 = vmatpush1.msra.mxu0 %v3931
    %5183 = vmatprep.subr.mxu0 %v3936
    %5184 = vmatpush1.msra.mxu0 %v3935
    %5185 = vmatprep.subr.mxu0 %v3940
    %5186 = vmatpush1.msra.mxu0 %v3939
    %5187 = vmatprep.subr.mxu0 %v3944
    %5188 = vmatpush1.msra.mxu0 %v3943
    %5189 = vmatprep.subr.mxu0 %v3948
    %5190 = vmatpush1.msra.mxu0 %v3947
    %5191 = vmatprep.subr.mxu0 %v3952
    %5192 = vmatpush1.msra.mxu0 %v3951
    %5193 = vmatprep.subr.mxu0 %v3956
    %5194 = vmatpush1.msra.mxu0 %v3955
    %5195 = vmatprep.subr.mxu0 %v3960
    %5196 = vmatpush1.msra.mxu0 %v3959
    %5197 = vmatprep.subr.mxu0 %v3964
    %5198 = vmatpush1.msra.mxu0 %v3963
    %5199 = vmatprep.subr.mxu0 %v3968
    %5200 = vmatpush1.msra.mxu0 %v3967
    %5201 = vmatprep.subr.mxu0 %v3972
    %5202 = vmatpush1.msra.mxu0 %v3971
    %5203 = vmatprep.subr.mxu0 %v3976
    %5204 = vmatpush1.msra.mxu0 %v3975
    %5205 = vmatprep.subr.mxu0 %v3980
    %5206 = vmatpush1.msra.mxu0 %v3979
    %5207 = vmatprep.subr.mxu0 %v3984
    %5208 = vmatpush1.msra.mxu0 %v3983
    %5209 = vmatprep.subr.mxu0 0.0
    %5210 = vmatpush1.msra.mxu0 0.0
    %5211 = vmatprep.subr.mxu0 0.0
    %5212 = vmatpush1.msra.mxu0 0.0
    %5213 = vmatprep.subr.mxu0 0.0
    %5214 = vmatpush1.msra.mxu0 0.0
    %5215 = vmatprep.subr.mxu0 0.0
    %5216 = vmatpush1.msra.mxu0 0.0
    %5217 = vmatprep.subr.mxu0 0.0
    %5218 = vmatpush1.msra.mxu0 0.0
    %5219 = vmatprep.subr.mxu0 0.0
    %5220 = vmatpush1.msra.mxu0 0.0
    %5221 = vmatprep.subr.mxu0 0.0
    %5222 = vmatpush1.msra.mxu0 0.0
    %5223 = vmatprep.subr.mxu0 0.0
    %5224 = vmatpush1.msra.mxu0 0.0
    %5225 = vmatprep.subr.mxu0 0.0
    %5226 = vmatpush1.msra.mxu0 0.0
    %5227 = vmatprep.subr.mxu0 0.0
    %5228 = vmatpush1.msra.mxu0 0.0
    %5229 = vmatprep.subr.mxu0 0.0
    %5230 = vmatpush1.msra.mxu0 0.0
    %5231 = vmatprep.subr.mxu0 0.0
    %5232 = vmatpush1.msra.mxu0 0.0
    %5233 = vmatprep.subr.mxu0 0.0
    %5234 = vmatpush1.msra.mxu0 0.0
    %5235 = vmatprep.subr.mxu0 0.0
    %5236 = vmatpush1.msra.mxu0 0.0
    %5237 = vmatprep.subr.mxu0 0.0
    %5238 = vmatpush1.msra.mxu0 0.0
    %5239 = vmatprep.subr.mxu0 0.0
    %5240 = vmatpush1.msra.mxu0 0.0
    %5241 = vmatprep.mubr.f32.mxu0 0.0
    %5242 = vmatmul.mubr.f32.gmra.mrb[0].mxu0 %v5176
    %v5243 = vpop.f32.mrb[0].mxu0
    %v5244 = vadd.f32 0.0, %v5243
    %v5245 = vpop.f32.mrb[0].mxu0
    %v5246 = vadd.f32 0.0, %v5245
    %5247 = vdwg.mxu0
    %5248 = vmatprep.subr.mxu0 %v3926
    %5249 = vmatpush1.msra.mxu0 %v3925
    %5250 = vmatprep.subr.mxu0 %v3930
    %5251 = vmatpush1.msra.mxu0 %v3929
    %5252 = vmatprep.subr.mxu0 %v3934
    %5253 = vmatpush1.msra.mxu0 %v3933
    %5254 = vmatprep.subr.mxu0 %v3938
    %5255 = vmatpush1.msra.mxu0 %v3937
    %5256 = vmatprep.subr.mxu0 %v3942
    %5257 = vmatpush1.msra.mxu0 %v3941
    %5258 = vmatprep.subr.mxu0 %v3946
    %5259 = vmatpush1.msra.mxu0 %v3945
    %5260 = vmatprep.subr.mxu0 %v3950
    %5261 = vmatpush1.msra.mxu0 %v3949
    %5262 = vmatprep.subr.mxu0 %v3954
    %5263 = vmatpush1.msra.mxu0 %v3953
    %5264 = vmatprep.subr.mxu0 %v3958
    %5265 = vmatpush1.msra.mxu0 %v3957
    %5266 = vmatprep.subr.mxu0 %v3962
    %5267 = vmatpush1.msra.mxu0 %v3961
    %5268 = vmatprep.subr.mxu0 %v3966
    %5269 = vmatpush1.msra.mxu0 %v3965
    %5270 = vmatprep.subr.mxu0 %v3970
    %5271 = vmatpush1.msra.mxu0 %v3969
    %5272 = vmatprep.subr.mxu0 %v3974
    %5273 = vmatpush1.msra.mxu0 %v3973
    %5274 = vmatprep.subr.mxu0 %v3978
    %5275 = vmatpush1.msra.mxu0 %v3977
    %5276 = vmatprep.subr.mxu0 %v3982
    %5277 = vmatpush1.msra.mxu0 %v3981
    %5278 = vmatprep.subr.mxu0 %v3986
    %5279 = vmatpush1.msra.mxu0 %v3985
    %5280 = vmatprep.subr.mxu0 0.0
    %5281 = vmatpush1.msra.mxu0 0.0
    %5282 = vmatprep.subr.mxu0 0.0
    %5283 = vmatpush1.msra.mxu0 0.0
    %5284 = vmatprep.subr.mxu0 0.0
    %5285 = vmatpush1.msra.mxu0 0.0
    %5286 = vmatprep.subr.mxu0 0.0
    %5287 = vmatpush1.msra.mxu0 0.0
    %5288 = vmatprep.subr.mxu0 0.0
    %5289 = vmatpush1.msra.mxu0 0.0
    %5290 = vmatprep.subr.mxu0 0.0
    %5291 = vmatpush1.msra.mxu0 0.0
    %5292 = vmatprep.subr.mxu0 0.0
    %5293 = vmatpush1.msra.mxu0 0.0
    %5294 = vmatprep.subr.mxu0 0.0
    %5295 = vmatpush1.msra.mxu0 0.0
    %5296 = vmatprep.subr.mxu0 0.0
    %5297 = vmatpush1.msra.mxu0 0.0
    %5298 = vmatprep.subr.mxu0 0.0
    %5299 = vmatpush1.msra.mxu0 0.0
    %5300 = vmatprep.subr.mxu0 0.0
    %5301 = vmatpush1.msra.mxu0 0.0
    %5302 = vmatprep.subr.mxu0 0.0
    %5303 = vmatpush1.msra.mxu0 0.0
    %5304 = vmatprep.subr.mxu0 0.0
    %5305 = vmatpush1.msra.mxu0 0.0
    %5306 = vmatprep.subr.mxu0 0.0
    %5307 = vmatpush1.msra.mxu0 0.0
    %5308 = vmatprep.subr.mxu0 0.0
    %5309 = vmatpush1.msra.mxu0 0.0
    %5310 = vmatprep.subr.mxu0 0.0
    %5311 = vmatpush1.msra.mxu0 0.0
    %5312 = vmatprep.mubr.f32.mxu0 0.0
    %5313 = vmatmul.mubr.f32.gmra.mrb[0].mxu0 %v5176
    %v5314 = vpop.f32.mrb[0].mxu0
    %v5315 = vadd.f32 0.0, %v5314
    %v5316 = vpop.f32.mrb[0].mxu0
    %v5317 = vadd.f32 0.0, %v5316
    %5318 = vdwg.mxu0
    %v5319 = vadd.f32 %v3848, %v5244
    %v5320 = vadd.f32 %v3850, %v5246
    %v5321 = vadd.f32 %v3919, %v5315
    %v5322 = vadd.f32 %v3921, %v5317
    %v5323 = vxor.u32 %v5319, 2147483648
    %v5324 = vmul.f32 %v5323, 1.442695
    %v5325 = vpow.pop %v5324
    %v5326 = vadd.f32 %v5325, 1.0
    %v5327 = vrcp.pop %v5326
    %v5328 = vmul.f32 1.0, %v5327
    %v5329 = vxor.u32 %v5320, 2147483648
    %v5330 = vmul.f32 %v5329, 1.442695
    %v5331 = vpow.pop %v5330
    %v5332 = vadd.f32 %v5331, 1.0
    %v5333 = vrcp.pop %v5332
    %v5334 = vmul.f32 1.0, %v5333
    %v5335 = vtanh.pop %v5321
    %v5336 = vxor.u32 %v5322, 2147483648
    %v5337 = vmul.f32 %v5336, 1.442695
    %v5338 = vpow.pop %v5337
    %v5339 = vadd.f32 %v5338, 1.0
    %v5340 = vrcp.pop %v5339
    %v5341 = vmul.f32 1.0, %v5340
    %v5342 = vmul.f32 %v5334, %v5174
    %v5343 = vmul.f32 %v5328, %v5335
    %v5344 = vadd.f32 %v5342, %v5343
    %v5345 = vtanh.pop %v5344
    %v5346 = vmul.f32 %v5341, %v5345
    %v5347 = vld [vmem:[%s7] sm:$0xff]
    %v5348 = vld [vmem:[%s7 + $0x8] sm:$0xff]
    %v5349 = vld [vmem:[%s7 + $0x10] sm:$0xff]
    %v5350 = vld [vmem:[%s7 + $0x18] sm:$0xff]
    %v5351 = vld [vmem:[%s7 + $0x20] sm:$0xff]
    %v5352 = vld [vmem:[%s7 + $0x28] sm:$0xff]
    %v5353 = vld [vmem:[%s7 + $0x30] sm:$0xff]
    %v5354 = vld [vmem:[%s7 + $0x38] sm:$0xff]
    %v5355 = vld [vmem:[%s7 + $0x40] sm:$0xff]
    %v5356 = vld [vmem:[%s7 + $0x48] sm:$0xff]
    %v5357 = vld [vmem:[%s7 + $0x50] sm:$0xff]
    %v5358 = vld [vmem:[%s7 + $0x58] sm:$0xff]
    %v5359 = vld [vmem:[%s7 + $0x60] sm:$0xff]
    %v5360 = vld [vmem:[%s7 + $0x68] sm:$0xff]
    %v5361 = vld [vmem:[%s7 + $0x70] sm:$0xff]
    %v5362 = vld [vmem:[%s7 + $0x78] sm:$0xff]
    %v5363 = vld [vmem:[#allocation2] sm:$0x1]
    %v5365 = vlaneseq
    %v5366 = vshrl.u32 %v5365, 7
    %v5367 = vsub.s32 0, %v5366
    %v5368 = vrot.slane %v5363, %v5367
    %5370 = vmatprep.subr.mxu0 0.0
    %5371 = vmatpush1.msra.mxu0 %v5347
    %5372 = vmatprep.subr.mxu0 0.0
    %5373 = vmatpush1.msra.mxu0 %v5348
    %5374 = vmatprep.subr.mxu0 0.0
    %5375 = vmatpush1.msra.mxu0 %v5349
    %5376 = vmatprep.subr.mxu0 0.0
    %5377 = vmatpush1.msra.mxu0 %v5350
    %5378 = vmatprep.subr.mxu0 0.0
    %5379 = vmatpush1.msra.mxu0 %v5351
    %5380 = vmatprep.subr.mxu0 0.0
    %5381 = vmatpush1.msra.mxu0 %v5352
    %5382 = vmatprep.subr.mxu0 0.0
    %5383 = vmatpush1.msra.mxu0 %v5353
    %5384 = vmatprep.subr.mxu0 0.0
    %5385 = vmatpush1.msra.mxu0 %v5354
    %5386 = vmatprep.subr.mxu0 0.0
    %5387 = vmatpush1.msra.mxu0 %v5355
    %5388 = vmatprep.subr.mxu0 0.0
    %5389 = vmatpush1.msra.mxu0 %v5356
    %5390 = vmatprep.subr.mxu0 0.0
    %5391 = vmatpush1.msra.mxu0 %v5357
    %5392 = vmatprep.subr.mxu0 0.0
    %5393 = vmatpush1.msra.mxu0 %v5358
    %5394 = vmatprep.subr.mxu0 0.0
    %5395 = vmatpush1.msra.mxu0 %v5359
    %5396 = vmatprep.subr.mxu0 0.0
    %5397 = vmatpush1.msra.mxu0 %v5360
    %5398 = vmatprep.subr.mxu0 0.0
    %5399 = vmatpush1.msra.mxu0 %v5361
    %5400 = vmatprep.subr.mxu0 0.0
    %5401 = vmatpush1.msra.mxu0 %v5362
    %5402 = vmatprep.subr.mxu0 0.0
    %5403 = vmatpush1.msra.mxu0 0.0
    %5404 = vmatprep.subr.mxu0 0.0
    %5405 = vmatpush1.msra.mxu0 0.0
    %5406 = vmatprep.subr.mxu0 0.0
    %5407 = vmatpush1.msra.mxu0 0.0
    %5408 = vmatprep.subr.mxu0 0.0
    %5409 = vmatpush1.msra.mxu0 0.0
    %5410 = vmatprep.subr.mxu0 0.0
    %5411 = vmatpush1.msra.mxu0 0.0
    %5412 = vmatprep.subr.mxu0 0.0
    %5413 = vmatpush1.msra.mxu0 0.0
    %5414 = vmatprep.subr.mxu0 0.0
    %5415 = vmatpush1.msra.mxu0 0.0
    %5416 = vmatprep.subr.mxu0 0.0
    %5417 = vmatpush1.msra.mxu0 0.0
    %5418 = vmatprep.subr.mxu0 0.0
    %5419 = vmatpush1.msra.mxu0 0.0
    %5420 = vmatprep.subr.mxu0 0.0
    %5421 = vmatpush1.msra.mxu0 0.0
    %5422 = vmatprep.subr.mxu0 0.0
    %5423 = vmatpush1.msra.mxu0 0.0
    %5424 = vmatprep.subr.mxu0 0.0
    %5425 = vmatpush1.msra.mxu0 0.0
    %5426 = vmatprep.subr.mxu0 0.0
    %5427 = vmatpush1.msra.mxu0 0.0
    %5428 = vmatprep.subr.mxu0 0.0
    %5429 = vmatpush1.msra.mxu0 0.0
    %5430 = vmatprep.subr.mxu0 0.0
    %5431 = vmatpush1.msra.mxu0 0.0
    %5432 = vmatprep.subr.mxu0 0.0
    %5433 = vmatpush1.msra.mxu0 0.0
    %5434 = vmatprep.mubr.f32.mxu0 0.0
    %5435 = vmatmul.mubr.f32.gmra.mrb[0].mxu0 %v5346
    %v5436 = vpop.f32.mrb[0].mxu0
    %v5437 = vadd.f32 %v5368, %v5436
    %v5438 = vpop.f32.mrb[0].mxu0
    %5439 = vdwg.mxu0
    %v5440 = vxor.u32 %v5437, 2147483648
    %v5441 = vmul.f32 %v5440, 1.442695
    %v5442 = vpow.pop %v5441
    %v5443 = vadd.f32 %v5442, 1.0
    %v5444 = vrcp.pop %v5443
    %v5445 = vmul.f32 1.0, %v5444
    %vm5446 = vcmask 3072
    %5447 = vst.msk [vmem:[%s9] sm:$0xf] %vm5446, %v5445
    // Predicated region
    $region50: #{stock_price_predictor.1} parent=1 // pred_check
      _
    $region51: #{stock_price_predictor.1} parent=1 // pred_check_branch
      %5449 = sbr.rel (0) target = $region53
    $region52: #{stock_price_predictor.1} parent=1 // pred_region
      _
    $region53: #{stock_price_predictor.1} parent=1 // pred_fallthru
      _
    // Predicated region
    $region54: #{stock_price_predictor.1} parent=1 // pred_check
      _
    $region55: #{stock_price_predictor.1} parent=1 // pred_check_branch
      %5451 = sbr.rel (0) target = $region57
    $region56: #{stock_price_predictor.1} parent=1 // pred_region
      _
    $region57: #{stock_price_predictor.1} parent=1 // pred_fallthru
      _
    %5452 = vsyncpa [#allocation4], 1
    %5453 = vsyncpa [#allocation6], 1

</llo_original>
